<compile_context>
chip_gen: v7x
topology: tpu7x:2x2x1
jax: 0.10.0
libtpu: 0.0.40
codegen_flags: <defaults>
</compile_context>

<pallas_src>
import jax
import jax.numpy as jnp
from jax import lax
from jax.experimental import pallas as pl
from jax.experimental.pallas import tpu as pltpu  # noqa: F401  (kept for clarity)

# ---------------- configuration (small, synthetic) ----------------
B = 2                   # batch (batch * vision_obs_horizon folded)
N = 64                  # num_obs_pts
POINT_FEATURE_DIM = 3   # rgb feature dim (use_rgb=True)
IN_DIM = POINT_FEATURE_DIM + 3
H = 32                  # hidden_dim
GX = GY = GZ = 8        # discretizer.grid_shape
V = GX * GY * GZ        # flattened voxel count (512)
VCHUNK = 256            # lane-width chunk of V processed per inner step
# workspace bounds for the discretizer
LX, UX = -1.0, 1.0
LY, UY = -1.0, 1.0
LZ, UZ = -1.0, 1.0


def volume_encoder_kernel(pts_ref, pts_t_ref, wt_ref, b_ref, out_ref):
    # pts:   (B, N, 6) = [rgb | xyz]   (for voxel indexing)
    # pts_t: (B, 6, N)                  (matmul LHS, pre-transposed in wrapper)
    # wt:    (H, 6)  = W^T ;  b: (H, 1) ; out: (B, H, V)  channel-first, lane-dense
    wt = wt_ref[...]                                       # (H, 6)
    bias = b_ref[...]                                      # (H, 1)
    # hoisted once for all batches / chunks
    lanes = lax.broadcasted_iota(jnp.int32, (N, VCHUNK), 1)

    def batch_body(bi, carry):
        pts = pts_ref[bi]                                  # (N, 6)
        xyz = pts[:, POINT_FEATURE_DIM:]                   # (N, 3)
        pts_t = pts_t_ref[bi]                              # (6, N)

        # --- voxel index per axis, scalar constants only (no captured arrays)
        ix = jnp.clip(((xyz[:, 0:1] - LX) * (GX / (UX - LX))).astype(jnp.int32), 0, GX - 1)
        iy = jnp.clip(((xyz[:, 1:2] - LY) * (GY / (UY - LY))).astype(jnp.int32), 0, GY - 1)
        iz = jnp.clip(((xyz[:, 2:3] - LZ) * (GZ / (UZ - LZ))).astype(jnp.int32), 0, GZ - 1)
        flat = ix * (GY * GZ) + iy * GZ + iz               # (N, 1) int32

        # --- scatter-mean of RAW points, then project (linear commutes with mean)
        def chunk_body(c, carry2):
            start = pl.multiple_of(c * VCHUNK, VCHUNK)
            one_hot = (lanes == (flat - start)).astype(jnp.float32)       # (N, VCHUNK)
            counts = jnp.sum(one_hot, axis=0, keepdims=True)              # (1, VCHUNK)
            raw_sum = jnp.dot(pts_t, one_hot,
                              preferred_element_type=jnp.float32,
                              precision=lax.Precision.HIGHEST)            # (6, VCHUNK)
            mean_pts = raw_sum / jnp.maximum(counts, 1.0)                 # (6, VCHUNK)
            vol = jnp.dot(wt, mean_pts,
                          preferred_element_type=jnp.float32,
                          precision=lax.Precision.HIGHEST) + bias         # (H, VCHUNK)
            # empty voxels must be 0 (not the bias) to match the reference
            vol = jnp.where(counts > 0.0, vol, 0.0)
            out_ref[bi, :, pl.ds(start, VCHUNK)] = vol                    # 256-lane store
            return carry2

        lax.fori_loop(0, V // VCHUNK, chunk_body, 0, unroll=True)
        return carry

    lax.fori_loop(0, B, batch_body, 0, unroll=True)


def volume_encoder_forward(xyz, rgb, w, b):
    """xyz, rgb: (B, N, 3) float32; w: (6, H); b: (H,). Returns (B, H, Gx, Gy, Gz)."""
    pts = jnp.concatenate([rgb, xyz], axis=-1).astype(jnp.float32)   # (B, N, 6)
    pts_t = jnp.transpose(pts, (0, 2, 1))                            # (B, 6, N)
    w_t = jnp.transpose(w.astype(jnp.float32))                       # (H, 6)
    b_col = b.astype(jnp.float32).reshape(H, 1)                      # (H, 1)

    # No grid: everything (<200 KB) lives in VMEM for a single invocation.
    out = pl.pallas_call(
        volume_encoder_kernel,
        out_shape=jax.ShapeDtypeStruct((B, H, V), jnp.float32),
    )(pts, pts_t, w_t, b_col)

    # (B, H, V) -> (B, H, Gx, Gy, Gz): contiguous reshape only.
    vol = out.reshape(B, H, GX, GY, GZ)
    # TODO(synk): featurize_volume is abstract in VolumeEncoder; identity used here.
    return vol


def _reference(xyz, rgb, w, b):
    """Pure-JAX reference for correctness checking."""
    feats = jnp.concatenate([rgb, xyz], axis=-1) @ w + b              # (B, N, H)
    ix = jnp.clip(((xyz[..., 0] - LX) * (GX / (UX - LX))).astype(jnp.int32), 0, GX - 1)
    iy = jnp.clip(((xyz[..., 1] - LY) * (GY / (UY - LY))).astype(jnp.int32), 0, GY - 1)
    iz = jnp.clip(((xyz[..., 2] - LZ) * (GZ / (UZ - LZ))).astype(jnp.int32), 0, GZ - 1)
    flat = ix * (GY * GZ) + iy * GZ + iz                              # (B, N)

    def per_batch(f, idx):
        s = jnp.zeros((V, H), jnp.float32).at[idx].add(f)
        c = jnp.zeros((V, 1), jnp.float32).at[idx].add(1.0)
        return s / jnp.maximum(c, 1.0)

    vol = jax.vmap(per_batch)(feats, flat)                            # (B, V, H)
    return vol.reshape(B, GX, GY, GZ, H).transpose(0, 4, 1, 2, 3)     # (B, H, Gx, Gy, Gz)


if __name__ == "__main__":
    key = jax.random.PRNGKey(0)
    k_xyz, k_rgb, k_w, k_b = jax.random.split(key, 4)

    xyz = jax.random.uniform(k_xyz, (B, N, 3), jnp.float32, minval=-1.0, maxval=1.0)
    rgb = jax.random.uniform(k_rgb, (B, N, 3), jnp.float32, minval=0.0, maxval=1.0)

    # deterministic "nn.Linear(point_feature_dim + 3, hidden_dim)" parameters
    w = jax.random.normal(k_w, (IN_DIM, H), jnp.float32) * 0.1        # (6, H)
    b = jax.random.normal(k_b, (H,), jnp.float32) * 0.01

    out = volume_encoder_forward(xyz, rgb, w, b)
    out = jax.block_until_ready(out)

    ref = _reference(xyz, rgb, w, b)
    assert out.shape == (B, H, GX, GY, GZ), out.shape
    assert jnp.allclose(out, ref, atol=1e-4, rtol=1e-4), float(jnp.abs(out - ref).max())

    print("KERNEL_OK")
</pallas_src>

<mosaic_0001>
module attributes {stable_mosaic.version = 11 : i64} {
  func.func @volume_encoder_kernel(%arg0: memref<2x64x6xf32, #tpu.memory_space<vmem>>, %arg1: memref<2x6x64xf32, #tpu.memory_space<vmem>>, %arg2: memref<32x6xf32, #tpu.memory_space<vmem>>, %arg3: memref<32x1xf32, #tpu.memory_space<vmem>>, %arg4: memref<2x32x512xf32, #tpu.memory_space<vmem>>) attributes {dimension_semantics = [], scalar_prefetch = 0 : i64, scratch_operands = 0 : i64, tpu.core_type = #tpu.core_type<tc>} {
    %c0 = arith.constant 0 : index
    %c0_0 = arith.constant 0 : index
    %0 = vector.load %arg2[%c0, %c0_0] : memref<32x6xf32, #tpu.memory_space<vmem>>, vector<32x6xf32>
    %c0_1 = arith.constant 0 : index
    %c0_2 = arith.constant 0 : index
    %1 = vector.load %arg3[%c0_1, %c0_2] : memref<32x1xf32, #tpu.memory_space<vmem>>, vector<32x1xf32>
    %2 = tpu.iota {dimensions = array<i32: 1>} : vector<64x256xi32>
    %c0_i32 = arith.constant 0 : i32
    %3 = arith.index_cast %c0_i32 : i32 to index
    %c0_3 = arith.constant 0 : index
    %c0_4 = arith.constant 0 : index
    %4 = vector.load %arg0[%3, %c0_3, %c0_4] : memref<2x64x6xf32, #tpu.memory_space<vmem>>, vector<1x64x6xf32>
    %5 = vector.shape_cast %4 : vector<1x64x6xf32> to vector<64x6xf32>
    %6 = vector.extract_strided_slice %5 {offsets = [0, 3], sizes = [64, 3], strides = [1, 1]} : vector<64x6xf32> to vector<64x3xf32>
    %7 = arith.index_cast %c0_i32 : i32 to index
    %c0_5 = arith.constant 0 : index
    %c0_6 = arith.constant 0 : index
    %8 = vector.load %arg1[%7, %c0_5, %c0_6] : memref<2x6x64xf32, #tpu.memory_space<vmem>>, vector<1x6x64xf32>
    %9 = vector.shape_cast %8 : vector<1x6x64xf32> to vector<6x64xf32>
    %10 = vector.extract_strided_slice %6 {offsets = [0, 0], sizes = [64, 1], strides = [1, 1]} : vector<64x3xf32> to vector<64x1xf32>
    %cst = arith.constant -1.000000e+00 : f32
    %11 = vector.broadcast %cst : f32 to vector<64x1xf32>
    %12 = arith.subf %10, %11 : vector<64x1xf32>
    %cst_7 = arith.constant 4.000000e+00 : f32
    %13 = vector.broadcast %cst_7 : f32 to vector<64x1xf32>
    %14 = arith.mulf %12, %13 : vector<64x1xf32>
    %15 = arith.fptosi %14 : vector<64x1xf32> to vector<64x1xi32>
    %c0_i32_8 = arith.constant 0 : i32
    %c7_i32 = arith.constant 7 : i32
    %16 = vector.broadcast %c0_i32_8 : i32 to vector<64x1xi32>
    %17 = arith.maxsi %16, %15 : vector<64x1xi32>
    %18 = vector.broadcast %c7_i32 : i32 to vector<64x1xi32>
    %19 = arith.minsi %18, %17 : vector<64x1xi32>
    %20 = vector.extract_strided_slice %6 {offsets = [0, 1], sizes = [64, 1], strides = [1, 1]} : vector<64x3xf32> to vector<64x1xf32>
    %cst_9 = arith.constant -1.000000e+00 : f32
    %21 = vector.broadcast %cst_9 : f32 to vector<64x1xf32>
    %22 = arith.subf %20, %21 : vector<64x1xf32>
    %cst_10 = arith.constant 4.000000e+00 : f32
    %23 = vector.broadcast %cst_10 : f32 to vector<64x1xf32>
    %24 = arith.mulf %22, %23 : vector<64x1xf32>
    %25 = arith.fptosi %24 : vector<64x1xf32> to vector<64x1xi32>
    %c0_i32_11 = arith.constant 0 : i32
    %c7_i32_12 = arith.constant 7 : i32
    %26 = vector.broadcast %c0_i32_11 : i32 to vector<64x1xi32>
    %27 = arith.maxsi %26, %25 : vector<64x1xi32>
    %28 = vector.broadcast %c7_i32_12 : i32 to vector<64x1xi32>
    %29 = arith.minsi %28, %27 : vector<64x1xi32>
    %30 = vector.extract_strided_slice %6 {offsets = [0, 2], sizes = [64, 1], strides = [1, 1]} : vector<64x3xf32> to vector<64x1xf32>
    %cst_13 = arith.constant -1.000000e+00 : f32
    %31 = vector.broadcast %cst_13 : f32 to vector<64x1xf32>
    %32 = arith.subf %30, %31 : vector<64x1xf32>
    %cst_14 = arith.constant 4.000000e+00 : f32
    %33 = vector.broadcast %cst_14 : f32 to vector<64x1xf32>
    %34 = arith.mulf %32, %33 : vector<64x1xf32>
    %35 = arith.fptosi %34 : vector<64x1xf32> to vector<64x1xi32>
    %c0_i32_15 = arith.constant 0 : i32
    %c7_i32_16 = arith.constant 7 : i32
    %36 = vector.broadcast %c0_i32_15 : i32 to vector<64x1xi32>
    %37 = arith.maxsi %36, %35 : vector<64x1xi32>
    %38 = vector.broadcast %c7_i32_16 : i32 to vector<64x1xi32>
    %39 = arith.minsi %38, %37 : vector<64x1xi32>
    %c64_i32 = arith.constant 64 : i32
    %40 = vector.broadcast %c64_i32 : i32 to vector<64x1xi32>
    %41 = arith.muli %19, %40 : vector<64x1xi32>
    %c8_i32 = arith.constant 8 : i32
    %42 = vector.broadcast %c8_i32 : i32 to vector<64x1xi32>
    %43 = arith.muli %29, %42 : vector<64x1xi32>
    %44 = arith.addi %41, %43 : vector<64x1xi32>
    %45 = arith.addi %44, %39 : vector<64x1xi32>
    %c0_i32_17 = arith.constant 0 : i32
    %c256_i32 = arith.constant 256 : i32
    %46 = arith.muli %c0_i32_17, %c256_i32 : i32
    %47 = tpu.assume_multiple %46, 256 : i32
    %48 = vector.broadcast %47 : i32 to vector<64x1xi32>
    %49 = arith.subi %45, %48 : vector<64x1xi32>
    %50 = vector.broadcast %49 : vector<64x1xi32> to vector<64x256xi32>
    %51 = arith.cmpi eq, %2, %50 : vector<64x256xi32>
    %52 = arith.extui %51 : vector<64x256xi1> to vector<64x256xi32>
    %53 = arith.sitofp %52 : vector<64x256xi32> to vector<64x256xf32>
    %cst_18 = arith.constant dense<0.000000e+00> : vector<256xf32>
    %54 = vector.multi_reduction <add>, %53, %cst_18 [0] : vector<64x256xf32> to vector<256xf32>
    %55 = vector.shape_cast %54 : vector<256xf32> to vector<1x256xf32>
    %cst_19 = arith.constant dense<0.000000e+00> : vector<6x256xf32>
    %56 = tpu.matmul %9, %53, %cst_19 {dimension_numbers = #tpu.dot_dimension_numbers<[1], [0], [0], [1], [0, 0, 1, 1], [], []>, precision = #tpu.contract_precision<fp32>} : vector<6x64xf32>, vector<64x256xf32>, vector<6x256xf32> -> vector<6x256xf32>
    %cst_20 = arith.constant 1.000000e+00 : f32
    %57 = vector.broadcast %cst_20 : f32 to vector<1x256xf32>
    %58 = arith.maximumf %55, %57 : vector<1x256xf32>
    %59 = vector.broadcast %58 : vector<1x256xf32> to vector<6x256xf32>
    %60 = arith.divf %56, %59 : vector<6x256xf32>
    %cst_21 = arith.constant dense<0.000000e+00> : vector<32x256xf32>
    %61 = tpu.matmul %0, %60, %cst_21 {dimension_numbers = #tpu.dot_dimension_numbers<[1], [0], [0], [1], [0, 0, 1, 1], [], []>, precision = #tpu.contract_precision<fp32>} : vector<32x6xf32>, vector<6x256xf32>, vector<32x256xf32> -> vector<32x256xf32>
    %62 = vector.broadcast %1 : vector<32x1xf32> to vector<32x256xf32>
    %63 = arith.addf %61, %62 : vector<32x256xf32>
    %cst_22 = arith.constant 0.000000e+00 : f32
    %64 = vector.broadcast %cst_22 : f32 to vector<1x256xf32>
    %65 = arith.cmpf ogt, %55, %64 : vector<1x256xf32>
    %cst_23 = arith.constant 0.000000e+00 : f32
    %66 = vector.shape_cast %65 : vector<1x256xi1> to vector<1x256xi1>
    %67 = vector.broadcast %66 : vector<1x256xi1> to vector<32x256xi1>
    %68 = vector.broadcast %cst_23 : f32 to vector<32x256xf32>
    %69 = arith.select %67, %63, %68 : vector<32x256xi1>, vector<32x256xf32>
    %70 = arith.index_cast %c0_i32 : i32 to index
    %c0_24 = arith.constant 0 : index
    %71 = arith.index_cast %47 : i32 to index
    %72 = vector.load %arg4[%70, %c0_24, %71] : memref<2x32x512xf32, #tpu.memory_space<vmem>>, vector<1x32x256xf32>
    %73 = vector.shape_cast %72 : vector<1x32x256xf32> to vector<32x256xf32>
    %74 = vector.shape_cast %69 : vector<32x256xf32> to vector<1x32x256xf32>
    tpu.vector_store %arg4[%70, %c0_24, %71], %74 {strides = array<i32>} : memref<2x32x512xf32, #tpu.memory_space<vmem>>, vector<1x32x256xf32>,
    %c1_i32 = arith.constant 1 : i32
    %c256_i32_25 = arith.constant 256 : i32
    %75 = arith.muli %c1_i32, %c256_i32_25 : i32
    %76 = tpu.assume_multiple %75, 256 : i32
    %77 = vector.broadcast %76 : i32 to vector<64x1xi32>
    %78 = arith.subi %45, %77 : vector<64x1xi32>
    %79 = vector.broadcast %78 : vector<64x1xi32> to vector<64x256xi32>
    %80 = arith.cmpi eq, %2, %79 : vector<64x256xi32>
    %81 = arith.extui %80 : vector<64x256xi1> to vector<64x256xi32>
    %82 = arith.sitofp %81 : vector<64x256xi32> to vector<64x256xf32>
    %cst_26 = arith.constant dense<0.000000e+00> : vector<256xf32>
    %83 = vector.multi_reduction <add>, %82, %cst_26 [0] : vector<64x256xf32> to vector<256xf32>
    %84 = vector.shape_cast %83 : vector<256xf32> to vector<1x256xf32>
    %cst_27 = arith.constant dense<0.000000e+00> : vector<6x256xf32>
    %85 = tpu.matmul %9, %82, %cst_27 {dimension_numbers = #tpu.dot_dimension_numbers<[1], [0], [0], [1], [0, 0, 1, 1], [], []>, precision = #tpu.contract_precision<fp32>} : vector<6x64xf32>, vector<64x256xf32>, vector<6x256xf32> -> vector<6x256xf32>
    %cst_28 = arith.constant 1.000000e+00 : f32
    %86 = vector.broadcast %cst_28 : f32 to vector<1x256xf32>
    %87 = arith.maximumf %84, %86 : vector<1x256xf32>
    %88 = vector.broadcast %87 : vector<1x256xf32> to vector<6x256xf32>
    %89 = arith.divf %85, %88 : vector<6x256xf32>
    %cst_29 = arith.constant dense<0.000000e+00> : vector<32x256xf32>
    %90 = tpu.matmul %0, %89, %cst_29 {dimension_numbers = #tpu.dot_dimension_numbers<[1], [0], [0], [1], [0, 0, 1, 1], [], []>, precision = #tpu.contract_precision<fp32>} : vector<32x6xf32>, vector<6x256xf32>, vector<32x256xf32> -> vector<32x256xf32>
    %91 = vector.broadcast %1 : vector<32x1xf32> to vector<32x256xf32>
    %92 = arith.addf %90, %91 : vector<32x256xf32>
    %cst_30 = arith.constant 0.000000e+00 : f32
    %93 = vector.broadcast %cst_30 : f32 to vector<1x256xf32>
    %94 = arith.cmpf ogt, %84, %93 : vector<1x256xf32>
    %cst_31 = arith.constant 0.000000e+00 : f32
    %95 = vector.shape_cast %94 : vector<1x256xi1> to vector<1x256xi1>
    %96 = vector.broadcast %95 : vector<1x256xi1> to vector<32x256xi1>
    %97 = vector.broadcast %cst_31 : f32 to vector<32x256xf32>
    %98 = arith.select %96, %92, %97 : vector<32x256xi1>, vector<32x256xf32>
    %99 = arith.index_cast %c0_i32 : i32 to index
    %c0_32 = arith.constant 0 : index
    %100 = arith.index_cast %76 : i32 to index
    %101 = vector.load %arg4[%99, %c0_32, %100] : memref<2x32x512xf32, #tpu.memory_space<vmem>>, vector<1x32x256xf32>
    %102 = vector.shape_cast %101 : vector<1x32x256xf32> to vector<32x256xf32>
    %103 = vector.shape_cast %98 : vector<32x256xf32> to vector<1x32x256xf32>
    tpu.vector_store %arg4[%99, %c0_32, %100], %103 {strides = array<i32>} : memref<2x32x512xf32, #tpu.memory_space<vmem>>, vector<1x32x256xf32>,
    %c2_i32 = arith.constant 2 : i32
    %c1_i32_33 = arith.constant 1 : i32
    %104 = arith.index_cast %c1_i32_33 : i32 to index
    %c0_34 = arith.constant 0 : index
    %c0_35 = arith.constant 0 : index
    %105 = vector.load %arg0[%104, %c0_34, %c0_35] : memref<2x64x6xf32, #tpu.memory_space<vmem>>, vector<1x64x6xf32>
    %106 = vector.shape_cast %105 : vector<1x64x6xf32> to vector<64x6xf32>
    %107 = vector.extract_strided_slice %106 {offsets = [0, 3], sizes = [64, 3], strides = [1, 1]} : vector<64x6xf32> to vector<64x3xf32>
    %108 = arith.index_cast %c1_i32_33 : i32 to index
    %c0_36 = arith.constant 0 : index
    %c0_37 = arith.constant 0 : index
    %109 = vector.load %arg1[%108, %c0_36, %c0_37] : memref<2x6x64xf32, #tpu.memory_space<vmem>>, vector<1x6x64xf32>
    %110 = vector.shape_cast %109 : vector<1x6x64xf32> to vector<6x64xf32>
    %111 = vector.extract_strided_slice %107 {offsets = [0, 0], sizes = [64, 1], strides = [1, 1]} : vector<64x3xf32> to vector<64x1xf32>
    %cst_38 = arith.constant -1.000000e+00 : f32
    %112 = vector.broadcast %cst_38 : f32 to vector<64x1xf32>
    %113 = arith.subf %111, %112 : vector<64x1xf32>
    %cst_39 = arith.constant 4.000000e+00 : f32
    %114 = vector.broadcast %cst_39 : f32 to vector<64x1xf32>
    %115 = arith.mulf %113, %114 : vector<64x1xf32>
    %116 = arith.fptosi %115 : vector<64x1xf32> to vector<64x1xi32>
    %c0_i32_40 = arith.constant 0 : i32
    %c7_i32_41 = arith.constant 7 : i32
    %117 = vector.broadcast %c0_i32_40 : i32 to vector<64x1xi32>
    %118 = arith.maxsi %117, %116 : vector<64x1xi32>
    %119 = vector.broadcast %c7_i32_41 : i32 to vector<64x1xi32>
    %120 = arith.minsi %119, %118 : vector<64x1xi32>
    %121 = vector.extract_strided_slice %107 {offsets = [0, 1], sizes = [64, 1], strides = [1, 1]} : vector<64x3xf32> to vector<64x1xf32>
    %cst_42 = arith.constant -1.000000e+00 : f32
    %122 = vector.broadcast %cst_42 : f32 to vector<64x1xf32>
    %123 = arith.subf %121, %122 : vector<64x1xf32>
    %cst_43 = arith.constant 4.000000e+00 : f32
    %124 = vector.broadcast %cst_43 : f32 to vector<64x1xf32>
    %125 = arith.mulf %123, %124 : vector<64x1xf32>
    %126 = arith.fptosi %125 : vector<64x1xf32> to vector<64x1xi32>
    %c0_i32_44 = arith.constant 0 : i32
    %c7_i32_45 = arith.constant 7 : i32
    %127 = vector.broadcast %c0_i32_44 : i32 to vector<64x1xi32>
    %128 = arith.maxsi %127, %126 : vector<64x1xi32>
    %129 = vector.broadcast %c7_i32_45 : i32 to vector<64x1xi32>
    %130 = arith.minsi %129, %128 : vector<64x1xi32>
    %131 = vector.extract_strided_slice %107 {offsets = [0, 2], sizes = [64, 1], strides = [1, 1]} : vector<64x3xf32> to vector<64x1xf32>
    %cst_46 = arith.constant -1.000000e+00 : f32
    %132 = vector.broadcast %cst_46 : f32 to vector<64x1xf32>
    %133 = arith.subf %131, %132 : vector<64x1xf32>
    %cst_47 = arith.constant 4.000000e+00 : f32
    %134 = vector.broadcast %cst_47 : f32 to vector<64x1xf32>
    %135 = arith.mulf %133, %134 : vector<64x1xf32>
    %136 = arith.fptosi %135 : vector<64x1xf32> to vector<64x1xi32>
    %c0_i32_48 = arith.constant 0 : i32
    %c7_i32_49 = arith.constant 7 : i32
    %137 = vector.broadcast %c0_i32_48 : i32 to vector<64x1xi32>
    %138 = arith.maxsi %137, %136 : vector<64x1xi32>
    %139 = vector.broadcast %c7_i32_49 : i32 to vector<64x1xi32>
    %140 = arith.minsi %139, %138 : vector<64x1xi32>
    %c64_i32_50 = arith.constant 64 : i32
    %141 = vector.broadcast %c64_i32_50 : i32 to vector<64x1xi32>
    %142 = arith.muli %120, %141 : vector<64x1xi32>
    %c8_i32_51 = arith.constant 8 : i32
    %143 = vector.broadcast %c8_i32_51 : i32 to vector<64x1xi32>
    %144 = arith.muli %130, %143 : vector<64x1xi32>
    %145 = arith.addi %142, %144 : vector<64x1xi32>
    %146 = arith.addi %145, %140 : vector<64x1xi32>
    %c0_i32_52 = arith.constant 0 : i32
    %c256_i32_53 = arith.constant 256 : i32
    %147 = arith.muli %c0_i32_52, %c256_i32_53 : i32
    %148 = tpu.assume_multiple %147, 256 : i32
    %149 = vector.broadcast %148 : i32 to vector<64x1xi32>
    %150 = arith.subi %146, %149 : vector<64x1xi32>
    %151 = vector.broadcast %150 : vector<64x1xi32> to vector<64x256xi32>
    %152 = arith.cmpi eq, %2, %151 : vector<64x256xi32>
    %153 = arith.extui %152 : vector<64x256xi1> to vector<64x256xi32>
    %154 = arith.sitofp %153 : vector<64x256xi32> to vector<64x256xf32>
    %cst_54 = arith.constant dense<0.000000e+00> : vector<256xf32>
    %155 = vector.multi_reduction <add>, %154, %cst_54 [0] : vector<64x256xf32> to vector<256xf32>
    %156 = vector.shape_cast %155 : vector<256xf32> to vector<1x256xf32>
    %cst_55 = arith.constant dense<0.000000e+00> : vector<6x256xf32>
    %157 = tpu.matmul %110, %154, %cst_55 {dimension_numbers = #tpu.dot_dimension_numbers<[1], [0], [0], [1], [0, 0, 1, 1], [], []>, precision = #tpu.contract_precision<fp32>} : vector<6x64xf32>, vector<64x256xf32>, vector<6x256xf32> -> vector<6x256xf32>
    %cst_56 = arith.constant 1.000000e+00 : f32
    %158 = vector.broadcast %cst_56 : f32 to vector<1x256xf32>
    %159 = arith.maximumf %156, %158 : vector<1x256xf32>
    %160 = vector.broadcast %159 : vector<1x256xf32> to vector<6x256xf32>
    %161 = arith.divf %157, %160 : vector<6x256xf32>
    %cst_57 = arith.constant dense<0.000000e+00> : vector<32x256xf32>
    %162 = tpu.matmul %0, %161, %cst_57 {dimension_numbers = #tpu.dot_dimension_numbers<[1], [0], [0], [1], [0, 0, 1, 1], [], []>, precision = #tpu.contract_precision<fp32>} : vector<32x6xf32>, vector<6x256xf32>, vector<32x256xf32> -> vector<32x256xf32>
    %163 = vector.broadcast %1 : vector<32x1xf32> to vector<32x256xf32>
    %164 = arith.addf %162, %163 : vector<32x256xf32>
    %cst_58 = arith.constant 0.000000e+00 : f32
    %165 = vector.broadcast %cst_58 : f32 to vector<1x256xf32>
    %166 = arith.cmpf ogt, %156, %165 : vector<1x256xf32>
    %cst_59 = arith.constant 0.000000e+00 : f32
    %167 = vector.shape_cast %166 : vector<1x256xi1> to vector<1x256xi1>
    %168 = vector.broadcast %167 : vector<1x256xi1> to vector<32x256xi1>
    %169 = vector.broadcast %cst_59 : f32 to vector<32x256xf32>
    %170 = arith.select %168, %164, %169 : vector<32x256xi1>, vector<32x256xf32>
    %171 = arith.index_cast %c1_i32_33 : i32 to index
    %c0_60 = arith.constant 0 : index
    %172 = arith.index_cast %148 : i32 to index
    %173 = vector.load %arg4[%171, %c0_60, %172] : memref<2x32x512xf32, #tpu.memory_space<vmem>>, vector<1x32x256xf32>
    %174 = vector.shape_cast %173 : vector<1x32x256xf32> to vector<32x256xf32>
    %175 = vector.shape_cast %170 : vector<32x256xf32> to vector<1x32x256xf32>
    tpu.vector_store %arg4[%171, %c0_60, %172], %175 {strides = array<i32>} : memref<2x32x512xf32, #tpu.memory_space<vmem>>, vector<1x32x256xf32>,
    %c1_i32_61 = arith.constant 1 : i32
    %c256_i32_62 = arith.constant 256 : i32
    %176 = arith.muli %c1_i32_61, %c256_i32_62 : i32
    %177 = tpu.assume_multiple %176, 256 : i32
    %178 = vector.broadcast %177 : i32 to vector<64x1xi32>
    %179 = arith.subi %146, %178 : vector<64x1xi32>
    %180 = vector.broadcast %179 : vector<64x1xi32> to vector<64x256xi32>
    %181 = arith.cmpi eq, %2, %180 : vector<64x256xi32>
    %182 = arith.extui %181 : vector<64x256xi1> to vector<64x256xi32>
    %183 = arith.sitofp %182 : vector<64x256xi32> to vector<64x256xf32>
    %cst_63 = arith.constant dense<0.000000e+00> : vector<256xf32>
    %184 = vector.multi_reduction <add>, %183, %cst_63 [0] : vector<64x256xf32> to vector<256xf32>
    %185 = vector.shape_cast %184 : vector<256xf32> to vector<1x256xf32>
    %cst_64 = arith.constant dense<0.000000e+00> : vector<6x256xf32>
    %186 = tpu.matmul %110, %183, %cst_64 {dimension_numbers = #tpu.dot_dimension_numbers<[1], [0], [0], [1], [0, 0, 1, 1], [], []>, precision = #tpu.contract_precision<fp32>} : vector<6x64xf32>, vector<64x256xf32>, vector<6x256xf32> -> vector<6x256xf32>
    %cst_65 = arith.constant 1.000000e+00 : f32
    %187 = vector.broadcast %cst_65 : f32 to vector<1x256xf32>
    %188 = arith.maximumf %185, %187 : vector<1x256xf32>
    %189 = vector.broadcast %188 : vector<1x256xf32> to vector<6x256xf32>
    %190 = arith.divf %186, %189 : vector<6x256xf32>
    %cst_66 = arith.constant dense<0.000000e+00> : vector<32x256xf32>
    %191 = tpu.matmul %0, %190, %cst_66 {dimension_numbers = #tpu.dot_dimension_numbers<[1], [0], [0], [1], [0, 0, 1, 1], [], []>, precision = #tpu.contract_precision<fp32>} : vector<32x6xf32>, vector<6x256xf32>, vector<32x256xf32> -> vector<32x256xf32>
    %192 = vector.broadcast %1 : vector<32x1xf32> to vector<32x256xf32>
    %193 = arith.addf %191, %192 : vector<32x256xf32>
    %cst_67 = arith.constant 0.000000e+00 : f32
    %194 = vector.broadcast %cst_67 : f32 to vector<1x256xf32>
    %195 = arith.cmpf ogt, %185, %194 : vector<1x256xf32>
    %cst_68 = arith.constant 0.000000e+00 : f32
    %196 = vector.shape_cast %195 : vector<1x256xi1> to vector<1x256xi1>
    %197 = vector.broadcast %196 : vector<1x256xi1> to vector<32x256xi1>
    %198 = vector.broadcast %cst_68 : f32 to vector<32x256xf32>
    %199 = arith.select %197, %193, %198 : vector<32x256xi1>, vector<32x256xf32>
    %200 = arith.index_cast %c1_i32_33 : i32 to index
    %c0_69 = arith.constant 0 : index
    %201 = arith.index_cast %177 : i32 to index
    %202 = vector.load %arg4[%200, %c0_69, %201] : memref<2x32x512xf32, #tpu.memory_space<vmem>>, vector<1x32x256xf32>
    %203 = vector.shape_cast %202 : vector<1x32x256xf32> to vector<32x256xf32>
    %204 = vector.shape_cast %199 : vector<32x256xf32> to vector<1x32x256xf32>
    tpu.vector_store %arg4[%200, %c0_69, %201], %204 {strides = array<i32>} : memref<2x32x512xf32, #tpu.memory_space<vmem>>, vector<1x32x256xf32>,
    %c2_i32_70 = arith.constant 2 : i32
    %c2_i32_71 = arith.constant 2 : i32
    return
  }
}

</mosaic_0001>

<llo_original>
// kernel: tpu_custom_call.1
$region0: #{tpu_custom_call.1}
  #allocation0 [shape = 'u32[]', space=smem, size = 0x4, offset = 0x4, fixed_abs, tag = 'smem constant byte address 0x4 - core index']
  #allocation1 [shape = 'u32[144,128]{1,0:T(1,128)}', space=vmem, size = 0x12000, scoped, tag = 'internal scratch']
  %s0 = inlined_call_operand.vmem [shape: f32[2,64,6], index: 0, kind: input, shape index: {}]
  %s1 = inlined_call_operand.vmem [shape: f32[2,6,64], index: 1, kind: input, shape index: {}]
  %s2 = inlined_call_operand.vmem [shape: f32[32,6], index: 2, kind: input, shape index: {}]
  %s3 = inlined_call_operand.vmem [shape: f32[32,1], index: 3, kind: input, shape index: {}]
  %s4 = inlined_call_operand.hbm [shape: f32[2,32,512], index: 4, kind: output, shape index: {}]
  %s5 = sld [smem:[#allocation0]]
  $region26: #{tpu_custom_call.1} parent=0
    _
  %s7 = ssub.s32 1, %s5
  %s8 = scalar_select 0, %s7, %s5
  $region1: #{tpu_custom_call.1} parent=0
    #allocation2 [shape = 'u8[131072]{0}', space=vmem, size = 0x20000, scoped, tag = 'output window, operand 0, single buffered']
    #allocation3 [shape = 's32[1]{0}', space=sflag, size = 0x4, scoped, tag = 'scoped memory for tpu_custom_call.1']
    %9 = vsyncpa [#allocation3], 0
    // Predicated region
    $region2: #{tpu_custom_call.1} parent=1 // pred_check
      _
    $region3: #{tpu_custom_call.1} parent=1 // pred_check_branch
      %11 = sbr.rel (0) target = $region5
    $region4: #{tpu_custom_call.1} parent=1 // pred_region
      _
    $region5: #{tpu_custom_call.1} parent=1 // pred_fallthru
      _
    // Predicated region
    $region6: #{tpu_custom_call.1} parent=1 // pred_check
      _
    $region7: #{tpu_custom_call.1} parent=1 // pred_check_branch
      %13 = sbr.rel (0) target = $region9
    $region8: #{tpu_custom_call.1} parent=1 // pred_region
      _
    $region9: #{tpu_custom_call.1} parent=1 // pred_fallthru
      _
    // Predicated region
    $region10: #{tpu_custom_call.1} parent=1 // pred_check
      _
    $region11: #{tpu_custom_call.1} parent=1 // pred_check_branch
      %15 = sbr.rel (0) target = $region13
    $region12: #{tpu_custom_call.1} parent=1 // pred_region
      _
    $region13: #{tpu_custom_call.1} parent=1 // pred_fallthru
      _
    // Predicated region
    $region14: #{tpu_custom_call.1} parent=1 // pred_check
      _
    $region15: #{tpu_custom_call.1} parent=1 // pred_check_branch
      %17 = sbr.rel (0) target = $region17
    $region16: #{tpu_custom_call.1} parent=1 // pred_region
      _
    $region17: #{tpu_custom_call.1} parent=1 // pred_fallthru
      _
    %v18 = vld [vmem:[%s2] sm:$0xff]
    %v19 = vld [vmem:[%s2 + $0x8] sm:$0xff]
    %v20 = vld [vmem:[%s2 + $0x10] sm:$0xff]
    %v21 = vld [vmem:[%s2 + $0x18] sm:$0xff]
    %v22 = vld [vmem:[%s3] sm:$0xff]
    %v23 = vld [vmem:[%s3 + $0x8] sm:$0xff]
    %v24 = vld [vmem:[%s3 + $0x10] sm:$0xff]
    %v25 = vld [vmem:[%s3 + $0x18] sm:$0xff]
    %v26 = vlaneseq
    %v27 = vand.u32 %v26, 127
    %v28 = vadd.s32 %v27, 128
    %v29 = vld [vmem:[%s0] sm:$0xff]
    %v30 = vld [vmem:[%s0 + $0x8] sm:$0xff]
    %v31 = vld [vmem:[%s0 + $0x10] sm:$0xff]
    %v32 = vld [vmem:[%s0 + $0x18] sm:$0xff]
    %v33 = vld [vmem:[%s0 + $0x20] sm:$0xff]
    %v34 = vld [vmem:[%s0 + $0x28] sm:$0xff]
    %v35 = vld [vmem:[%s0 + $0x30] sm:$0xff]
    %v36 = vld [vmem:[%s0 + $0x38] sm:$0xff]
    %v37 = vld [vmem:[%s1] sm:$0x3f]
    %v38 = vsub.f32 %v29, -1.0
    %v39 = vsub.f32 %v30, -1.0
    %v40 = vsub.f32 %v31, -1.0
    %v41 = vsub.f32 %v32, -1.0
    %v42 = vsub.f32 %v33, -1.0
    %v43 = vsub.f32 %v34, -1.0
    %v44 = vsub.f32 %v35, -1.0
    %v45 = vsub.f32 %v36, -1.0
    %v46 = vmul.f32 %v38, 4.0
    %v47 = vmul.f32 %v39, 4.0
    %v48 = vmul.f32 %v40, 4.0
    %v49 = vmul.f32 %v41, 4.0
    %v50 = vmul.f32 %v42, 4.0
    %v51 = vmul.f32 %v43, 4.0
    %v52 = vmul.f32 %v44, 4.0
    %v53 = vmul.f32 %v45, 4.0
    %v54 = vcvt.f32.s32.to.zero.pseudo %v46
    %v55 = vcvt.f32.s32.to.zero.pseudo %v47
    %v56 = vcvt.f32.s32.to.zero.pseudo %v48
    %v57 = vcvt.f32.s32.to.zero.pseudo %v49
    %v58 = vcvt.f32.s32.to.zero.pseudo %v50
    %v59 = vcvt.f32.s32.to.zero.pseudo %v51
    %v60 = vcvt.f32.s32.to.zero.pseudo %v52
    %v61 = vcvt.f32.s32.to.zero.pseudo %v53
    %vm62 = vcmp.gt.s32.totalorder %v54, 0
    %v63 = vsel %vm62, %v54, 0
    %vm64 = vcmp.gt.s32.totalorder %v55, 0
    %v65 = vsel %vm64, %v55, 0
    %vm66 = vcmp.gt.s32.totalorder %v56, 0
    %v67 = vsel %vm66, %v56, 0
    %vm68 = vcmp.gt.s32.totalorder %v57, 0
    %v69 = vsel %vm68, %v57, 0
    %vm70 = vcmp.gt.s32.totalorder %v58, 0
    %v71 = vsel %vm70, %v58, 0
    %vm72 = vcmp.gt.s32.totalorder %v59, 0
    %v73 = vsel %vm72, %v59, 0
    %vm74 = vcmp.gt.s32.totalorder %v60, 0
    %v75 = vsel %vm74, %v60, 0
    %vm76 = vcmp.gt.s32.totalorder %v61, 0
    %v77 = vsel %vm76, %v61, 0
    %vm78 = vcmp.lt.s32.totalorder %v63, 7
    %v79 = vsel %vm78, %v63, 7
    %vm80 = vcmp.lt.s32.totalorder %v65, 7
    %v81 = vsel %vm80, %v65, 7
    %vm82 = vcmp.lt.s32.totalorder %v67, 7
    %v83 = vsel %vm82, %v67, 7
    %vm84 = vcmp.lt.s32.totalorder %v69, 7
    %v85 = vsel %vm84, %v69, 7
    %vm86 = vcmp.lt.s32.totalorder %v71, 7
    %v87 = vsel %vm86, %v71, 7
    %vm88 = vcmp.lt.s32.totalorder %v73, 7
    %v89 = vsel %vm88, %v73, 7
    %vm90 = vcmp.lt.s32.totalorder %v75, 7
    %v91 = vsel %vm90, %v75, 7
    %vm92 = vcmp.lt.s32.totalorder %v77, 7
    %v93 = vsel %vm92, %v77, 7
    %v94 = vmul.u32 %v79, 64
    %v95 = vmul.u32 %v81, 64
    %v96 = vmul.u32 %v83, 64
    %v97 = vmul.u32 %v85, 64
    %v98 = vmul.u32 %v87, 64
    %v99 = vmul.u32 %v89, 64
    %v100 = vmul.u32 %v91, 64
    %v101 = vmul.u32 %v93, 64
    %v102 = vmul.u32 %v79, 8
    %v103 = vmul.u32 %v81, 8
    %v104 = vmul.u32 %v83, 8
    %v105 = vmul.u32 %v85, 8
    %v106 = vmul.u32 %v87, 8
    %v107 = vmul.u32 %v89, 8
    %v108 = vmul.u32 %v91, 8
    %v109 = vmul.u32 %v93, 8
    %110 = vrot.lane.b32.xlu0 %v102, 127
    %v111 = vpop.permute.xlu0 %110
    %112 = vrot.lane.b32.xlu0 %v103, 127
    %v113 = vpop.permute.xlu0 %112
    %114 = vrot.lane.b32.xlu0 %v104, 127
    %v115 = vpop.permute.xlu0 %114
    %116 = vrot.lane.b32.xlu0 %v105, 127
    %v117 = vpop.permute.xlu0 %116
    %118 = vrot.lane.b32.xlu0 %v106, 127
    %v119 = vpop.permute.xlu0 %118
    %120 = vrot.lane.b32.xlu0 %v107, 127
    %v121 = vpop.permute.xlu0 %120
    %122 = vrot.lane.b32.xlu0 %v108, 127
    %v123 = vpop.permute.xlu0 %122
    %124 = vrot.lane.b32.xlu0 %v109, 127
    %v125 = vpop.permute.xlu0 %124
    %v126 = vadd.s32 %v94, %v111
    %v127 = vadd.s32 %v95, %v113
    %v128 = vadd.s32 %v96, %v115
    %v129 = vadd.s32 %v97, %v117
    %v130 = vadd.s32 %v98, %v119
    %v131 = vadd.s32 %v99, %v121
    %v132 = vadd.s32 %v100, %v123
    %v133 = vadd.s32 %v101, %v125
    %134 = vrot.lane.b32.xlu0 %v79, 126
    %v135 = vpop.permute.xlu0 %134
    %136 = vrot.lane.b32.xlu0 %v81, 126
    %v137 = vpop.permute.xlu0 %136
    %138 = vrot.lane.b32.xlu0 %v83, 126
    %v139 = vpop.permute.xlu0 %138
    %140 = vrot.lane.b32.xlu0 %v85, 126
    %v141 = vpop.permute.xlu0 %140
    %142 = vrot.lane.b32.xlu0 %v87, 126
    %v143 = vpop.permute.xlu0 %142
    %144 = vrot.lane.b32.xlu0 %v89, 126
    %v145 = vpop.permute.xlu0 %144
    %146 = vrot.lane.b32.xlu0 %v91, 126
    %v147 = vpop.permute.xlu0 %146
    %148 = vrot.lane.b32.xlu0 %v93, 126
    %v149 = vpop.permute.xlu0 %148
    %v150 = vadd.s32 %v126, %v135
    %v151 = vadd.s32 %v127, %v137
    %v152 = vadd.s32 %v128, %v139
    %v153 = vadd.s32 %v129, %v141
    %v154 = vadd.s32 %v130, %v143
    %v155 = vadd.s32 %v131, %v145
    %v156 = vadd.s32 %v132, %v147
    %v157 = vadd.s32 %v133, %v149
    %v158 = vstv 0
    %v159 = vsub.s32 %v150, %v158
    %v160 = vsub.s32 %v151, %v158
    %v161 = vsub.s32 %v152, %v158
    %v162 = vsub.s32 %v153, %v158
    %v163 = vsub.s32 %v154, %v158
    %v164 = vsub.s32 %v155, %v158
    %v165 = vsub.s32 %v156, %v158
    %v166 = vsub.s32 %v157, %v158
    %167 = vset.pattern.permute.xlu0 3
    %168 = vperm.xlu0 %167, %v159
    %v169 = vpop.permute.xlu0 %168
    %170 = vset.pattern.permute.xlu0 3
    %171 = vperm.xlu0 %170, %v160
    %v172 = vpop.permute.xlu0 %171
    %173 = vset.pattern.permute.xlu0 3
    %174 = vperm.xlu0 %173, %v161
    %v175 = vpop.permute.xlu0 %174
    %176 = vset.pattern.permute.xlu0 3
    %177 = vperm.xlu0 %176, %v162
    %v178 = vpop.permute.xlu0 %177
    %179 = vset.pattern.permute.xlu0 3
    %180 = vperm.xlu0 %179, %v163
    %v181 = vpop.permute.xlu0 %180
    %182 = vset.pattern.permute.xlu0 3
    %183 = vperm.xlu0 %182, %v164
    %v184 = vpop.permute.xlu0 %183
    %185 = vset.pattern.permute.xlu0 3
    %186 = vperm.xlu0 %185, %v165
    %v187 = vpop.permute.xlu0 %186
    %188 = vset.pattern.permute.xlu0 3
    %189 = vperm.xlu0 %188, %v166
    %v190 = vpop.permute.xlu0 %189
    %vm191 = vcmp.eq.s32.totalorder %v27, %v169
    %vm192 = vcmp.eq.s32.totalorder %v28, %v169
    %vm193 = vcmp.eq.s32.totalorder %v27, %v172
    %vm194 = vcmp.eq.s32.totalorder %v28, %v172
    %vm195 = vcmp.eq.s32.totalorder %v27, %v175
    %vm196 = vcmp.eq.s32.totalorder %v28, %v175
    %vm197 = vcmp.eq.s32.totalorder %v27, %v178
    %vm198 = vcmp.eq.s32.totalorder %v28, %v178
    %vm199 = vcmp.eq.s32.totalorder %v27, %v181
    %vm200 = vcmp.eq.s32.totalorder %v28, %v181
    %vm201 = vcmp.eq.s32.totalorder %v27, %v184
    %vm202 = vcmp.eq.s32.totalorder %v28, %v184
    %vm203 = vcmp.eq.s32.totalorder %v27, %v187
    %vm204 = vcmp.eq.s32.totalorder %v28, %v187
    %vm205 = vcmp.eq.s32.totalorder %v27, %v190
    %vm206 = vcmp.eq.s32.totalorder %v28, %v190
    %v207 = vsel %vm191, 1, 0
    %v208 = vsel %vm192, 1, 0
    %v209 = vsel %vm193, 1, 0
    %v210 = vsel %vm194, 1, 0
    %v211 = vsel %vm195, 1, 0
    %v212 = vsel %vm196, 1, 0
    %v213 = vsel %vm197, 1, 0
    %v214 = vsel %vm198, 1, 0
    %v215 = vsel %vm199, 1, 0
    %v216 = vsel %vm200, 1, 0
    %v217 = vsel %vm201, 1, 0
    %v218 = vsel %vm202, 1, 0
    %v219 = vsel %vm203, 1, 0
    %v220 = vsel %vm204, 1, 0
    %v221 = vsel %vm205, 1, 0
    %v222 = vsel %vm206, 1, 0
    %v223 = vcvt.s32.f32 %v207
    %v224 = vcvt.s32.f32 %v208
    %v225 = vcvt.s32.f32 %v209
    %v226 = vcvt.s32.f32 %v210
    %v227 = vcvt.s32.f32 %v211
    %v228 = vcvt.s32.f32 %v212
    %v229 = vcvt.s32.f32 %v213
    %v230 = vcvt.s32.f32 %v214
    %v231 = vcvt.s32.f32 %v215
    %v232 = vcvt.s32.f32 %v216
    %v233 = vcvt.s32.f32 %v217
    %v234 = vcvt.s32.f32 %v218
    %v235 = vcvt.s32.f32 %v219
    %v236 = vcvt.s32.f32 %v220
    %v237 = vcvt.s32.f32 %v221
    %v238 = vcvt.s32.f32 %v222
    %v239 = vadd.f32 %v223, %v225
    %v240 = vadd.f32 %v239, %v227
    %v241 = vadd.f32 %v240, %v229
    %v242 = vadd.f32 %v241, %v231
    %v243 = vadd.f32 %v242, %v233
    %v244 = vadd.f32 %v243, %v235
    %v245 = vadd.f32 %v244, %v237
    %v246 = vrot.slane %v245, 4
    %v247 = vadd.f32 %v245, %v246
    %v248 = vrot.slane %v247, 2
    %v249 = vadd.f32 %v247, %v248
    %v250 = vrot.slane %v249, 1
    %v251 = vadd.f32 %v249, %v250
    %v252 = vadd.f32 %v224, %v226
    %v253 = vadd.f32 %v252, %v228
    %v254 = vadd.f32 %v253, %v230
    %v255 = vadd.f32 %v254, %v232
    %v256 = vadd.f32 %v255, %v234
    %v257 = vadd.f32 %v256, %v236
    %v258 = vadd.f32 %v257, %v238
    %v259 = vrot.slane %v258, 4
    %v260 = vadd.f32 %v258, %v259
    %v261 = vrot.slane %v260, 2
    %v262 = vadd.f32 %v260, %v261
    %v263 = vrot.slane %v262, 1
    %v264 = vadd.f32 %v262, %v263
    %vm265 = vcmask 523264
    %v267 = vsel %vm265, %v37, 0
    %v269 = vand.u32 %v224, 4294901760
    %270 = vmatprep.subr.mxu0 %v269
    %v271 = vand.u32 %v223, 4294901760
    %272 = vmatpush1.msra.mxu0 %v271
    %v273 = vand.u32 %v226, 4294901760
    %274 = vmatprep.subr.mxu0 %v273
    %v275 = vand.u32 %v225, 4294901760
    %276 = vmatpush1.msra.mxu0 %v275
    %v277 = vand.u32 %v228, 4294901760
    %278 = vmatprep.subr.mxu0 %v277
    %v279 = vand.u32 %v227, 4294901760
    %280 = vmatpush1.msra.mxu0 %v279
    %v281 = vand.u32 %v230, 4294901760
    %282 = vmatprep.subr.mxu0 %v281
    %v283 = vand.u32 %v229, 4294901760
    %284 = vmatpush1.msra.mxu0 %v283
    %v285 = vand.u32 %v232, 4294901760
    %286 = vmatprep.subr.mxu0 %v285
    %v287 = vand.u32 %v231, 4294901760
    %288 = vmatpush1.msra.mxu0 %v287
    %v289 = vand.u32 %v234, 4294901760
    %290 = vmatprep.subr.mxu0 %v289
    %v291 = vand.u32 %v233, 4294901760
    %292 = vmatpush1.msra.mxu0 %v291
    %v293 = vand.u32 %v236, 4294901760
    %294 = vmatprep.subr.mxu0 %v293
    %v295 = vand.u32 %v235, 4294901760
    %296 = vmatpush1.msra.mxu0 %v295
    %v297 = vand.u32 %v238, 4294901760
    %298 = vmatprep.subr.mxu0 %v297
    %v299 = vand.u32 %v237, 4294901760
    %300 = vmatpush1.msra.mxu0 %v299
    %301 = vmatprep.subr.mxu0 0.0
    %302 = vmatpush1.msra.mxu0 0.0
    %303 = vmatprep.subr.mxu0 0.0
    %304 = vmatpush1.msra.mxu0 0.0
    %305 = vmatprep.subr.mxu0 0.0
    %306 = vmatpush1.msra.mxu0 0.0
    %307 = vmatprep.subr.mxu0 0.0
    %308 = vmatpush1.msra.mxu0 0.0
    %309 = vmatprep.subr.mxu0 0.0
    %310 = vmatpush1.msra.mxu0 0.0
    %311 = vmatprep.subr.mxu0 0.0
    %312 = vmatpush1.msra.mxu0 0.0
    %313 = vmatprep.subr.mxu0 0.0
    %314 = vmatpush1.msra.mxu0 0.0
    %315 = vmatprep.subr.mxu0 0.0
    %316 = vmatpush1.msra.mxu0 0.0
    %317 = vmatprep.subr.mxu0 0.0
    %318 = vmatpush1.msra.mxu0 0.0
    %319 = vmatprep.subr.mxu0 0.0
    %320 = vmatpush1.msra.mxu0 0.0
    %321 = vmatprep.subr.mxu0 0.0
    %322 = vmatpush1.msra.mxu0 0.0
    %323 = vmatprep.subr.mxu0 0.0
    %324 = vmatpush1.msra.mxu0 0.0
    %325 = vmatprep.subr.mxu0 0.0
    %326 = vmatpush1.msra.mxu0 0.0
    %327 = vmatprep.subr.mxu0 0.0
    %328 = vmatpush1.msra.mxu0 0.0
    %329 = vmatprep.subr.mxu0 0.0
    %330 = vmatpush1.msra.mxu0 0.0
    %331 = vmatprep.subr.mxu0 0.0
    %332 = vmatpush1.msra.mxu0 0.0
    %333 = vmatprep.subr.mxu0 0.0
    %334 = vmatpush1.msra.mxu0 0.0
    %335 = vmatprep.subr.mxu0 0.0
    %336 = vmatpush1.msra.mxu0 0.0
    %337 = vmatprep.subr.mxu0 0.0
    %338 = vmatpush1.msra.mxu0 0.0
    %339 = vmatprep.subr.mxu0 0.0
    %340 = vmatpush1.msra.mxu0 0.0
    %341 = vmatprep.subr.mxu0 0.0
    %342 = vmatpush1.msra.mxu0 0.0
    %343 = vmatprep.subr.mxu0 0.0
    %344 = vmatpush1.msra.mxu0 0.0
    %345 = vmatprep.subr.mxu0 0.0
    %346 = vmatpush1.msra.mxu0 0.0
    %347 = vmatprep.subr.mxu0 0.0
    %348 = vmatpush1.msra.mxu0 0.0
    %349 = vmatprep.mubr.f32.mxu0 0.0
    %v350 = vand.u32 %v267, 4294901760
    %v351 = vsub.f32 %v267, %v350
    %v352 = vand.u32 %v351, 4294901760
    %v353 = vsub.f32 %v351, %v352
    %v354 = vand.u32 %v353, 4294901760
    %355 = vmatmul.mubr.f32.gmra.mrb[0].mxu0 %v354
    %v356 = vpop.f32.mrb[0].mxu0
    %v357 = vadd.f32 0.0, %v356
    %v358 = vpop.f32.mrb[0].mxu0
    %v359 = vadd.f32 0.0, %v358
    %360 = vdwg.mxu0
    %v361 = vand.u32 %v224, 4294901760
    %v362 = vsub.f32 %v224, %v361
    %v363 = vand.u32 %v362, 4294901760
    %v364 = vsub.f32 %v362, %v363
    %v365 = vand.u32 %v364, 4294901760
    %366 = vmatprep.subr.mxu0 %v365
    %v367 = vand.u32 %v223, 4294901760
    %v368 = vsub.f32 %v223, %v367
    %v369 = vand.u32 %v368, 4294901760
    %v370 = vsub.f32 %v368, %v369
    %v371 = vand.u32 %v370, 4294901760
    %372 = vmatpush1.msra.mxu0 %v371
    %v373 = vand.u32 %v226, 4294901760
    %v374 = vsub.f32 %v226, %v373
    %v375 = vand.u32 %v374, 4294901760
    %v376 = vsub.f32 %v374, %v375
    %v377 = vand.u32 %v376, 4294901760
    %378 = vmatprep.subr.mxu0 %v377
    %v379 = vand.u32 %v225, 4294901760
    %v380 = vsub.f32 %v225, %v379
    %v381 = vand.u32 %v380, 4294901760
    %v382 = vsub.f32 %v380, %v381
    %v383 = vand.u32 %v382, 4294901760
    %384 = vmatpush1.msra.mxu0 %v383
    %v385 = vand.u32 %v228, 4294901760
    %v386 = vsub.f32 %v228, %v385
    %v387 = vand.u32 %v386, 4294901760
    %v388 = vsub.f32 %v386, %v387
    %v389 = vand.u32 %v388, 4294901760
    %390 = vmatprep.subr.mxu0 %v389
    %v391 = vand.u32 %v227, 4294901760
    %v392 = vsub.f32 %v227, %v391
    %v393 = vand.u32 %v392, 4294901760
    %v394 = vsub.f32 %v392, %v393
    %v395 = vand.u32 %v394, 4294901760
    %396 = vmatpush1.msra.mxu0 %v395
    %v397 = vand.u32 %v230, 4294901760
    %v398 = vsub.f32 %v230, %v397
    %v399 = vand.u32 %v398, 4294901760
    %v400 = vsub.f32 %v398, %v399
    %v401 = vand.u32 %v400, 4294901760
    %402 = vmatprep.subr.mxu0 %v401
    %v403 = vand.u32 %v229, 4294901760
    %v404 = vsub.f32 %v229, %v403
    %v405 = vand.u32 %v404, 4294901760
    %v406 = vsub.f32 %v404, %v405
    %v407 = vand.u32 %v406, 4294901760
    %408 = vmatpush1.msra.mxu0 %v407
    %v409 = vand.u32 %v232, 4294901760
    %v410 = vsub.f32 %v232, %v409
    %v411 = vand.u32 %v410, 4294901760
    %v412 = vsub.f32 %v410, %v411
    %v413 = vand.u32 %v412, 4294901760
    %414 = vmatprep.subr.mxu0 %v413
    %v415 = vand.u32 %v231, 4294901760
    %v416 = vsub.f32 %v231, %v415
    %v417 = vand.u32 %v416, 4294901760
    %v418 = vsub.f32 %v416, %v417
    %v419 = vand.u32 %v418, 4294901760
    %420 = vmatpush1.msra.mxu0 %v419
    %v421 = vand.u32 %v234, 4294901760
    %v422 = vsub.f32 %v234, %v421
    %v423 = vand.u32 %v422, 4294901760
    %v424 = vsub.f32 %v422, %v423
    %v425 = vand.u32 %v424, 4294901760
    %426 = vmatprep.subr.mxu0 %v425
    %v427 = vand.u32 %v233, 4294901760
    %v428 = vsub.f32 %v233, %v427
    %v429 = vand.u32 %v428, 4294901760
    %v430 = vsub.f32 %v428, %v429
    %v431 = vand.u32 %v430, 4294901760
    %432 = vmatpush1.msra.mxu0 %v431
    %v433 = vand.u32 %v236, 4294901760
    %v434 = vsub.f32 %v236, %v433
    %v435 = vand.u32 %v434, 4294901760
    %v436 = vsub.f32 %v434, %v435
    %v437 = vand.u32 %v436, 4294901760
    %438 = vmatprep.subr.mxu0 %v437
    %v439 = vand.u32 %v235, 4294901760
    %v440 = vsub.f32 %v235, %v439
    %v441 = vand.u32 %v440, 4294901760
    %v442 = vsub.f32 %v440, %v441
    %v443 = vand.u32 %v442, 4294901760
    %444 = vmatpush1.msra.mxu0 %v443
    %v445 = vand.u32 %v238, 4294901760
    %v446 = vsub.f32 %v238, %v445
    %v447 = vand.u32 %v446, 4294901760
    %v448 = vsub.f32 %v446, %v447
    %v449 = vand.u32 %v448, 4294901760
    %450 = vmatprep.subr.mxu0 %v449
    %v451 = vand.u32 %v237, 4294901760
    %v452 = vsub.f32 %v237, %v451
    %v453 = vand.u32 %v452, 4294901760
    %v454 = vsub.f32 %v452, %v453
    %v455 = vand.u32 %v454, 4294901760
    %456 = vmatpush1.msra.mxu0 %v455
    %457 = vmatprep.subr.mxu0 0.0
    %458 = vmatpush1.msra.mxu0 0.0
    %459 = vmatprep.subr.mxu0 0.0
    %460 = vmatpush1.msra.mxu0 0.0
    %461 = vmatprep.subr.mxu0 0.0
    %462 = vmatpush1.msra.mxu0 0.0
    %463 = vmatprep.subr.mxu0 0.0
    %464 = vmatpush1.msra.mxu0 0.0
    %465 = vmatprep.subr.mxu0 0.0
    %466 = vmatpush1.msra.mxu0 0.0
    %467 = vmatprep.subr.mxu0 0.0
    %468 = vmatpush1.msra.mxu0 0.0
    %469 = vmatprep.subr.mxu0 0.0
    %470 = vmatpush1.msra.mxu0 0.0
    %471 = vmatprep.subr.mxu0 0.0
    %472 = vmatpush1.msra.mxu0 0.0
    %473 = vmatprep.subr.mxu0 0.0
    %474 = vmatpush1.msra.mxu0 0.0
    %475 = vmatprep.subr.mxu0 0.0
    %476 = vmatpush1.msra.mxu0 0.0
    %477 = vmatprep.subr.mxu0 0.0
    %478 = vmatpush1.msra.mxu0 0.0
    %479 = vmatprep.subr.mxu0 0.0
    %480 = vmatpush1.msra.mxu0 0.0
    %481 = vmatprep.subr.mxu0 0.0
    %482 = vmatpush1.msra.mxu0 0.0
    %483 = vmatprep.subr.mxu0 0.0
    %484 = vmatpush1.msra.mxu0 0.0
    %485 = vmatprep.subr.mxu0 0.0
    %486 = vmatpush1.msra.mxu0 0.0
    %487 = vmatprep.subr.mxu0 0.0
    %488 = vmatpush1.msra.mxu0 0.0
    %489 = vmatprep.subr.mxu0 0.0
    %490 = vmatpush1.msra.mxu0 0.0
    %491 = vmatprep.subr.mxu0 0.0
    %492 = vmatpush1.msra.mxu0 0.0
    %493 = vmatprep.subr.mxu0 0.0
    %494 = vmatpush1.msra.mxu0 0.0
    %495 = vmatprep.subr.mxu0 0.0
    %496 = vmatpush1.msra.mxu0 0.0
    %497 = vmatprep.subr.mxu0 0.0
    %498 = vmatpush1.msra.mxu0 0.0
    %499 = vmatprep.subr.mxu0 0.0
    %500 = vmatpush1.msra.mxu0 0.0
    %501 = vmatprep.subr.mxu0 0.0
    %502 = vmatpush1.msra.mxu0 0.0
    %503 = vmatprep.subr.mxu0 0.0
    %504 = vmatpush1.msra.mxu0 0.0
    %505 = vmatprep.mubr.f32.mxu0 0.0
    %v506 = vand.u32 %v267, 4294901760
    %507 = vmatmul.mubr.f32.gmra.mrb[0].mxu0 %v506
    %v508 = vpop.f32.mrb[0].mxu0
    %v509 = vadd.f32 %v357, %v508
    %v510 = vpop.f32.mrb[0].mxu0
    %v511 = vadd.f32 %v359, %v510
    %512 = vdwg.mxu0
    %v513 = vand.u32 %v224, 4294901760
    %v514 = vsub.f32 %v224, %v513
    %515 = vmatprep.subr.mxu0 %v514
    %v516 = vand.u32 %v223, 4294901760
    %v517 = vsub.f32 %v223, %v516
    %518 = vmatpush1.msra.mxu0 %v517
    %v519 = vand.u32 %v226, 4294901760
    %v520 = vsub.f32 %v226, %v519
    %521 = vmatprep.subr.mxu0 %v520
    %v522 = vand.u32 %v225, 4294901760
    %v523 = vsub.f32 %v225, %v522
    %524 = vmatpush1.msra.mxu0 %v523
    %v525 = vand.u32 %v228, 4294901760
    %v526 = vsub.f32 %v228, %v525
    %527 = vmatprep.subr.mxu0 %v526
    %v528 = vand.u32 %v227, 4294901760
    %v529 = vsub.f32 %v227, %v528
    %530 = vmatpush1.msra.mxu0 %v529
    %v531 = vand.u32 %v230, 4294901760
    %v532 = vsub.f32 %v230, %v531
    %533 = vmatprep.subr.mxu0 %v532
    %v534 = vand.u32 %v229, 4294901760
    %v535 = vsub.f32 %v229, %v534
    %536 = vmatpush1.msra.mxu0 %v535
    %v537 = vand.u32 %v232, 4294901760
    %v538 = vsub.f32 %v232, %v537
    %539 = vmatprep.subr.mxu0 %v538
    %v540 = vand.u32 %v231, 4294901760
    %v541 = vsub.f32 %v231, %v540
    %542 = vmatpush1.msra.mxu0 %v541
    %v543 = vand.u32 %v234, 4294901760
    %v544 = vsub.f32 %v234, %v543
    %545 = vmatprep.subr.mxu0 %v544
    %v546 = vand.u32 %v233, 4294901760
    %v547 = vsub.f32 %v233, %v546
    %548 = vmatpush1.msra.mxu0 %v547
    %v549 = vand.u32 %v236, 4294901760
    %v550 = vsub.f32 %v236, %v549
    %551 = vmatprep.subr.mxu0 %v550
    %v552 = vand.u32 %v235, 4294901760
    %v553 = vsub.f32 %v235, %v552
    %554 = vmatpush1.msra.mxu0 %v553
    %v555 = vand.u32 %v238, 4294901760
    %v556 = vsub.f32 %v238, %v555
    %557 = vmatprep.subr.mxu0 %v556
    %v558 = vand.u32 %v237, 4294901760
    %v559 = vsub.f32 %v237, %v558
    %560 = vmatpush1.msra.mxu0 %v559
    %561 = vmatprep.subr.mxu0 0.0
    %562 = vmatpush1.msra.mxu0 0.0
    %563 = vmatprep.subr.mxu0 0.0
    %564 = vmatpush1.msra.mxu0 0.0
    %565 = vmatprep.subr.mxu0 0.0
    %566 = vmatpush1.msra.mxu0 0.0
    %567 = vmatprep.subr.mxu0 0.0
    %568 = vmatpush1.msra.mxu0 0.0
    %569 = vmatprep.subr.mxu0 0.0
    %570 = vmatpush1.msra.mxu0 0.0
    %571 = vmatprep.subr.mxu0 0.0
    %572 = vmatpush1.msra.mxu0 0.0
    %573 = vmatprep.subr.mxu0 0.0
    %574 = vmatpush1.msra.mxu0 0.0
    %575 = vmatprep.subr.mxu0 0.0
    %576 = vmatpush1.msra.mxu0 0.0
    %577 = vmatprep.subr.mxu0 0.0
    %578 = vmatpush1.msra.mxu0 0.0
    %579 = vmatprep.subr.mxu0 0.0
    %580 = vmatpush1.msra.mxu0 0.0
    %581 = vmatprep.subr.mxu0 0.0
    %582 = vmatpush1.msra.mxu0 0.0
    %583 = vmatprep.subr.mxu0 0.0
    %584 = vmatpush1.msra.mxu0 0.0
    %585 = vmatprep.subr.mxu0 0.0
    %586 = vmatpush1.msra.mxu0 0.0
    %587 = vmatprep.subr.mxu0 0.0
    %588 = vmatpush1.msra.mxu0 0.0
    %589 = vmatprep.subr.mxu0 0.0
    %590 = vmatpush1.msra.mxu0 0.0
    %591 = vmatprep.subr.mxu0 0.0
    %592 = vmatpush1.msra.mxu0 0.0
    %593 = vmatprep.subr.mxu0 0.0
    %594 = vmatpush1.msra.mxu0 0.0
    %595 = vmatprep.subr.mxu0 0.0
    %596 = vmatpush1.msra.mxu0 0.0
    %597 = vmatprep.subr.mxu0 0.0
    %598 = vmatpush1.msra.mxu0 0.0
    %599 = vmatprep.subr.mxu0 0.0
    %600 = vmatpush1.msra.mxu0 0.0
    %601 = vmatprep.subr.mxu0 0.0
    %602 = vmatpush1.msra.mxu0 0.0
    %603 = vmatprep.subr.mxu0 0.0
    %604 = vmatpush1.msra.mxu0 0.0
    %605 = vmatprep.subr.mxu0 0.0
    %606 = vmatpush1.msra.mxu0 0.0
    %607 = vmatprep.subr.mxu0 0.0
    %608 = vmatpush1.msra.mxu0 0.0
    %609 = vmatprep.mubr.f32.mxu0 0.0
    %v610 = vand.u32 %v267, 4294901760
    %v611 = vsub.f32 %v267, %v610
    %612 = vmatmul.mubr.f32.gmra.mrb[0].mxu0 %v611
    %v613 = vpop.f32.mrb[0].mxu0
    %v614 = vadd.f32 %v509, %v613
    %v615 = vpop.f32.mrb[0].mxu0
    %v616 = vadd.f32 %v511, %v615
    %617 = vdwg.mxu0
    %v618 = vand.u32 %v224, 4294901760
    %619 = vmatprep.subr.mxu0 %v618
    %v620 = vand.u32 %v223, 4294901760
    %621 = vmatpush1.msra.mxu0 %v620
    %v622 = vand.u32 %v226, 4294901760
    %623 = vmatprep.subr.mxu0 %v622
    %v624 = vand.u32 %v225, 4294901760
    %625 = vmatpush1.msra.mxu0 %v624
    %v626 = vand.u32 %v228, 4294901760
    %627 = vmatprep.subr.mxu0 %v626
    %v628 = vand.u32 %v227, 4294901760
    %629 = vmatpush1.msra.mxu0 %v628
    %v630 = vand.u32 %v230, 4294901760
    %631 = vmatprep.subr.mxu0 %v630
    %v632 = vand.u32 %v229, 4294901760
    %633 = vmatpush1.msra.mxu0 %v632
    %v634 = vand.u32 %v232, 4294901760
    %635 = vmatprep.subr.mxu0 %v634
    %v636 = vand.u32 %v231, 4294901760
    %637 = vmatpush1.msra.mxu0 %v636
    %v638 = vand.u32 %v234, 4294901760
    %639 = vmatprep.subr.mxu0 %v638
    %v640 = vand.u32 %v233, 4294901760
    %641 = vmatpush1.msra.mxu0 %v640
    %v642 = vand.u32 %v236, 4294901760
    %643 = vmatprep.subr.mxu0 %v642
    %v644 = vand.u32 %v235, 4294901760
    %645 = vmatpush1.msra.mxu0 %v644
    %v646 = vand.u32 %v238, 4294901760
    %647 = vmatprep.subr.mxu0 %v646
    %v648 = vand.u32 %v237, 4294901760
    %649 = vmatpush1.msra.mxu0 %v648
    %650 = vmatprep.subr.mxu0 0.0
    %651 = vmatpush1.msra.mxu0 0.0
    %652 = vmatprep.subr.mxu0 0.0
    %653 = vmatpush1.msra.mxu0 0.0
    %654 = vmatprep.subr.mxu0 0.0
    %655 = vmatpush1.msra.mxu0 0.0
    %656 = vmatprep.subr.mxu0 0.0
    %657 = vmatpush1.msra.mxu0 0.0
    %658 = vmatprep.subr.mxu0 0.0
    %659 = vmatpush1.msra.mxu0 0.0
    %660 = vmatprep.subr.mxu0 0.0
    %661 = vmatpush1.msra.mxu0 0.0
    %662 = vmatprep.subr.mxu0 0.0
    %663 = vmatpush1.msra.mxu0 0.0
    %664 = vmatprep.subr.mxu0 0.0
    %665 = vmatpush1.msra.mxu0 0.0
    %666 = vmatprep.subr.mxu0 0.0
    %667 = vmatpush1.msra.mxu0 0.0
    %668 = vmatprep.subr.mxu0 0.0
    %669 = vmatpush1.msra.mxu0 0.0
    %670 = vmatprep.subr.mxu0 0.0
    %671 = vmatpush1.msra.mxu0 0.0
    %672 = vmatprep.subr.mxu0 0.0
    %673 = vmatpush1.msra.mxu0 0.0
    %674 = vmatprep.subr.mxu0 0.0
    %675 = vmatpush1.msra.mxu0 0.0
    %676 = vmatprep.subr.mxu0 0.0
    %677 = vmatpush1.msra.mxu0 0.0
    %678 = vmatprep.subr.mxu0 0.0
    %679 = vmatpush1.msra.mxu0 0.0
    %680 = vmatprep.subr.mxu0 0.0
    %681 = vmatpush1.msra.mxu0 0.0
    %682 = vmatprep.subr.mxu0 0.0
    %683 = vmatpush1.msra.mxu0 0.0
    %684 = vmatprep.subr.mxu0 0.0
    %685 = vmatpush1.msra.mxu0 0.0
    %686 = vmatprep.subr.mxu0 0.0
    %687 = vmatpush1.msra.mxu0 0.0
    %688 = vmatprep.subr.mxu0 0.0
    %689 = vmatpush1.msra.mxu0 0.0
    %690 = vmatprep.subr.mxu0 0.0
    %691 = vmatpush1.msra.mxu0 0.0
    %692 = vmatprep.subr.mxu0 0.0
    %693 = vmatpush1.msra.mxu0 0.0
    %694 = vmatprep.subr.mxu0 0.0
    %695 = vmatpush1.msra.mxu0 0.0
    %696 = vmatprep.subr.mxu0 0.0
    %697 = vmatpush1.msra.mxu0 0.0
    %698 = vmatprep.mubr.f32.mxu0 0.0
    %v699 = vand.u32 %v267, 4294901760
    %v700 = vsub.f32 %v267, %v699
    %v701 = vand.u32 %v700, 4294901760
    %702 = vmatmul.mubr.f32.gmra.mrb[0].mxu0 %v701
    %v703 = vpop.f32.mrb[0].mxu0
    %v704 = vadd.f32 %v614, %v703
    %v705 = vpop.f32.mrb[0].mxu0
    %v706 = vadd.f32 %v616, %v705
    %707 = vdwg.mxu0
    %v708 = vand.u32 %v224, 4294901760
    %v709 = vsub.f32 %v224, %v708
    %v710 = vand.u32 %v709, 4294901760
    %711 = vmatprep.subr.mxu0 %v710
    %v712 = vand.u32 %v223, 4294901760
    %v713 = vsub.f32 %v223, %v712
    %v714 = vand.u32 %v713, 4294901760
    %715 = vmatpush1.msra.mxu0 %v714
    %v716 = vand.u32 %v226, 4294901760
    %v717 = vsub.f32 %v226, %v716
    %v718 = vand.u32 %v717, 4294901760
    %719 = vmatprep.subr.mxu0 %v718
    %v720 = vand.u32 %v225, 4294901760
    %v721 = vsub.f32 %v225, %v720
    %v722 = vand.u32 %v721, 4294901760
    %723 = vmatpush1.msra.mxu0 %v722
    %v724 = vand.u32 %v228, 4294901760
    %v725 = vsub.f32 %v228, %v724
    %v726 = vand.u32 %v725, 4294901760
    %727 = vmatprep.subr.mxu0 %v726
    %v728 = vand.u32 %v227, 4294901760
    %v729 = vsub.f32 %v227, %v728
    %v730 = vand.u32 %v729, 4294901760
    %731 = vmatpush1.msra.mxu0 %v730
    %v732 = vand.u32 %v230, 4294901760
    %v733 = vsub.f32 %v230, %v732
    %v734 = vand.u32 %v733, 4294901760
    %735 = vmatprep.subr.mxu0 %v734
    %v736 = vand.u32 %v229, 4294901760
    %v737 = vsub.f32 %v229, %v736
    %v738 = vand.u32 %v737, 4294901760
    %739 = vmatpush1.msra.mxu0 %v738
    %v740 = vand.u32 %v232, 4294901760
    %v741 = vsub.f32 %v232, %v740
    %v742 = vand.u32 %v741, 4294901760
    %743 = vmatprep.subr.mxu0 %v742
    %v744 = vand.u32 %v231, 4294901760
    %v745 = vsub.f32 %v231, %v744
    %v746 = vand.u32 %v745, 4294901760
    %747 = vmatpush1.msra.mxu0 %v746
    %v748 = vand.u32 %v234, 4294901760
    %v749 = vsub.f32 %v234, %v748
    %v750 = vand.u32 %v749, 4294901760
    %751 = vmatprep.subr.mxu0 %v750
    %v752 = vand.u32 %v233, 4294901760
    %v753 = vsub.f32 %v233, %v752
    %v754 = vand.u32 %v753, 4294901760
    %755 = vmatpush1.msra.mxu0 %v754
    %v756 = vand.u32 %v236, 4294901760
    %v757 = vsub.f32 %v236, %v756
    %v758 = vand.u32 %v757, 4294901760
    %759 = vmatprep.subr.mxu0 %v758
    %v760 = vand.u32 %v235, 4294901760
    %v761 = vsub.f32 %v235, %v760
    %v762 = vand.u32 %v761, 4294901760
    %763 = vmatpush1.msra.mxu0 %v762
    %v764 = vand.u32 %v238, 4294901760
    %v765 = vsub.f32 %v238, %v764
    %v766 = vand.u32 %v765, 4294901760
    %767 = vmatprep.subr.mxu0 %v766
    %v768 = vand.u32 %v237, 4294901760
    %v769 = vsub.f32 %v237, %v768
    %v770 = vand.u32 %v769, 4294901760
    %771 = vmatpush1.msra.mxu0 %v770
    %772 = vmatprep.subr.mxu0 0.0
    %773 = vmatpush1.msra.mxu0 0.0
    %774 = vmatprep.subr.mxu0 0.0
    %775 = vmatpush1.msra.mxu0 0.0
    %776 = vmatprep.subr.mxu0 0.0
    %777 = vmatpush1.msra.mxu0 0.0
    %778 = vmatprep.subr.mxu0 0.0
    %779 = vmatpush1.msra.mxu0 0.0
    %780 = vmatprep.subr.mxu0 0.0
    %781 = vmatpush1.msra.mxu0 0.0
    %782 = vmatprep.subr.mxu0 0.0
    %783 = vmatpush1.msra.mxu0 0.0
    %784 = vmatprep.subr.mxu0 0.0
    %785 = vmatpush1.msra.mxu0 0.0
    %786 = vmatprep.subr.mxu0 0.0
    %787 = vmatpush1.msra.mxu0 0.0
    %788 = vmatprep.subr.mxu0 0.0
    %789 = vmatpush1.msra.mxu0 0.0
    %790 = vmatprep.subr.mxu0 0.0
    %791 = vmatpush1.msra.mxu0 0.0
    %792 = vmatprep.subr.mxu0 0.0
    %793 = vmatpush1.msra.mxu0 0.0
    %794 = vmatprep.subr.mxu0 0.0
    %795 = vmatpush1.msra.mxu0 0.0
    %796 = vmatprep.subr.mxu0 0.0
    %797 = vmatpush1.msra.mxu0 0.0
    %798 = vmatprep.subr.mxu0 0.0
    %799 = vmatpush1.msra.mxu0 0.0
    %800 = vmatprep.subr.mxu0 0.0
    %801 = vmatpush1.msra.mxu0 0.0
    %802 = vmatprep.subr.mxu0 0.0
    %803 = vmatpush1.msra.mxu0 0.0
    %804 = vmatprep.subr.mxu0 0.0
    %805 = vmatpush1.msra.mxu0 0.0
    %806 = vmatprep.subr.mxu0 0.0
    %807 = vmatpush1.msra.mxu0 0.0
    %808 = vmatprep.subr.mxu0 0.0
    %809 = vmatpush1.msra.mxu0 0.0
    %810 = vmatprep.subr.mxu0 0.0
    %811 = vmatpush1.msra.mxu0 0.0
    %812 = vmatprep.subr.mxu0 0.0
    %813 = vmatpush1.msra.mxu0 0.0
    %814 = vmatprep.subr.mxu0 0.0
    %815 = vmatpush1.msra.mxu0 0.0
    %816 = vmatprep.subr.mxu0 0.0
    %817 = vmatpush1.msra.mxu0 0.0
    %818 = vmatprep.subr.mxu0 0.0
    %819 = vmatpush1.msra.mxu0 0.0
    %820 = vmatprep.mubr.f32.mxu0 0.0
    %v821 = vand.u32 %v267, 4294901760
    %822 = vmatmul.mubr.f32.gmra.mrb[0].mxu0 %v821
    %v823 = vpop.f32.mrb[0].mxu0
    %v824 = vadd.f32 %v704, %v823
    %v825 = vpop.f32.mrb[0].mxu0
    %v826 = vadd.f32 %v706, %v825
    %827 = vdwg.mxu0
    %v828 = vand.u32 %v224, 4294901760
    %829 = vmatprep.subr.mxu0 %v828
    %v830 = vand.u32 %v223, 4294901760
    %831 = vmatpush1.msra.mxu0 %v830
    %v832 = vand.u32 %v226, 4294901760
    %833 = vmatprep.subr.mxu0 %v832
    %v834 = vand.u32 %v225, 4294901760
    %835 = vmatpush1.msra.mxu0 %v834
    %v836 = vand.u32 %v228, 4294901760
    %837 = vmatprep.subr.mxu0 %v836
    %v838 = vand.u32 %v227, 4294901760
    %839 = vmatpush1.msra.mxu0 %v838
    %v840 = vand.u32 %v230, 4294901760
    %841 = vmatprep.subr.mxu0 %v840
    %v842 = vand.u32 %v229, 4294901760
    %843 = vmatpush1.msra.mxu0 %v842
    %v844 = vand.u32 %v232, 4294901760
    %845 = vmatprep.subr.mxu0 %v844
    %v846 = vand.u32 %v231, 4294901760
    %847 = vmatpush1.msra.mxu0 %v846
    %v848 = vand.u32 %v234, 4294901760
    %849 = vmatprep.subr.mxu0 %v848
    %v850 = vand.u32 %v233, 4294901760
    %851 = vmatpush1.msra.mxu0 %v850
    %v852 = vand.u32 %v236, 4294901760
    %853 = vmatprep.subr.mxu0 %v852
    %v854 = vand.u32 %v235, 4294901760
    %855 = vmatpush1.msra.mxu0 %v854
    %v856 = vand.u32 %v238, 4294901760
    %857 = vmatprep.subr.mxu0 %v856
    %v858 = vand.u32 %v237, 4294901760
    %859 = vmatpush1.msra.mxu0 %v858
    %860 = vmatprep.subr.mxu0 0.0
    %861 = vmatpush1.msra.mxu0 0.0
    %862 = vmatprep.subr.mxu0 0.0
    %863 = vmatpush1.msra.mxu0 0.0
    %864 = vmatprep.subr.mxu0 0.0
    %865 = vmatpush1.msra.mxu0 0.0
    %866 = vmatprep.subr.mxu0 0.0
    %867 = vmatpush1.msra.mxu0 0.0
    %868 = vmatprep.subr.mxu0 0.0
    %869 = vmatpush1.msra.mxu0 0.0
    %870 = vmatprep.subr.mxu0 0.0
    %871 = vmatpush1.msra.mxu0 0.0
    %872 = vmatprep.subr.mxu0 0.0
    %873 = vmatpush1.msra.mxu0 0.0
    %874 = vmatprep.subr.mxu0 0.0
    %875 = vmatpush1.msra.mxu0 0.0
    %876 = vmatprep.subr.mxu0 0.0
    %877 = vmatpush1.msra.mxu0 0.0
    %878 = vmatprep.subr.mxu0 0.0
    %879 = vmatpush1.msra.mxu0 0.0
    %880 = vmatprep.subr.mxu0 0.0
    %881 = vmatpush1.msra.mxu0 0.0
    %882 = vmatprep.subr.mxu0 0.0
    %883 = vmatpush1.msra.mxu0 0.0
    %884 = vmatprep.subr.mxu0 0.0
    %885 = vmatpush1.msra.mxu0 0.0
    %886 = vmatprep.subr.mxu0 0.0
    %887 = vmatpush1.msra.mxu0 0.0
    %888 = vmatprep.subr.mxu0 0.0
    %889 = vmatpush1.msra.mxu0 0.0
    %890 = vmatprep.subr.mxu0 0.0
    %891 = vmatpush1.msra.mxu0 0.0
    %892 = vmatprep.subr.mxu0 0.0
    %893 = vmatpush1.msra.mxu0 0.0
    %894 = vmatprep.subr.mxu0 0.0
    %895 = vmatpush1.msra.mxu0 0.0
    %896 = vmatprep.subr.mxu0 0.0
    %897 = vmatpush1.msra.mxu0 0.0
    %898 = vmatprep.subr.mxu0 0.0
    %899 = vmatpush1.msra.mxu0 0.0
    %900 = vmatprep.subr.mxu0 0.0
    %901 = vmatpush1.msra.mxu0 0.0
    %902 = vmatprep.subr.mxu0 0.0
    %903 = vmatpush1.msra.mxu0 0.0
    %904 = vmatprep.subr.mxu0 0.0
    %905 = vmatpush1.msra.mxu0 0.0
    %906 = vmatprep.subr.mxu0 0.0
    %907 = vmatpush1.msra.mxu0 0.0
    %908 = vmatprep.mubr.f32.mxu0 0.0
    %v909 = vand.u32 %v267, 4294901760
    %910 = vmatmul.mubr.f32.gmra.mrb[0].mxu0 %v909
    %v911 = vpop.f32.mrb[0].mxu0
    %v912 = vadd.f32 %v824, %v911
    %v913 = vpop.f32.mrb[0].mxu0
    %v914 = vadd.f32 %v826, %v913
    %915 = vdwg.mxu0
    %v916 = vmax.f32 %v251, 1.0
    %v917 = vmax.f32 %v264, 1.0
    %v918 = vrcp.pop %v916
    %v919 = vmul.f32 %v912, %v918
    %v920 = vrcp.pop %v917
    %v921 = vmul.f32 %v914, %v920
    %923 = vset.pattern.permute.xlu0 0
    %924 = vperm.xlu0 %923, %v22
    %v925 = vpop.permute.xlu0 %924
    %928 = vset.pattern.permute.xlu0 0
    %929 = vperm.xlu0 %928, %v23
    %v930 = vpop.permute.xlu0 %929
    %933 = vset.pattern.permute.xlu0 0
    %934 = vperm.xlu0 %933, %v24
    %v935 = vpop.permute.xlu0 %934
    %938 = vset.pattern.permute.xlu0 0
    %939 = vperm.xlu0 %938, %v25
    %v940 = vpop.permute.xlu0 %939
    %vm942 = vcmask 48128
    %v944 = vsel %vm942, %v18, 0
    %v947 = vsel %vm942, %v19, 0
    %v950 = vsel %vm942, %v20, 0
    %v953 = vsel %vm942, %v21, 0
    %vm955 = vcmask 1045504
    %v957 = vsel %vm955, %v919, 0
    %v960 = vsel %vm955, %v921, 0
    %v962 = vand.u32 %v960, 4294901760
    %963 = vmatprep.subr.mxu0 %v962
    %v964 = vand.u32 %v957, 4294901760
    %965 = vmatpush1.msra.mxu0 %v964
    %966 = vmatprep.subr.mxu0 0.0
    %967 = vmatpush1.msra.mxu0 0.0
    %968 = vmatprep.subr.mxu0 0.0
    %969 = vmatpush1.msra.mxu0 0.0
    %970 = vmatprep.subr.mxu0 0.0
    %971 = vmatpush1.msra.mxu0 0.0
    %972 = vmatprep.subr.mxu0 0.0
    %973 = vmatpush1.msra.mxu0 0.0
    %974 = vmatprep.subr.mxu0 0.0
    %975 = vmatpush1.msra.mxu0 0.0
    %976 = vmatprep.subr.mxu0 0.0
    %977 = vmatpush1.msra.mxu0 0.0
    %978 = vmatprep.subr.mxu0 0.0
    %979 = vmatpush1.msra.mxu0 0.0
    %980 = vmatprep.subr.mxu0 0.0
    %981 = vmatpush1.msra.mxu0 0.0
    %982 = vmatprep.subr.mxu0 0.0
    %983 = vmatpush1.msra.mxu0 0.0
    %984 = vmatprep.subr.mxu0 0.0
    %985 = vmatpush1.msra.mxu0 0.0
    %986 = vmatprep.subr.mxu0 0.0
    %987 = vmatpush1.msra.mxu0 0.0
    %988 = vmatprep.subr.mxu0 0.0
    %989 = vmatpush1.msra.mxu0 0.0
    %990 = vmatprep.subr.mxu0 0.0
    %991 = vmatpush1.msra.mxu0 0.0
    %992 = vmatprep.subr.mxu0 0.0
    %993 = vmatpush1.msra.mxu0 0.0
    %994 = vmatprep.subr.mxu0 0.0
    %995 = vmatpush1.msra.mxu0 0.0
    %996 = vmatprep.subr.mxu0 0.0
    %997 = vmatpush1.msra.mxu0 0.0
    %998 = vmatprep.subr.mxu0 0.0
    %999 = vmatpush1.msra.mxu0 0.0
    %1000 = vmatprep.subr.mxu0 0.0
    %1001 = vmatpush1.msra.mxu0 0.0
    %1002 = vmatprep.subr.mxu0 0.0
    %1003 = vmatpush1.msra.mxu0 0.0
    %1004 = vmatprep.subr.mxu0 0.0
    %1005 = vmatpush1.msra.mxu0 0.0
    %1006 = vmatprep.subr.mxu0 0.0
    %1007 = vmatpush1.msra.mxu0 0.0
    %1008 = vmatprep.subr.mxu0 0.0
    %1009 = vmatpush1.msra.mxu0 0.0
    %1010 = vmatprep.subr.mxu0 0.0
    %1011 = vmatpush1.msra.mxu0 0.0
    %1012 = vmatprep.subr.mxu0 0.0
    %1013 = vmatpush1.msra.mxu0 0.0
    %1014 = vmatprep.subr.mxu0 0.0
    %1015 = vmatpush1.msra.mxu0 0.0
    %1016 = vmatprep.subr.mxu0 0.0
    %1017 = vmatpush1.msra.mxu0 0.0
    %1018 = vmatprep.subr.mxu0 0.0
    %1019 = vmatpush1.msra.mxu0 0.0
    %1020 = vmatprep.subr.mxu0 0.0
    %1021 = vmatpush1.msra.mxu0 0.0
    %1022 = vmatprep.subr.mxu0 0.0
    %1023 = vmatpush1.msra.mxu0 0.0
    %1024 = vmatprep.subr.mxu0 0.0
    %1025 = vmatpush1.msra.mxu0 0.0
    %1026 = vmatprep.subr.mxu0 0.0
    %1027 = vmatpush1.msra.mxu0 0.0
    %1028 = vmatprep.mubr.f32.mxu0 0.0
    %v1029 = vand.u32 %v944, 4294901760
    %v1030 = vsub.f32 %v944, %v1029
    %v1031 = vand.u32 %v1030, 4294901760
    %v1032 = vsub.f32 %v1030, %v1031
    %v1033 = vand.u32 %v1032, 4294901760
    %1034 = vmatmul.mubr.f32.gmra.mrb[0].mxu0 %v1033
    %v1035 = vpop.f32.mrb[0].mxu0
    %v1036 = vadd.f32 %v925, %v1035
    %v1037 = vpop.f32.mrb[0].mxu0
    %v1038 = vadd.f32 %v925, %v1037
    %1039 = vmatprep.mubr.f32.mxu0 0.0
    %v1040 = vand.u32 %v947, 4294901760
    %v1041 = vsub.f32 %v947, %v1040
    %v1042 = vand.u32 %v1041, 4294901760
    %v1043 = vsub.f32 %v1041, %v1042
    %v1044 = vand.u32 %v1043, 4294901760
    %1045 = vmatmul.mubr.f32.gmra.mrb[0].mxu0 %v1044
    %v1046 = vpop.f32.mrb[0].mxu0
    %v1047 = vadd.f32 %v930, %v1046
    %v1048 = vpop.f32.mrb[0].mxu0
    %v1049 = vadd.f32 %v930, %v1048
    %1050 = vmatprep.mubr.f32.mxu0 0.0
    %v1051 = vand.u32 %v950, 4294901760
    %v1052 = vsub.f32 %v950, %v1051
    %v1053 = vand.u32 %v1052, 4294901760
    %v1054 = vsub.f32 %v1052, %v1053
    %v1055 = vand.u32 %v1054, 4294901760
    %1056 = vmatmul.mubr.f32.gmra.mrb[0].mxu0 %v1055
    %v1057 = vpop.f32.mrb[0].mxu0
    %v1058 = vadd.f32 %v935, %v1057
    %v1059 = vpop.f32.mrb[0].mxu0
    %v1060 = vadd.f32 %v935, %v1059
    %1061 = vmatprep.mubr.f32.mxu0 0.0
    %v1062 = vand.u32 %v953, 4294901760
    %v1063 = vsub.f32 %v953, %v1062
    %v1064 = vand.u32 %v1063, 4294901760
    %v1065 = vsub.f32 %v1063, %v1064
    %v1066 = vand.u32 %v1065, 4294901760
    %1067 = vmatmul.mubr.f32.gmra.mrb[0].mxu0 %v1066
    %v1068 = vpop.f32.mrb[0].mxu0
    %v1069 = vadd.f32 %v940, %v1068
    %v1070 = vpop.f32.mrb[0].mxu0
    %v1071 = vadd.f32 %v940, %v1070
    %1072 = vdwg.mxu0
    %v1073 = vand.u32 %v960, 4294901760
    %v1074 = vsub.f32 %v960, %v1073
    %v1075 = vand.u32 %v1074, 4294901760
    %v1076 = vsub.f32 %v1074, %v1075
    %v1077 = vand.u32 %v1076, 4294901760
    %1078 = vmatprep.subr.mxu0 %v1077
    %v1079 = vand.u32 %v957, 4294901760
    %v1080 = vsub.f32 %v957, %v1079
    %v1081 = vand.u32 %v1080, 4294901760
    %v1082 = vsub.f32 %v1080, %v1081
    %v1083 = vand.u32 %v1082, 4294901760
    %1084 = vmatpush1.msra.mxu0 %v1083
    %1085 = vmatprep.subr.mxu0 0.0
    %1086 = vmatpush1.msra.mxu0 0.0
    %1087 = vmatprep.subr.mxu0 0.0
    %1088 = vmatpush1.msra.mxu0 0.0
    %1089 = vmatprep.subr.mxu0 0.0
    %1090 = vmatpush1.msra.mxu0 0.0
    %1091 = vmatprep.subr.mxu0 0.0
    %1092 = vmatpush1.msra.mxu0 0.0
    %1093 = vmatprep.subr.mxu0 0.0
    %1094 = vmatpush1.msra.mxu0 0.0
    %1095 = vmatprep.subr.mxu0 0.0
    %1096 = vmatpush1.msra.mxu0 0.0
    %1097 = vmatprep.subr.mxu0 0.0
    %1098 = vmatpush1.msra.mxu0 0.0
    %1099 = vmatprep.subr.mxu0 0.0
    %1100 = vmatpush1.msra.mxu0 0.0
    %1101 = vmatprep.subr.mxu0 0.0
    %1102 = vmatpush1.msra.mxu0 0.0
    %1103 = vmatprep.subr.mxu0 0.0
    %1104 = vmatpush1.msra.mxu0 0.0
    %1105 = vmatprep.subr.mxu0 0.0
    %1106 = vmatpush1.msra.mxu0 0.0
    %1107 = vmatprep.subr.mxu0 0.0
    %1108 = vmatpush1.msra.mxu0 0.0
    %1109 = vmatprep.subr.mxu0 0.0
    %1110 = vmatpush1.msra.mxu0 0.0
    %1111 = vmatprep.subr.mxu0 0.0
    %1112 = vmatpush1.msra.mxu0 0.0
    %1113 = vmatprep.subr.mxu0 0.0
    %1114 = vmatpush1.msra.mxu0 0.0
    %1115 = vmatprep.subr.mxu0 0.0
    %1116 = vmatpush1.msra.mxu0 0.0
    %1117 = vmatprep.subr.mxu0 0.0
    %1118 = vmatpush1.msra.mxu0 0.0
    %1119 = vmatprep.subr.mxu0 0.0
    %1120 = vmatpush1.msra.mxu0 0.0
    %1121 = vmatprep.subr.mxu0 0.0
    %1122 = vmatpush1.msra.mxu0 0.0
    %1123 = vmatprep.subr.mxu0 0.0
    %1124 = vmatpush1.msra.mxu0 0.0
    %1125 = vmatprep.subr.mxu0 0.0
    %1126 = vmatpush1.msra.mxu0 0.0
    %1127 = vmatprep.subr.mxu0 0.0
    %1128 = vmatpush1.msra.mxu0 0.0
    %1129 = vmatprep.subr.mxu0 0.0
    %1130 = vmatpush1.msra.mxu0 0.0
    %1131 = vmatprep.subr.mxu0 0.0
    %1132 = vmatpush1.msra.mxu0 0.0
    %1133 = vmatprep.subr.mxu0 0.0
    %1134 = vmatpush1.msra.mxu0 0.0
    %1135 = vmatprep.subr.mxu0 0.0
    %1136 = vmatpush1.msra.mxu0 0.0
    %1137 = vmatprep.subr.mxu0 0.0
    %1138 = vmatpush1.msra.mxu0 0.0
    %1139 = vmatprep.subr.mxu0 0.0
    %1140 = vmatpush1.msra.mxu0 0.0
    %1141 = vmatprep.subr.mxu0 0.0
    %1142 = vmatpush1.msra.mxu0 0.0
    %1143 = vmatprep.subr.mxu0 0.0
    %1144 = vmatpush1.msra.mxu0 0.0
    %1145 = vmatprep.subr.mxu0 0.0
    %1146 = vmatpush1.msra.mxu0 0.0
    %1147 = vmatprep.mubr.f32.mxu0 0.0
    %v1148 = vand.u32 %v944, 4294901760
    %1149 = vmatmul.mubr.f32.gmra.mrb[0].mxu0 %v1148
    %v1150 = vpop.f32.mrb[0].mxu0
    %v1151 = vadd.f32 %v1036, %v1150
    %v1152 = vpop.f32.mrb[0].mxu0
    %v1153 = vadd.f32 %v1038, %v1152
    %1154 = vmatprep.mubr.f32.mxu0 0.0
    %v1155 = vand.u32 %v947, 4294901760
    %1156 = vmatmul.mubr.f32.gmra.mrb[0].mxu0 %v1155
    %v1157 = vpop.f32.mrb[0].mxu0
    %v1158 = vadd.f32 %v1047, %v1157
    %v1159 = vpop.f32.mrb[0].mxu0
    %v1160 = vadd.f32 %v1049, %v1159
    %1161 = vmatprep.mubr.f32.mxu0 0.0
    %v1162 = vand.u32 %v950, 4294901760
    %1163 = vmatmul.mubr.f32.gmra.mrb[0].mxu0 %v1162
    %v1164 = vpop.f32.mrb[0].mxu0
    %v1165 = vadd.f32 %v1058, %v1164
    %v1166 = vpop.f32.mrb[0].mxu0
    %v1167 = vadd.f32 %v1060, %v1166
    %1168 = vmatprep.mubr.f32.mxu0 0.0
    %v1169 = vand.u32 %v953, 4294901760
    %1170 = vmatmul.mubr.f32.gmra.mrb[0].mxu0 %v1169
    %v1171 = vpop.f32.mrb[0].mxu0
    %v1172 = vadd.f32 %v1069, %v1171
    %v1173 = vpop.f32.mrb[0].mxu0
    %v1174 = vadd.f32 %v1071, %v1173
    %1175 = vdwg.mxu0
    %v1176 = vand.u32 %v960, 4294901760
    %v1177 = vsub.f32 %v960, %v1176
    %1178 = vmatprep.subr.mxu0 %v1177
    %v1179 = vand.u32 %v957, 4294901760
    %v1180 = vsub.f32 %v957, %v1179
    %1181 = vmatpush1.msra.mxu0 %v1180
    %1182 = vmatprep.subr.mxu0 0.0
    %1183 = vmatpush1.msra.mxu0 0.0
    %1184 = vmatprep.subr.mxu0 0.0
    %1185 = vmatpush1.msra.mxu0 0.0
    %1186 = vmatprep.subr.mxu0 0.0
    %1187 = vmatpush1.msra.mxu0 0.0
    %1188 = vmatprep.subr.mxu0 0.0
    %1189 = vmatpush1.msra.mxu0 0.0
    %1190 = vmatprep.subr.mxu0 0.0
    %1191 = vmatpush1.msra.mxu0 0.0
    %1192 = vmatprep.subr.mxu0 0.0
    %1193 = vmatpush1.msra.mxu0 0.0
    %1194 = vmatprep.subr.mxu0 0.0
    %1195 = vmatpush1.msra.mxu0 0.0
    %1196 = vmatprep.subr.mxu0 0.0
    %1197 = vmatpush1.msra.mxu0 0.0
    %1198 = vmatprep.subr.mxu0 0.0
    %1199 = vmatpush1.msra.mxu0 0.0
    %1200 = vmatprep.subr.mxu0 0.0
    %1201 = vmatpush1.msra.mxu0 0.0
    %1202 = vmatprep.subr.mxu0 0.0
    %1203 = vmatpush1.msra.mxu0 0.0
    %1204 = vmatprep.subr.mxu0 0.0
    %1205 = vmatpush1.msra.mxu0 0.0
    %1206 = vmatprep.subr.mxu0 0.0
    %1207 = vmatpush1.msra.mxu0 0.0
    %1208 = vmatprep.subr.mxu0 0.0
    %1209 = vmatpush1.msra.mxu0 0.0
    %1210 = vmatprep.subr.mxu0 0.0
    %1211 = vmatpush1.msra.mxu0 0.0
    %1212 = vmatprep.subr.mxu0 0.0
    %1213 = vmatpush1.msra.mxu0 0.0
    %1214 = vmatprep.subr.mxu0 0.0
    %1215 = vmatpush1.msra.mxu0 0.0
    %1216 = vmatprep.subr.mxu0 0.0
    %1217 = vmatpush1.msra.mxu0 0.0
    %1218 = vmatprep.subr.mxu0 0.0
    %1219 = vmatpush1.msra.mxu0 0.0
    %1220 = vmatprep.subr.mxu0 0.0
    %1221 = vmatpush1.msra.mxu0 0.0
    %1222 = vmatprep.subr.mxu0 0.0
    %1223 = vmatpush1.msra.mxu0 0.0
    %1224 = vmatprep.subr.mxu0 0.0
    %1225 = vmatpush1.msra.mxu0 0.0
    %1226 = vmatprep.subr.mxu0 0.0
    %1227 = vmatpush1.msra.mxu0 0.0
    %1228 = vmatprep.subr.mxu0 0.0
    %1229 = vmatpush1.msra.mxu0 0.0
    %1230 = vmatprep.subr.mxu0 0.0
    %1231 = vmatpush1.msra.mxu0 0.0
    %1232 = vmatprep.subr.mxu0 0.0
    %1233 = vmatpush1.msra.mxu0 0.0
    %1234 = vmatprep.subr.mxu0 0.0
    %1235 = vmatpush1.msra.mxu0 0.0
    %1236 = vmatprep.subr.mxu0 0.0
    %1237 = vmatpush1.msra.mxu0 0.0
    %1238 = vmatprep.subr.mxu0 0.0
    %1239 = vmatpush1.msra.mxu0 0.0
    %1240 = vmatprep.subr.mxu0 0.0
    %1241 = vmatpush1.msra.mxu0 0.0
    %1242 = vmatprep.subr.mxu0 0.0
    %1243 = vmatpush1.msra.mxu0 0.0
    %1244 = vmatprep.mubr.f32.mxu0 0.0
    %v1245 = vand.u32 %v944, 4294901760
    %v1246 = vsub.f32 %v944, %v1245
    %1247 = vmatmul.mubr.f32.gmra.mrb[0].mxu0 %v1246
    %v1248 = vpop.f32.mrb[0].mxu0
    %v1249 = vadd.f32 %v1151, %v1248
    %v1250 = vpop.f32.mrb[0].mxu0
    %v1251 = vadd.f32 %v1153, %v1250
    %1252 = vmatprep.mubr.f32.mxu0 0.0
    %v1253 = vand.u32 %v947, 4294901760
    %v1254 = vsub.f32 %v947, %v1253
    %1255 = vmatmul.mubr.f32.gmra.mrb[0].mxu0 %v1254
    %v1256 = vpop.f32.mrb[0].mxu0
    %v1257 = vadd.f32 %v1158, %v1256
    %v1258 = vpop.f32.mrb[0].mxu0
    %v1259 = vadd.f32 %v1160, %v1258
    %1260 = vmatprep.mubr.f32.mxu0 0.0
    %v1261 = vand.u32 %v950, 4294901760
    %v1262 = vsub.f32 %v950, %v1261
    %1263 = vmatmul.mubr.f32.gmra.mrb[0].mxu0 %v1262
    %v1264 = vpop.f32.mrb[0].mxu0
    %v1265 = vadd.f32 %v1165, %v1264
    %v1266 = vpop.f32.mrb[0].mxu0
    %v1267 = vadd.f32 %v1167, %v1266
    %1268 = vmatprep.mubr.f32.mxu0 0.0
    %v1269 = vand.u32 %v953, 4294901760
    %v1270 = vsub.f32 %v953, %v1269
    %1271 = vmatmul.mubr.f32.gmra.mrb[0].mxu0 %v1270
    %v1272 = vpop.f32.mrb[0].mxu0
    %v1273 = vadd.f32 %v1172, %v1272
    %v1274 = vpop.f32.mrb[0].mxu0
    %v1275 = vadd.f32 %v1174, %v1274
    %1276 = vdwg.mxu0
    %v1277 = vand.u32 %v960, 4294901760
    %1278 = vmatprep.subr.mxu0 %v1277
    %v1279 = vand.u32 %v957, 4294901760
    %1280 = vmatpush1.msra.mxu0 %v1279
    %1281 = vmatprep.subr.mxu0 0.0
    %1282 = vmatpush1.msra.mxu0 0.0
    %1283 = vmatprep.subr.mxu0 0.0
    %1284 = vmatpush1.msra.mxu0 0.0
    %1285 = vmatprep.subr.mxu0 0.0
    %1286 = vmatpush1.msra.mxu0 0.0
    %1287 = vmatprep.subr.mxu0 0.0
    %1288 = vmatpush1.msra.mxu0 0.0
    %1289 = vmatprep.subr.mxu0 0.0
    %1290 = vmatpush1.msra.mxu0 0.0
    %1291 = vmatprep.subr.mxu0 0.0
    %1292 = vmatpush1.msra.mxu0 0.0
    %1293 = vmatprep.subr.mxu0 0.0
    %1294 = vmatpush1.msra.mxu0 0.0
    %1295 = vmatprep.subr.mxu0 0.0
    %1296 = vmatpush1.msra.mxu0 0.0
    %1297 = vmatprep.subr.mxu0 0.0
    %1298 = vmatpush1.msra.mxu0 0.0
    %1299 = vmatprep.subr.mxu0 0.0
    %1300 = vmatpush1.msra.mxu0 0.0
    %1301 = vmatprep.subr.mxu0 0.0
    %1302 = vmatpush1.msra.mxu0 0.0
    %1303 = vmatprep.subr.mxu0 0.0
    %1304 = vmatpush1.msra.mxu0 0.0
    %1305 = vmatprep.subr.mxu0 0.0
    %1306 = vmatpush1.msra.mxu0 0.0
    %1307 = vmatprep.subr.mxu0 0.0
    %1308 = vmatpush1.msra.mxu0 0.0
    %1309 = vmatprep.subr.mxu0 0.0
    %1310 = vmatpush1.msra.mxu0 0.0
    %1311 = vmatprep.subr.mxu0 0.0
    %1312 = vmatpush1.msra.mxu0 0.0
    %1313 = vmatprep.subr.mxu0 0.0
    %1314 = vmatpush1.msra.mxu0 0.0
    %1315 = vmatprep.subr.mxu0 0.0
    %1316 = vmatpush1.msra.mxu0 0.0
    %1317 = vmatprep.subr.mxu0 0.0
    %1318 = vmatpush1.msra.mxu0 0.0
    %1319 = vmatprep.subr.mxu0 0.0
    %1320 = vmatpush1.msra.mxu0 0.0
    %1321 = vmatprep.subr.mxu0 0.0
    %1322 = vmatpush1.msra.mxu0 0.0
    %1323 = vmatprep.subr.mxu0 0.0
    %1324 = vmatpush1.msra.mxu0 0.0
    %1325 = vmatprep.subr.mxu0 0.0
    %1326 = vmatpush1.msra.mxu0 0.0
    %1327 = vmatprep.subr.mxu0 0.0
    %1328 = vmatpush1.msra.mxu0 0.0
    %1329 = vmatprep.subr.mxu0 0.0
    %1330 = vmatpush1.msra.mxu0 0.0
    %1331 = vmatprep.subr.mxu0 0.0
    %1332 = vmatpush1.msra.mxu0 0.0
    %1333 = vmatprep.subr.mxu0 0.0
    %1334 = vmatpush1.msra.mxu0 0.0
    %1335 = vmatprep.subr.mxu0 0.0
    %1336 = vmatpush1.msra.mxu0 0.0
    %1337 = vmatprep.subr.mxu0 0.0
    %1338 = vmatpush1.msra.mxu0 0.0
    %1339 = vmatprep.subr.mxu0 0.0
    %1340 = vmatpush1.msra.mxu0 0.0
    %1341 = vmatprep.subr.mxu0 0.0
    %1342 = vmatpush1.msra.mxu0 0.0
    %1343 = vmatprep.mubr.f32.mxu0 0.0
    %v1344 = vand.u32 %v944, 4294901760
    %v1345 = vsub.f32 %v944, %v1344
    %v1346 = vand.u32 %v1345, 4294901760
    %1347 = vmatmul.mubr.f32.gmra.mrb[0].mxu0 %v1346
    %v1348 = vpop.f32.mrb[0].mxu0
    %v1349 = vadd.f32 %v1249, %v1348
    %v1350 = vpop.f32.mrb[0].mxu0
    %v1351 = vadd.f32 %v1251, %v1350
    %1352 = vmatprep.mubr.f32.mxu0 0.0
    %v1353 = vand.u32 %v947, 4294901760
    %v1354 = vsub.f32 %v947, %v1353
    %v1355 = vand.u32 %v1354, 4294901760
    %1356 = vmatmul.mubr.f32.gmra.mrb[0].mxu0 %v1355
    %v1357 = vpop.f32.mrb[0].mxu0
    %v1358 = vadd.f32 %v1257, %v1357
    %v1359 = vpop.f32.mrb[0].mxu0
    %v1360 = vadd.f32 %v1259, %v1359
    %1361 = vmatprep.mubr.f32.mxu0 0.0
    %v1362 = vand.u32 %v950, 4294901760
    %v1363 = vsub.f32 %v950, %v1362
    %v1364 = vand.u32 %v1363, 4294901760
    %1365 = vmatmul.mubr.f32.gmra.mrb[0].mxu0 %v1364
    %v1366 = vpop.f32.mrb[0].mxu0
    %v1367 = vadd.f32 %v1265, %v1366
    %v1368 = vpop.f32.mrb[0].mxu0
    %v1369 = vadd.f32 %v1267, %v1368
    %1370 = vmatprep.mubr.f32.mxu0 0.0
    %v1371 = vand.u32 %v953, 4294901760
    %v1372 = vsub.f32 %v953, %v1371
    %v1373 = vand.u32 %v1372, 4294901760
    %1374 = vmatmul.mubr.f32.gmra.mrb[0].mxu0 %v1373
    %v1375 = vpop.f32.mrb[0].mxu0
    %v1376 = vadd.f32 %v1273, %v1375
    %v1377 = vpop.f32.mrb[0].mxu0
    %v1378 = vadd.f32 %v1275, %v1377
    %1379 = vdwg.mxu0
    %v1380 = vand.u32 %v960, 4294901760
    %v1381 = vsub.f32 %v960, %v1380
    %v1382 = vand.u32 %v1381, 4294901760
    %1383 = vmatprep.subr.mxu0 %v1382
    %v1384 = vand.u32 %v957, 4294901760
    %v1385 = vsub.f32 %v957, %v1384
    %v1386 = vand.u32 %v1385, 4294901760
    %1387 = vmatpush1.msra.mxu0 %v1386
    %1388 = vmatprep.subr.mxu0 0.0
    %1389 = vmatpush1.msra.mxu0 0.0
    %1390 = vmatprep.subr.mxu0 0.0
    %1391 = vmatpush1.msra.mxu0 0.0
    %1392 = vmatprep.subr.mxu0 0.0
    %1393 = vmatpush1.msra.mxu0 0.0
    %1394 = vmatprep.subr.mxu0 0.0
    %1395 = vmatpush1.msra.mxu0 0.0
    %1396 = vmatprep.subr.mxu0 0.0
    %1397 = vmatpush1.msra.mxu0 0.0
    %1398 = vmatprep.subr.mxu0 0.0
    %1399 = vmatpush1.msra.mxu0 0.0
    %1400 = vmatprep.subr.mxu0 0.0
    %1401 = vmatpush1.msra.mxu0 0.0
    %1402 = vmatprep.subr.mxu0 0.0
    %1403 = vmatpush1.msra.mxu0 0.0
    %1404 = vmatprep.subr.mxu0 0.0
    %1405 = vmatpush1.msra.mxu0 0.0
    %1406 = vmatprep.subr.mxu0 0.0
    %1407 = vmatpush1.msra.mxu0 0.0
    %1408 = vmatprep.subr.mxu0 0.0
    %1409 = vmatpush1.msra.mxu0 0.0
    %1410 = vmatprep.subr.mxu0 0.0
    %1411 = vmatpush1.msra.mxu0 0.0
    %1412 = vmatprep.subr.mxu0 0.0
    %1413 = vmatpush1.msra.mxu0 0.0
    %1414 = vmatprep.subr.mxu0 0.0
    %1415 = vmatpush1.msra.mxu0 0.0
    %1416 = vmatprep.subr.mxu0 0.0
    %1417 = vmatpush1.msra.mxu0 0.0
    %1418 = vmatprep.subr.mxu0 0.0
    %1419 = vmatpush1.msra.mxu0 0.0
    %1420 = vmatprep.subr.mxu0 0.0
    %1421 = vmatpush1.msra.mxu0 0.0
    %1422 = vmatprep.subr.mxu0 0.0
    %1423 = vmatpush1.msra.mxu0 0.0
    %1424 = vmatprep.subr.mxu0 0.0
    %1425 = vmatpush1.msra.mxu0 0.0
    %1426 = vmatprep.subr.mxu0 0.0
    %1427 = vmatpush1.msra.mxu0 0.0
    %1428 = vmatprep.subr.mxu0 0.0
    %1429 = vmatpush1.msra.mxu0 0.0
    %1430 = vmatprep.subr.mxu0 0.0
    %1431 = vmatpush1.msra.mxu0 0.0
    %1432 = vmatprep.subr.mxu0 0.0
    %1433 = vmatpush1.msra.mxu0 0.0
    %1434 = vmatprep.subr.mxu0 0.0
    %1435 = vmatpush1.msra.mxu0 0.0
    %1436 = vmatprep.subr.mxu0 0.0
    %1437 = vmatpush1.msra.mxu0 0.0
    %1438 = vmatprep.subr.mxu0 0.0
    %1439 = vmatpush1.msra.mxu0 0.0
    %1440 = vmatprep.subr.mxu0 0.0
    %1441 = vmatpush1.msra.mxu0 0.0
    %1442 = vmatprep.subr.mxu0 0.0
    %1443 = vmatpush1.msra.mxu0 0.0
    %1444 = vmatprep.subr.mxu0 0.0
    %1445 = vmatpush1.msra.mxu0 0.0
    %1446 = vmatprep.subr.mxu0 0.0
    %1447 = vmatpush1.msra.mxu0 0.0
    %1448 = vmatprep.subr.mxu0 0.0
    %1449 = vmatpush1.msra.mxu0 0.0
    %1450 = vmatprep.mubr.f32.mxu0 0.0
    %v1451 = vand.u32 %v944, 4294901760
    %1452 = vmatmul.mubr.f32.gmra.mrb[0].mxu0 %v1451
    %v1453 = vpop.f32.mrb[0].mxu0
    %v1454 = vadd.f32 %v1349, %v1453
    %v1455 = vpop.f32.mrb[0].mxu0
    %v1456 = vadd.f32 %v1351, %v1455
    %1457 = vmatprep.mubr.f32.mxu0 0.0
    %v1458 = vand.u32 %v947, 4294901760
    %1459 = vmatmul.mubr.f32.gmra.mrb[0].mxu0 %v1458
    %v1460 = vpop.f32.mrb[0].mxu0
    %v1461 = vadd.f32 %v1358, %v1460
    %v1462 = vpop.f32.mrb[0].mxu0
    %v1463 = vadd.f32 %v1360, %v1462
    %1464 = vmatprep.mubr.f32.mxu0 0.0
    %v1465 = vand.u32 %v950, 4294901760
    %1466 = vmatmul.mubr.f32.gmra.mrb[0].mxu0 %v1465
    %v1467 = vpop.f32.mrb[0].mxu0
    %v1468 = vadd.f32 %v1367, %v1467
    %v1469 = vpop.f32.mrb[0].mxu0
    %v1470 = vadd.f32 %v1369, %v1469
    %1471 = vmatprep.mubr.f32.mxu0 0.0
    %v1472 = vand.u32 %v953, 4294901760
    %1473 = vmatmul.mubr.f32.gmra.mrb[0].mxu0 %v1472
    %v1474 = vpop.f32.mrb[0].mxu0
    %v1475 = vadd.f32 %v1376, %v1474
    %v1476 = vpop.f32.mrb[0].mxu0
    %v1477 = vadd.f32 %v1378, %v1476
    %1478 = vdwg.mxu0
    %v1479 = vand.u32 %v960, 4294901760
    %1480 = vmatprep.subr.mxu0 %v1479
    %v1481 = vand.u32 %v957, 4294901760
    %1482 = vmatpush1.msra.mxu0 %v1481
    %1483 = vmatprep.subr.mxu0 0.0
    %1484 = vmatpush1.msra.mxu0 0.0
    %1485 = vmatprep.subr.mxu0 0.0
    %1486 = vmatpush1.msra.mxu0 0.0
    %1487 = vmatprep.subr.mxu0 0.0
    %1488 = vmatpush1.msra.mxu0 0.0
    %1489 = vmatprep.subr.mxu0 0.0
    %1490 = vmatpush1.msra.mxu0 0.0
    %1491 = vmatprep.subr.mxu0 0.0
    %1492 = vmatpush1.msra.mxu0 0.0
    %1493 = vmatprep.subr.mxu0 0.0
    %1494 = vmatpush1.msra.mxu0 0.0
    %1495 = vmatprep.subr.mxu0 0.0
    %1496 = vmatpush1.msra.mxu0 0.0
    %1497 = vmatprep.subr.mxu0 0.0
    %1498 = vmatpush1.msra.mxu0 0.0
    %1499 = vmatprep.subr.mxu0 0.0
    %1500 = vmatpush1.msra.mxu0 0.0
    %1501 = vmatprep.subr.mxu0 0.0
    %1502 = vmatpush1.msra.mxu0 0.0
    %1503 = vmatprep.subr.mxu0 0.0
    %1504 = vmatpush1.msra.mxu0 0.0
    %1505 = vmatprep.subr.mxu0 0.0
    %1506 = vmatpush1.msra.mxu0 0.0
    %1507 = vmatprep.subr.mxu0 0.0
    %1508 = vmatpush1.msra.mxu0 0.0
    %1509 = vmatprep.subr.mxu0 0.0
    %1510 = vmatpush1.msra.mxu0 0.0
    %1511 = vmatprep.subr.mxu0 0.0
    %1512 = vmatpush1.msra.mxu0 0.0
    %1513 = vmatprep.subr.mxu0 0.0
    %1514 = vmatpush1.msra.mxu0 0.0
    %1515 = vmatprep.subr.mxu0 0.0
    %1516 = vmatpush1.msra.mxu0 0.0
    %1517 = vmatprep.subr.mxu0 0.0
    %1518 = vmatpush1.msra.mxu0 0.0
    %1519 = vmatprep.subr.mxu0 0.0
    %1520 = vmatpush1.msra.mxu0 0.0
    %1521 = vmatprep.subr.mxu0 0.0
    %1522 = vmatpush1.msra.mxu0 0.0
    %1523 = vmatprep.subr.mxu0 0.0
    %1524 = vmatpush1.msra.mxu0 0.0
    %1525 = vmatprep.subr.mxu0 0.0
    %1526 = vmatpush1.msra.mxu0 0.0
    %1527 = vmatprep.subr.mxu0 0.0
    %1528 = vmatpush1.msra.mxu0 0.0
    %1529 = vmatprep.subr.mxu0 0.0
    %1530 = vmatpush1.msra.mxu0 0.0
    %1531 = vmatprep.subr.mxu0 0.0
    %1532 = vmatpush1.msra.mxu0 0.0
    %1533 = vmatprep.subr.mxu0 0.0
    %1534 = vmatpush1.msra.mxu0 0.0
    %1535 = vmatprep.subr.mxu0 0.0
    %1536 = vmatpush1.msra.mxu0 0.0
    %1537 = vmatprep.subr.mxu0 0.0
    %1538 = vmatpush1.msra.mxu0 0.0
    %1539 = vmatprep.subr.mxu0 0.0
    %1540 = vmatpush1.msra.mxu0 0.0
    %1541 = vmatprep.subr.mxu0 0.0
    %1542 = vmatpush1.msra.mxu0 0.0
    %1543 = vmatprep.subr.mxu0 0.0
    %1544 = vmatpush1.msra.mxu0 0.0
    %1545 = vmatprep.mubr.f32.mxu0 0.0
    %v1546 = vand.u32 %v944, 4294901760
    %1547 = vmatmul.mubr.f32.gmra.mrb[0].mxu0 %v1546
    %v1548 = vpop.f32.mrb[0].mxu0
    %v1549 = vadd.f32 %v1454, %v1548
    %v1550 = vpop.f32.mrb[0].mxu0
    %v1551 = vadd.f32 %v1456, %v1550
    %1552 = vmatprep.mubr.f32.mxu0 0.0
    %v1553 = vand.u32 %v947, 4294901760
    %1554 = vmatmul.mubr.f32.gmra.mrb[0].mxu0 %v1553
    %v1555 = vpop.f32.mrb[0].mxu0
    %v1556 = vadd.f32 %v1461, %v1555
    %v1557 = vpop.f32.mrb[0].mxu0
    %v1558 = vadd.f32 %v1463, %v1557
    %1559 = vmatprep.mubr.f32.mxu0 0.0
    %v1560 = vand.u32 %v950, 4294901760
    %1561 = vmatmul.mubr.f32.gmra.mrb[0].mxu0 %v1560
    %v1562 = vpop.f32.mrb[0].mxu0
    %v1563 = vadd.f32 %v1468, %v1562
    %v1564 = vpop.f32.mrb[0].mxu0
    %v1565 = vadd.f32 %v1470, %v1564
    %1566 = vmatprep.mubr.f32.mxu0 0.0
    %v1567 = vand.u32 %v953, 4294901760
    %1568 = vmatmul.mubr.f32.gmra.mrb[0].mxu0 %v1567
    %v1569 = vpop.f32.mrb[0].mxu0
    %v1570 = vadd.f32 %v1475, %v1569
    %v1571 = vpop.f32.mrb[0].mxu0
    %v1572 = vadd.f32 %v1477, %v1571
    %1573 = vdwg.mxu0
    %vm1574 = vcmp.gt.f32.partialorder %v251, 0.0
    %vm1575 = vcmp.gt.f32.partialorder %v264, 0.0
    %v1576 = vsel %vm1574, 1, 0
    %v1577 = vsel %vm1575, 1, 0
    %vm1578 = vcmp.eq.s32.totalorder %v1576, 1
    %vm1579 = vcmp.eq.s32.totalorder %v1577, 1
    %v1580 = vsel %vm1578, %v1549, 0.0
    %v1581 = vsel %vm1579, %v1551, 0.0
    %v1582 = vsel %vm1578, %v1556, 0.0
    %v1583 = vsel %vm1579, %v1558, 0.0
    %v1584 = vsel %vm1578, %v1563, 0.0
    %v1585 = vsel %vm1579, %v1565, 0.0
    %v1586 = vsel %vm1578, %v1570, 0.0
    %v1587 = vsel %vm1579, %v1572, 0.0
    %1588 = vst [vmem:[#allocation2] sm:$0xff] %v1580
    %1589 = vst [vmem:[#allocation2 + $0x8] sm:$0xff] %v1581
    %1590 = vst [vmem:[#allocation2 + $0x20] sm:$0xff] %v1582
    %1591 = vst [vmem:[#allocation2 + $0x28] sm:$0xff] %v1583
    %1592 = vst [vmem:[#allocation2 + $0x40] sm:$0xff] %v1584
    %1593 = vst [vmem:[#allocation2 + $0x48] sm:$0xff] %v1585
    %1594 = vst [vmem:[#allocation2 + $0x60] sm:$0xff] %v1586
    %1595 = vst [vmem:[#allocation2 + $0x68] sm:$0xff] %v1587
    %v1596 = vstv 256
    %v1597 = vsub.s32 %v150, %v1596
    %v1598 = vsub.s32 %v151, %v1596
    %v1599 = vsub.s32 %v152, %v1596
    %v1600 = vsub.s32 %v153, %v1596
    %v1601 = vsub.s32 %v154, %v1596
    %v1602 = vsub.s32 %v155, %v1596
    %v1603 = vsub.s32 %v156, %v1596
    %v1604 = vsub.s32 %v157, %v1596
    %1605 = vset.pattern.permute.xlu0 3
    %1606 = vperm.xlu0 %1605, %v1597
    %v1607 = vpop.permute.xlu0 %1606
    %1608 = vset.pattern.permute.xlu0 3
    %1609 = vperm.xlu0 %1608, %v1598
    %v1610 = vpop.permute.xlu0 %1609
    %1611 = vset.pattern.permute.xlu0 3
    %1612 = vperm.xlu0 %1611, %v1599
    %v1613 = vpop.permute.xlu0 %1612
    %1614 = vset.pattern.permute.xlu0 3
    %1615 = vperm.xlu0 %1614, %v1600
    %v1616 = vpop.permute.xlu0 %1615
    %1617 = vset.pattern.permute.xlu0 3
    %1618 = vperm.xlu0 %1617, %v1601
    %v1619 = vpop.permute.xlu0 %1618
    %1620 = vset.pattern.permute.xlu0 3
    %1621 = vperm.xlu0 %1620, %v1602
    %v1622 = vpop.permute.xlu0 %1621
    %1623 = vset.pattern.permute.xlu0 3
    %1624 = vperm.xlu0 %1623, %v1603
    %v1625 = vpop.permute.xlu0 %1624
    %1626 = vset.pattern.permute.xlu0 3
    %1627 = vperm.xlu0 %1626, %v1604
    %v1628 = vpop.permute.xlu0 %1627
    %vm1629 = vcmp.eq.s32.totalorder %v27, %v1607
    %vm1630 = vcmp.eq.s32.totalorder %v28, %v1607
    %vm1631 = vcmp.eq.s32.totalorder %v27, %v1610
    %vm1632 = vcmp.eq.s32.totalorder %v28, %v1610
    %vm1633 = vcmp.eq.s32.totalorder %v27, %v1613
    %vm1634 = vcmp.eq.s32.totalorder %v28, %v1613
    %vm1635 = vcmp.eq.s32.totalorder %v27, %v1616
    %vm1636 = vcmp.eq.s32.totalorder %v28, %v1616
    %vm1637 = vcmp.eq.s32.totalorder %v27, %v1619
    %vm1638 = vcmp.eq.s32.totalorder %v28, %v1619
    %vm1639 = vcmp.eq.s32.totalorder %v27, %v1622
    %vm1640 = vcmp.eq.s32.totalorder %v28, %v1622
    %vm1641 = vcmp.eq.s32.totalorder %v27, %v1625
    %vm1642 = vcmp.eq.s32.totalorder %v28, %v1625
    %vm1643 = vcmp.eq.s32.totalorder %v27, %v1628
    %vm1644 = vcmp.eq.s32.totalorder %v28, %v1628
    %v1645 = vsel %vm1629, 1, 0
    %v1646 = vsel %vm1630, 1, 0
    %v1647 = vsel %vm1631, 1, 0
    %v1648 = vsel %vm1632, 1, 0
    %v1649 = vsel %vm1633, 1, 0
    %v1650 = vsel %vm1634, 1, 0
    %v1651 = vsel %vm1635, 1, 0
    %v1652 = vsel %vm1636, 1, 0
    %v1653 = vsel %vm1637, 1, 0
    %v1654 = vsel %vm1638, 1, 0
    %v1655 = vsel %vm1639, 1, 0
    %v1656 = vsel %vm1640, 1, 0
    %v1657 = vsel %vm1641, 1, 0
    %v1658 = vsel %vm1642, 1, 0
    %v1659 = vsel %vm1643, 1, 0
    %v1660 = vsel %vm1644, 1, 0
    %v1661 = vcvt.s32.f32 %v1645
    %v1662 = vcvt.s32.f32 %v1646
    %v1663 = vcvt.s32.f32 %v1647
    %v1664 = vcvt.s32.f32 %v1648
    %v1665 = vcvt.s32.f32 %v1649
    %v1666 = vcvt.s32.f32 %v1650
    %v1667 = vcvt.s32.f32 %v1651
    %v1668 = vcvt.s32.f32 %v1652
    %v1669 = vcvt.s32.f32 %v1653
    %v1670 = vcvt.s32.f32 %v1654
    %v1671 = vcvt.s32.f32 %v1655
    %v1672 = vcvt.s32.f32 %v1656
    %v1673 = vcvt.s32.f32 %v1657
    %v1674 = vcvt.s32.f32 %v1658
    %v1675 = vcvt.s32.f32 %v1659
    %v1676 = vcvt.s32.f32 %v1660
    %v1677 = vadd.f32 %v1661, %v1663
    %v1678 = vadd.f32 %v1677, %v1665
    %v1679 = vadd.f32 %v1678, %v1667
    %v1680 = vadd.f32 %v1679, %v1669
    %v1681 = vadd.f32 %v1680, %v1671
    %v1682 = vadd.f32 %v1681, %v1673
    %v1683 = vadd.f32 %v1682, %v1675
    %v1684 = vrot.slane %v1683, 4
    %v1685 = vadd.f32 %v1683, %v1684
    %v1686 = vrot.slane %v1685, 2
    %v1687 = vadd.f32 %v1685, %v1686
    %v1688 = vrot.slane %v1687, 1
    %v1689 = vadd.f32 %v1687, %v1688
    %v1690 = vadd.f32 %v1662, %v1664
    %v1691 = vadd.f32 %v1690, %v1666
    %v1692 = vadd.f32 %v1691, %v1668
    %v1693 = vadd.f32 %v1692, %v1670
    %v1694 = vadd.f32 %v1693, %v1672
    %v1695 = vadd.f32 %v1694, %v1674
    %v1696 = vadd.f32 %v1695, %v1676
    %v1697 = vrot.slane %v1696, 4
    %v1698 = vadd.f32 %v1696, %v1697
    %v1699 = vrot.slane %v1698, 2
    %v1700 = vadd.f32 %v1698, %v1699
    %v1701 = vrot.slane %v1700, 1
    %v1702 = vadd.f32 %v1700, %v1701
    %v1703 = vand.u32 %v1662, 4294901760
    %1704 = vmatprep.subr.mxu0 %v1703
    %v1705 = vand.u32 %v1661, 4294901760
    %1706 = vmatpush1.msra.mxu0 %v1705
    %v1707 = vand.u32 %v1664, 4294901760
    %1708 = vmatprep.subr.mxu0 %v1707
    %v1709 = vand.u32 %v1663, 4294901760
    %1710 = vmatpush1.msra.mxu0 %v1709
    %v1711 = vand.u32 %v1666, 4294901760
    %1712 = vmatprep.subr.mxu0 %v1711
    %v1713 = vand.u32 %v1665, 4294901760
    %1714 = vmatpush1.msra.mxu0 %v1713
    %v1715 = vand.u32 %v1668, 4294901760
    %1716 = vmatprep.subr.mxu0 %v1715
    %v1717 = vand.u32 %v1667, 4294901760
    %1718 = vmatpush1.msra.mxu0 %v1717
    %v1719 = vand.u32 %v1670, 4294901760
    %1720 = vmatprep.subr.mxu0 %v1719
    %v1721 = vand.u32 %v1669, 4294901760
    %1722 = vmatpush1.msra.mxu0 %v1721
    %v1723 = vand.u32 %v1672, 4294901760
    %1724 = vmatprep.subr.mxu0 %v1723
    %v1725 = vand.u32 %v1671, 4294901760
    %1726 = vmatpush1.msra.mxu0 %v1725
    %v1727 = vand.u32 %v1674, 4294901760
    %1728 = vmatprep.subr.mxu0 %v1727
    %v1729 = vand.u32 %v1673, 4294901760
    %1730 = vmatpush1.msra.mxu0 %v1729
    %v1731 = vand.u32 %v1676, 4294901760
    %1732 = vmatprep.subr.mxu0 %v1731
    %v1733 = vand.u32 %v1675, 4294901760
    %1734 = vmatpush1.msra.mxu0 %v1733
    %1735 = vmatprep.subr.mxu0 0.0
    %1736 = vmatpush1.msra.mxu0 0.0
    %1737 = vmatprep.subr.mxu0 0.0
    %1738 = vmatpush1.msra.mxu0 0.0
    %1739 = vmatprep.subr.mxu0 0.0
    %1740 = vmatpush1.msra.mxu0 0.0
    %1741 = vmatprep.subr.mxu0 0.0
    %1742 = vmatpush1.msra.mxu0 0.0
    %1743 = vmatprep.subr.mxu0 0.0
    %1744 = vmatpush1.msra.mxu0 0.0
    %1745 = vmatprep.subr.mxu0 0.0
    %1746 = vmatpush1.msra.mxu0 0.0
    %1747 = vmatprep.subr.mxu0 0.0
    %1748 = vmatpush1.msra.mxu0 0.0
    %1749 = vmatprep.subr.mxu0 0.0
    %1750 = vmatpush1.msra.mxu0 0.0
    %1751 = vmatprep.subr.mxu0 0.0
    %1752 = vmatpush1.msra.mxu0 0.0
    %1753 = vmatprep.subr.mxu0 0.0
    %1754 = vmatpush1.msra.mxu0 0.0
    %1755 = vmatprep.subr.mxu0 0.0
    %1756 = vmatpush1.msra.mxu0 0.0
    %1757 = vmatprep.subr.mxu0 0.0
    %1758 = vmatpush1.msra.mxu0 0.0
    %1759 = vmatprep.subr.mxu0 0.0
    %1760 = vmatpush1.msra.mxu0 0.0
    %1761 = vmatprep.subr.mxu0 0.0
    %1762 = vmatpush1.msra.mxu0 0.0
    %1763 = vmatprep.subr.mxu0 0.0
    %1764 = vmatpush1.msra.mxu0 0.0
    %1765 = vmatprep.subr.mxu0 0.0
    %1766 = vmatpush1.msra.mxu0 0.0
    %1767 = vmatprep.subr.mxu0 0.0
    %1768 = vmatpush1.msra.mxu0 0.0
    %1769 = vmatprep.subr.mxu0 0.0
    %1770 = vmatpush1.msra.mxu0 0.0
    %1771 = vmatprep.subr.mxu0 0.0
    %1772 = vmatpush1.msra.mxu0 0.0
    %1773 = vmatprep.subr.mxu0 0.0
    %1774 = vmatpush1.msra.mxu0 0.0
    %1775 = vmatprep.subr.mxu0 0.0
    %1776 = vmatpush1.msra.mxu0 0.0
    %1777 = vmatprep.subr.mxu0 0.0
    %1778 = vmatpush1.msra.mxu0 0.0
    %1779 = vmatprep.subr.mxu0 0.0
    %1780 = vmatpush1.msra.mxu0 0.0
    %1781 = vmatprep.subr.mxu0 0.0
    %1782 = vmatpush1.msra.mxu0 0.0
    %1783 = vmatprep.mubr.f32.mxu0 0.0
    %v1784 = vand.u32 %v267, 4294901760
    %v1785 = vsub.f32 %v267, %v1784
    %v1786 = vand.u32 %v1785, 4294901760
    %v1787 = vsub.f32 %v1785, %v1786
    %v1788 = vand.u32 %v1787, 4294901760
    %1789 = vmatmul.mubr.f32.gmra.mrb[0].mxu0 %v1788
    %v1790 = vpop.f32.mrb[0].mxu0
    %v1791 = vadd.f32 0.0, %v1790
    %v1792 = vpop.f32.mrb[0].mxu0
    %v1793 = vadd.f32 0.0, %v1792
    %1794 = vdwg.mxu0
    %v1795 = vand.u32 %v1662, 4294901760
    %v1796 = vsub.f32 %v1662, %v1795
    %v1797 = vand.u32 %v1796, 4294901760
    %v1798 = vsub.f32 %v1796, %v1797
    %v1799 = vand.u32 %v1798, 4294901760
    %1800 = vmatprep.subr.mxu0 %v1799
    %v1801 = vand.u32 %v1661, 4294901760
    %v1802 = vsub.f32 %v1661, %v1801
    %v1803 = vand.u32 %v1802, 4294901760
    %v1804 = vsub.f32 %v1802, %v1803
    %v1805 = vand.u32 %v1804, 4294901760
    %1806 = vmatpush1.msra.mxu0 %v1805
    %v1807 = vand.u32 %v1664, 4294901760
    %v1808 = vsub.f32 %v1664, %v1807
    %v1809 = vand.u32 %v1808, 4294901760
    %v1810 = vsub.f32 %v1808, %v1809
    %v1811 = vand.u32 %v1810, 4294901760
    %1812 = vmatprep.subr.mxu0 %v1811
    %v1813 = vand.u32 %v1663, 4294901760
    %v1814 = vsub.f32 %v1663, %v1813
    %v1815 = vand.u32 %v1814, 4294901760
    %v1816 = vsub.f32 %v1814, %v1815
    %v1817 = vand.u32 %v1816, 4294901760
    %1818 = vmatpush1.msra.mxu0 %v1817
    %v1819 = vand.u32 %v1666, 4294901760
    %v1820 = vsub.f32 %v1666, %v1819
    %v1821 = vand.u32 %v1820, 4294901760
    %v1822 = vsub.f32 %v1820, %v1821
    %v1823 = vand.u32 %v1822, 4294901760
    %1824 = vmatprep.subr.mxu0 %v1823
    %v1825 = vand.u32 %v1665, 4294901760
    %v1826 = vsub.f32 %v1665, %v1825
    %v1827 = vand.u32 %v1826, 4294901760
    %v1828 = vsub.f32 %v1826, %v1827
    %v1829 = vand.u32 %v1828, 4294901760
    %1830 = vmatpush1.msra.mxu0 %v1829
    %v1831 = vand.u32 %v1668, 4294901760
    %v1832 = vsub.f32 %v1668, %v1831
    %v1833 = vand.u32 %v1832, 4294901760
    %v1834 = vsub.f32 %v1832, %v1833
    %v1835 = vand.u32 %v1834, 4294901760
    %1836 = vmatprep.subr.mxu0 %v1835
    %v1837 = vand.u32 %v1667, 4294901760
    %v1838 = vsub.f32 %v1667, %v1837
    %v1839 = vand.u32 %v1838, 4294901760
    %v1840 = vsub.f32 %v1838, %v1839
    %v1841 = vand.u32 %v1840, 4294901760
    %1842 = vmatpush1.msra.mxu0 %v1841
    %v1843 = vand.u32 %v1670, 4294901760
    %v1844 = vsub.f32 %v1670, %v1843
    %v1845 = vand.u32 %v1844, 4294901760
    %v1846 = vsub.f32 %v1844, %v1845
    %v1847 = vand.u32 %v1846, 4294901760
    %1848 = vmatprep.subr.mxu0 %v1847
    %v1849 = vand.u32 %v1669, 4294901760
    %v1850 = vsub.f32 %v1669, %v1849
    %v1851 = vand.u32 %v1850, 4294901760
    %v1852 = vsub.f32 %v1850, %v1851
    %v1853 = vand.u32 %v1852, 4294901760
    %1854 = vmatpush1.msra.mxu0 %v1853
    %v1855 = vand.u32 %v1672, 4294901760
    %v1856 = vsub.f32 %v1672, %v1855
    %v1857 = vand.u32 %v1856, 4294901760
    %v1858 = vsub.f32 %v1856, %v1857
    %v1859 = vand.u32 %v1858, 4294901760
    %1860 = vmatprep.subr.mxu0 %v1859
    %v1861 = vand.u32 %v1671, 4294901760
    %v1862 = vsub.f32 %v1671, %v1861
    %v1863 = vand.u32 %v1862, 4294901760
    %v1864 = vsub.f32 %v1862, %v1863
    %v1865 = vand.u32 %v1864, 4294901760
    %1866 = vmatpush1.msra.mxu0 %v1865
    %v1867 = vand.u32 %v1674, 4294901760
    %v1868 = vsub.f32 %v1674, %v1867
    %v1869 = vand.u32 %v1868, 4294901760
    %v1870 = vsub.f32 %v1868, %v1869
    %v1871 = vand.u32 %v1870, 4294901760
    %1872 = vmatprep.subr.mxu0 %v1871
    %v1873 = vand.u32 %v1673, 4294901760
    %v1874 = vsub.f32 %v1673, %v1873
    %v1875 = vand.u32 %v1874, 4294901760
    %v1876 = vsub.f32 %v1874, %v1875
    %v1877 = vand.u32 %v1876, 4294901760
    %1878 = vmatpush1.msra.mxu0 %v1877
    %v1879 = vand.u32 %v1676, 4294901760
    %v1880 = vsub.f32 %v1676, %v1879
    %v1881 = vand.u32 %v1880, 4294901760
    %v1882 = vsub.f32 %v1880, %v1881
    %v1883 = vand.u32 %v1882, 4294901760
    %1884 = vmatprep.subr.mxu0 %v1883
    %v1885 = vand.u32 %v1675, 4294901760
    %v1886 = vsub.f32 %v1675, %v1885
    %v1887 = vand.u32 %v1886, 4294901760
    %v1888 = vsub.f32 %v1886, %v1887
    %v1889 = vand.u32 %v1888, 4294901760
    %1890 = vmatpush1.msra.mxu0 %v1889
    %1891 = vmatprep.subr.mxu0 0.0
    %1892 = vmatpush1.msra.mxu0 0.0
    %1893 = vmatprep.subr.mxu0 0.0
    %1894 = vmatpush1.msra.mxu0 0.0
    %1895 = vmatprep.subr.mxu0 0.0
    %1896 = vmatpush1.msra.mxu0 0.0
    %1897 = vmatprep.subr.mxu0 0.0
    %1898 = vmatpush1.msra.mxu0 0.0
    %1899 = vmatprep.subr.mxu0 0.0
    %1900 = vmatpush1.msra.mxu0 0.0
    %1901 = vmatprep.subr.mxu0 0.0
    %1902 = vmatpush1.msra.mxu0 0.0
    %1903 = vmatprep.subr.mxu0 0.0
    %1904 = vmatpush1.msra.mxu0 0.0
    %1905 = vmatprep.subr.mxu0 0.0
    %1906 = vmatpush1.msra.mxu0 0.0
    %1907 = vmatprep.subr.mxu0 0.0
    %1908 = vmatpush1.msra.mxu0 0.0
    %1909 = vmatprep.subr.mxu0 0.0
    %1910 = vmatpush1.msra.mxu0 0.0
    %1911 = vmatprep.subr.mxu0 0.0
    %1912 = vmatpush1.msra.mxu0 0.0
    %1913 = vmatprep.subr.mxu0 0.0
    %1914 = vmatpush1.msra.mxu0 0.0
    %1915 = vmatprep.subr.mxu0 0.0
    %1916 = vmatpush1.msra.mxu0 0.0
    %1917 = vmatprep.subr.mxu0 0.0
    %1918 = vmatpush1.msra.mxu0 0.0
    %1919 = vmatprep.subr.mxu0 0.0
    %1920 = vmatpush1.msra.mxu0 0.0
    %1921 = vmatprep.subr.mxu0 0.0
    %1922 = vmatpush1.msra.mxu0 0.0
    %1923 = vmatprep.subr.mxu0 0.0
    %1924 = vmatpush1.msra.mxu0 0.0
    %1925 = vmatprep.subr.mxu0 0.0
    %1926 = vmatpush1.msra.mxu0 0.0
    %1927 = vmatprep.subr.mxu0 0.0
    %1928 = vmatpush1.msra.mxu0 0.0
    %1929 = vmatprep.subr.mxu0 0.0
    %1930 = vmatpush1.msra.mxu0 0.0
    %1931 = vmatprep.subr.mxu0 0.0
    %1932 = vmatpush1.msra.mxu0 0.0
    %1933 = vmatprep.subr.mxu0 0.0
    %1934 = vmatpush1.msra.mxu0 0.0
    %1935 = vmatprep.subr.mxu0 0.0
    %1936 = vmatpush1.msra.mxu0 0.0
    %1937 = vmatprep.subr.mxu0 0.0
    %1938 = vmatpush1.msra.mxu0 0.0
    %1939 = vmatprep.mubr.f32.mxu0 0.0
    %v1940 = vand.u32 %v267, 4294901760
    %1941 = vmatmul.mubr.f32.gmra.mrb[0].mxu0 %v1940
    %v1942 = vpop.f32.mrb[0].mxu0
    %v1943 = vadd.f32 %v1791, %v1942
    %v1944 = vpop.f32.mrb[0].mxu0
    %v1945 = vadd.f32 %v1793, %v1944
    %1946 = vdwg.mxu0
    %v1947 = vand.u32 %v1662, 4294901760
    %v1948 = vsub.f32 %v1662, %v1947
    %1949 = vmatprep.subr.mxu0 %v1948
    %v1950 = vand.u32 %v1661, 4294901760
    %v1951 = vsub.f32 %v1661, %v1950
    %1952 = vmatpush1.msra.mxu0 %v1951
    %v1953 = vand.u32 %v1664, 4294901760
    %v1954 = vsub.f32 %v1664, %v1953
    %1955 = vmatprep.subr.mxu0 %v1954
    %v1956 = vand.u32 %v1663, 4294901760
    %v1957 = vsub.f32 %v1663, %v1956
    %1958 = vmatpush1.msra.mxu0 %v1957
    %v1959 = vand.u32 %v1666, 4294901760
    %v1960 = vsub.f32 %v1666, %v1959
    %1961 = vmatprep.subr.mxu0 %v1960
    %v1962 = vand.u32 %v1665, 4294901760
    %v1963 = vsub.f32 %v1665, %v1962
    %1964 = vmatpush1.msra.mxu0 %v1963
    %v1965 = vand.u32 %v1668, 4294901760
    %v1966 = vsub.f32 %v1668, %v1965
    %1967 = vmatprep.subr.mxu0 %v1966
    %v1968 = vand.u32 %v1667, 4294901760
    %v1969 = vsub.f32 %v1667, %v1968
    %1970 = vmatpush1.msra.mxu0 %v1969
    %v1971 = vand.u32 %v1670, 4294901760
    %v1972 = vsub.f32 %v1670, %v1971
    %1973 = vmatprep.subr.mxu0 %v1972
    %v1974 = vand.u32 %v1669, 4294901760
    %v1975 = vsub.f32 %v1669, %v1974
    %1976 = vmatpush1.msra.mxu0 %v1975
    %v1977 = vand.u32 %v1672, 4294901760
    %v1978 = vsub.f32 %v1672, %v1977
    %1979 = vmatprep.subr.mxu0 %v1978
    %v1980 = vand.u32 %v1671, 4294901760
    %v1981 = vsub.f32 %v1671, %v1980
    %1982 = vmatpush1.msra.mxu0 %v1981
    %v1983 = vand.u32 %v1674, 4294901760
    %v1984 = vsub.f32 %v1674, %v1983
    %1985 = vmatprep.subr.mxu0 %v1984
    %v1986 = vand.u32 %v1673, 4294901760
    %v1987 = vsub.f32 %v1673, %v1986
    %1988 = vmatpush1.msra.mxu0 %v1987
    %v1989 = vand.u32 %v1676, 4294901760
    %v1990 = vsub.f32 %v1676, %v1989
    %1991 = vmatprep.subr.mxu0 %v1990
    %v1992 = vand.u32 %v1675, 4294901760
    %v1993 = vsub.f32 %v1675, %v1992
    %1994 = vmatpush1.msra.mxu0 %v1993
    %1995 = vmatprep.subr.mxu0 0.0
    %1996 = vmatpush1.msra.mxu0 0.0
    %1997 = vmatprep.subr.mxu0 0.0
    %1998 = vmatpush1.msra.mxu0 0.0
    %1999 = vmatprep.subr.mxu0 0.0
    %2000 = vmatpush1.msra.mxu0 0.0
    %2001 = vmatprep.subr.mxu0 0.0
    %2002 = vmatpush1.msra.mxu0 0.0
    %2003 = vmatprep.subr.mxu0 0.0
    %2004 = vmatpush1.msra.mxu0 0.0
    %2005 = vmatprep.subr.mxu0 0.0
    %2006 = vmatpush1.msra.mxu0 0.0
    %2007 = vmatprep.subr.mxu0 0.0
    %2008 = vmatpush1.msra.mxu0 0.0
    %2009 = vmatprep.subr.mxu0 0.0
    %2010 = vmatpush1.msra.mxu0 0.0
    %2011 = vmatprep.subr.mxu0 0.0
    %2012 = vmatpush1.msra.mxu0 0.0
    %2013 = vmatprep.subr.mxu0 0.0
    %2014 = vmatpush1.msra.mxu0 0.0
    %2015 = vmatprep.subr.mxu0 0.0
    %2016 = vmatpush1.msra.mxu0 0.0
    %2017 = vmatprep.subr.mxu0 0.0
    %2018 = vmatpush1.msra.mxu0 0.0
    %2019 = vmatprep.subr.mxu0 0.0
    %2020 = vmatpush1.msra.mxu0 0.0
    %2021 = vmatprep.subr.mxu0 0.0
    %2022 = vmatpush1.msra.mxu0 0.0
    %2023 = vmatprep.subr.mxu0 0.0
    %2024 = vmatpush1.msra.mxu0 0.0
    %2025 = vmatprep.subr.mxu0 0.0
    %2026 = vmatpush1.msra.mxu0 0.0
    %2027 = vmatprep.subr.mxu0 0.0
    %2028 = vmatpush1.msra.mxu0 0.0
    %2029 = vmatprep.subr.mxu0 0.0
    %2030 = vmatpush1.msra.mxu0 0.0
    %2031 = vmatprep.subr.mxu0 0.0
    %2032 = vmatpush1.msra.mxu0 0.0
    %2033 = vmatprep.subr.mxu0 0.0
    %2034 = vmatpush1.msra.mxu0 0.0
    %2035 = vmatprep.subr.mxu0 0.0
    %2036 = vmatpush1.msra.mxu0 0.0
    %2037 = vmatprep.subr.mxu0 0.0
    %2038 = vmatpush1.msra.mxu0 0.0
    %2039 = vmatprep.subr.mxu0 0.0
    %2040 = vmatpush1.msra.mxu0 0.0
    %2041 = vmatprep.subr.mxu0 0.0
    %2042 = vmatpush1.msra.mxu0 0.0
    %2043 = vmatprep.mubr.f32.mxu0 0.0
    %v2044 = vand.u32 %v267, 4294901760
    %v2045 = vsub.f32 %v267, %v2044
    %2046 = vmatmul.mubr.f32.gmra.mrb[0].mxu0 %v2045
    %v2047 = vpop.f32.mrb[0].mxu0
    %v2048 = vadd.f32 %v1943, %v2047
    %v2049 = vpop.f32.mrb[0].mxu0
    %v2050 = vadd.f32 %v1945, %v2049
    %2051 = vdwg.mxu0
    %v2052 = vand.u32 %v1662, 4294901760
    %2053 = vmatprep.subr.mxu0 %v2052
    %v2054 = vand.u32 %v1661, 4294901760
    %2055 = vmatpush1.msra.mxu0 %v2054
    %v2056 = vand.u32 %v1664, 4294901760
    %2057 = vmatprep.subr.mxu0 %v2056
    %v2058 = vand.u32 %v1663, 4294901760
    %2059 = vmatpush1.msra.mxu0 %v2058
    %v2060 = vand.u32 %v1666, 4294901760
    %2061 = vmatprep.subr.mxu0 %v2060
    %v2062 = vand.u32 %v1665, 4294901760
    %2063 = vmatpush1.msra.mxu0 %v2062
    %v2064 = vand.u32 %v1668, 4294901760
    %2065 = vmatprep.subr.mxu0 %v2064
    %v2066 = vand.u32 %v1667, 4294901760
    %2067 = vmatpush1.msra.mxu0 %v2066
    %v2068 = vand.u32 %v1670, 4294901760
    %2069 = vmatprep.subr.mxu0 %v2068
    %v2070 = vand.u32 %v1669, 4294901760
    %2071 = vmatpush1.msra.mxu0 %v2070
    %v2072 = vand.u32 %v1672, 4294901760
    %2073 = vmatprep.subr.mxu0 %v2072
    %v2074 = vand.u32 %v1671, 4294901760
    %2075 = vmatpush1.msra.mxu0 %v2074
    %v2076 = vand.u32 %v1674, 4294901760
    %2077 = vmatprep.subr.mxu0 %v2076
    %v2078 = vand.u32 %v1673, 4294901760
    %2079 = vmatpush1.msra.mxu0 %v2078
    %v2080 = vand.u32 %v1676, 4294901760
    %2081 = vmatprep.subr.mxu0 %v2080
    %v2082 = vand.u32 %v1675, 4294901760
    %2083 = vmatpush1.msra.mxu0 %v2082
    %2084 = vmatprep.subr.mxu0 0.0
    %2085 = vmatpush1.msra.mxu0 0.0
    %2086 = vmatprep.subr.mxu0 0.0
    %2087 = vmatpush1.msra.mxu0 0.0
    %2088 = vmatprep.subr.mxu0 0.0
    %2089 = vmatpush1.msra.mxu0 0.0
    %2090 = vmatprep.subr.mxu0 0.0
    %2091 = vmatpush1.msra.mxu0 0.0
    %2092 = vmatprep.subr.mxu0 0.0
    %2093 = vmatpush1.msra.mxu0 0.0
    %2094 = vmatprep.subr.mxu0 0.0
    %2095 = vmatpush1.msra.mxu0 0.0
    %2096 = vmatprep.subr.mxu0 0.0
    %2097 = vmatpush1.msra.mxu0 0.0
    %2098 = vmatprep.subr.mxu0 0.0
    %2099 = vmatpush1.msra.mxu0 0.0
    %2100 = vmatprep.subr.mxu0 0.0
    %2101 = vmatpush1.msra.mxu0 0.0
    %2102 = vmatprep.subr.mxu0 0.0
    %2103 = vmatpush1.msra.mxu0 0.0
    %2104 = vmatprep.subr.mxu0 0.0
    %2105 = vmatpush1.msra.mxu0 0.0
    %2106 = vmatprep.subr.mxu0 0.0
    %2107 = vmatpush1.msra.mxu0 0.0
    %2108 = vmatprep.subr.mxu0 0.0
    %2109 = vmatpush1.msra.mxu0 0.0
    %2110 = vmatprep.subr.mxu0 0.0
    %2111 = vmatpush1.msra.mxu0 0.0
    %2112 = vmatprep.subr.mxu0 0.0
    %2113 = vmatpush1.msra.mxu0 0.0
    %2114 = vmatprep.subr.mxu0 0.0
    %2115 = vmatpush1.msra.mxu0 0.0
    %2116 = vmatprep.subr.mxu0 0.0
    %2117 = vmatpush1.msra.mxu0 0.0
    %2118 = vmatprep.subr.mxu0 0.0
    %2119 = vmatpush1.msra.mxu0 0.0
    %2120 = vmatprep.subr.mxu0 0.0
    %2121 = vmatpush1.msra.mxu0 0.0
    %2122 = vmatprep.subr.mxu0 0.0
    %2123 = vmatpush1.msra.mxu0 0.0
    %2124 = vmatprep.subr.mxu0 0.0
    %2125 = vmatpush1.msra.mxu0 0.0
    %2126 = vmatprep.subr.mxu0 0.0
    %2127 = vmatpush1.msra.mxu0 0.0
    %2128 = vmatprep.subr.mxu0 0.0
    %2129 = vmatpush1.msra.mxu0 0.0
    %2130 = vmatprep.subr.mxu0 0.0
    %2131 = vmatpush1.msra.mxu0 0.0
    %2132 = vmatprep.mubr.f32.mxu0 0.0
    %v2133 = vand.u32 %v267, 4294901760
    %v2134 = vsub.f32 %v267, %v2133
    %v2135 = vand.u32 %v2134, 4294901760
    %2136 = vmatmul.mubr.f32.gmra.mrb[0].mxu0 %v2135
    %v2137 = vpop.f32.mrb[0].mxu0
    %v2138 = vadd.f32 %v2048, %v2137
    %v2139 = vpop.f32.mrb[0].mxu0
    %v2140 = vadd.f32 %v2050, %v2139
    %2141 = vdwg.mxu0
    %v2142 = vand.u32 %v1662, 4294901760
    %v2143 = vsub.f32 %v1662, %v2142
    %v2144 = vand.u32 %v2143, 4294901760
    %2145 = vmatprep.subr.mxu0 %v2144
    %v2146 = vand.u32 %v1661, 4294901760
    %v2147 = vsub.f32 %v1661, %v2146
    %v2148 = vand.u32 %v2147, 4294901760
    %2149 = vmatpush1.msra.mxu0 %v2148
    %v2150 = vand.u32 %v1664, 4294901760
    %v2151 = vsub.f32 %v1664, %v2150
    %v2152 = vand.u32 %v2151, 4294901760
    %2153 = vmatprep.subr.mxu0 %v2152
    %v2154 = vand.u32 %v1663, 4294901760
    %v2155 = vsub.f32 %v1663, %v2154
    %v2156 = vand.u32 %v2155, 4294901760
    %2157 = vmatpush1.msra.mxu0 %v2156
    %v2158 = vand.u32 %v1666, 4294901760
    %v2159 = vsub.f32 %v1666, %v2158
    %v2160 = vand.u32 %v2159, 4294901760
    %2161 = vmatprep.subr.mxu0 %v2160
    %v2162 = vand.u32 %v1665, 4294901760
    %v2163 = vsub.f32 %v1665, %v2162
    %v2164 = vand.u32 %v2163, 4294901760
    %2165 = vmatpush1.msra.mxu0 %v2164
    %v2166 = vand.u32 %v1668, 4294901760
    %v2167 = vsub.f32 %v1668, %v2166
    %v2168 = vand.u32 %v2167, 4294901760
    %2169 = vmatprep.subr.mxu0 %v2168
    %v2170 = vand.u32 %v1667, 4294901760
    %v2171 = vsub.f32 %v1667, %v2170
    %v2172 = vand.u32 %v2171, 4294901760
    %2173 = vmatpush1.msra.mxu0 %v2172
    %v2174 = vand.u32 %v1670, 4294901760
    %v2175 = vsub.f32 %v1670, %v2174
    %v2176 = vand.u32 %v2175, 4294901760
    %2177 = vmatprep.subr.mxu0 %v2176
    %v2178 = vand.u32 %v1669, 4294901760
    %v2179 = vsub.f32 %v1669, %v2178
    %v2180 = vand.u32 %v2179, 4294901760
    %2181 = vmatpush1.msra.mxu0 %v2180
    %v2182 = vand.u32 %v1672, 4294901760
    %v2183 = vsub.f32 %v1672, %v2182
    %v2184 = vand.u32 %v2183, 4294901760
    %2185 = vmatprep.subr.mxu0 %v2184
    %v2186 = vand.u32 %v1671, 4294901760
    %v2187 = vsub.f32 %v1671, %v2186
    %v2188 = vand.u32 %v2187, 4294901760
    %2189 = vmatpush1.msra.mxu0 %v2188
    %v2190 = vand.u32 %v1674, 4294901760
    %v2191 = vsub.f32 %v1674, %v2190
    %v2192 = vand.u32 %v2191, 4294901760
    %2193 = vmatprep.subr.mxu0 %v2192
    %v2194 = vand.u32 %v1673, 4294901760
    %v2195 = vsub.f32 %v1673, %v2194
    %v2196 = vand.u32 %v2195, 4294901760
    %2197 = vmatpush1.msra.mxu0 %v2196
    %v2198 = vand.u32 %v1676, 4294901760
    %v2199 = vsub.f32 %v1676, %v2198
    %v2200 = vand.u32 %v2199, 4294901760
    %2201 = vmatprep.subr.mxu0 %v2200
    %v2202 = vand.u32 %v1675, 4294901760
    %v2203 = vsub.f32 %v1675, %v2202
    %v2204 = vand.u32 %v2203, 4294901760
    %2205 = vmatpush1.msra.mxu0 %v2204
    %2206 = vmatprep.subr.mxu0 0.0
    %2207 = vmatpush1.msra.mxu0 0.0
    %2208 = vmatprep.subr.mxu0 0.0
    %2209 = vmatpush1.msra.mxu0 0.0
    %2210 = vmatprep.subr.mxu0 0.0
    %2211 = vmatpush1.msra.mxu0 0.0
    %2212 = vmatprep.subr.mxu0 0.0
    %2213 = vmatpush1.msra.mxu0 0.0
    %2214 = vmatprep.subr.mxu0 0.0
    %2215 = vmatpush1.msra.mxu0 0.0
    %2216 = vmatprep.subr.mxu0 0.0
    %2217 = vmatpush1.msra.mxu0 0.0
    %2218 = vmatprep.subr.mxu0 0.0
    %2219 = vmatpush1.msra.mxu0 0.0
    %2220 = vmatprep.subr.mxu0 0.0
    %2221 = vmatpush1.msra.mxu0 0.0
    %2222 = vmatprep.subr.mxu0 0.0
    %2223 = vmatpush1.msra.mxu0 0.0
    %2224 = vmatprep.subr.mxu0 0.0
    %2225 = vmatpush1.msra.mxu0 0.0
    %2226 = vmatprep.subr.mxu0 0.0
    %2227 = vmatpush1.msra.mxu0 0.0
    %2228 = vmatprep.subr.mxu0 0.0
    %2229 = vmatpush1.msra.mxu0 0.0
    %2230 = vmatprep.subr.mxu0 0.0
    %2231 = vmatpush1.msra.mxu0 0.0
    %2232 = vmatprep.subr.mxu0 0.0
    %2233 = vmatpush1.msra.mxu0 0.0
    %2234 = vmatprep.subr.mxu0 0.0
    %2235 = vmatpush1.msra.mxu0 0.0
    %2236 = vmatprep.subr.mxu0 0.0
    %2237 = vmatpush1.msra.mxu0 0.0
    %2238 = vmatprep.subr.mxu0 0.0
    %2239 = vmatpush1.msra.mxu0 0.0
    %2240 = vmatprep.subr.mxu0 0.0
    %2241 = vmatpush1.msra.mxu0 0.0
    %2242 = vmatprep.subr.mxu0 0.0
    %2243 = vmatpush1.msra.mxu0 0.0
    %2244 = vmatprep.subr.mxu0 0.0
    %2245 = vmatpush1.msra.mxu0 0.0
    %2246 = vmatprep.subr.mxu0 0.0
    %2247 = vmatpush1.msra.mxu0 0.0
    %2248 = vmatprep.subr.mxu0 0.0
    %2249 = vmatpush1.msra.mxu0 0.0
    %2250 = vmatprep.subr.mxu0 0.0
    %2251 = vmatpush1.msra.mxu0 0.0
    %2252 = vmatprep.subr.mxu0 0.0
    %2253 = vmatpush1.msra.mxu0 0.0
    %2254 = vmatprep.mubr.f32.mxu0 0.0
    %v2255 = vand.u32 %v267, 4294901760
    %2256 = vmatmul.mubr.f32.gmra.mrb[0].mxu0 %v2255
    %v2257 = vpop.f32.mrb[0].mxu0
    %v2258 = vadd.f32 %v2138, %v2257
    %v2259 = vpop.f32.mrb[0].mxu0
    %v2260 = vadd.f32 %v2140, %v2259
    %2261 = vdwg.mxu0
    %v2262 = vand.u32 %v1662, 4294901760
    %2263 = vmatprep.subr.mxu0 %v2262
    %v2264 = vand.u32 %v1661, 4294901760
    %2265 = vmatpush1.msra.mxu0 %v2264
    %v2266 = vand.u32 %v1664, 4294901760
    %2267 = vmatprep.subr.mxu0 %v2266
    %v2268 = vand.u32 %v1663, 4294901760
    %2269 = vmatpush1.msra.mxu0 %v2268
    %v2270 = vand.u32 %v1666, 4294901760
    %2271 = vmatprep.subr.mxu0 %v2270
    %v2272 = vand.u32 %v1665, 4294901760
    %2273 = vmatpush1.msra.mxu0 %v2272
    %v2274 = vand.u32 %v1668, 4294901760
    %2275 = vmatprep.subr.mxu0 %v2274
    %v2276 = vand.u32 %v1667, 4294901760
    %2277 = vmatpush1.msra.mxu0 %v2276
    %v2278 = vand.u32 %v1670, 4294901760
    %2279 = vmatprep.subr.mxu0 %v2278
    %v2280 = vand.u32 %v1669, 4294901760
    %2281 = vmatpush1.msra.mxu0 %v2280
    %v2282 = vand.u32 %v1672, 4294901760
    %2283 = vmatprep.subr.mxu0 %v2282
    %v2284 = vand.u32 %v1671, 4294901760
    %2285 = vmatpush1.msra.mxu0 %v2284
    %v2286 = vand.u32 %v1674, 4294901760
    %2287 = vmatprep.subr.mxu0 %v2286
    %v2288 = vand.u32 %v1673, 4294901760
    %2289 = vmatpush1.msra.mxu0 %v2288
    %v2290 = vand.u32 %v1676, 4294901760
    %2291 = vmatprep.subr.mxu0 %v2290
    %v2292 = vand.u32 %v1675, 4294901760
    %2293 = vmatpush1.msra.mxu0 %v2292
    %2294 = vmatprep.subr.mxu0 0.0
    %2295 = vmatpush1.msra.mxu0 0.0
    %2296 = vmatprep.subr.mxu0 0.0
    %2297 = vmatpush1.msra.mxu0 0.0
    %2298 = vmatprep.subr.mxu0 0.0
    %2299 = vmatpush1.msra.mxu0 0.0
    %2300 = vmatprep.subr.mxu0 0.0
    %2301 = vmatpush1.msra.mxu0 0.0
    %2302 = vmatprep.subr.mxu0 0.0
    %2303 = vmatpush1.msra.mxu0 0.0
    %2304 = vmatprep.subr.mxu0 0.0
    %2305 = vmatpush1.msra.mxu0 0.0
    %2306 = vmatprep.subr.mxu0 0.0
    %2307 = vmatpush1.msra.mxu0 0.0
    %2308 = vmatprep.subr.mxu0 0.0
    %2309 = vmatpush1.msra.mxu0 0.0
    %2310 = vmatprep.subr.mxu0 0.0
    %2311 = vmatpush1.msra.mxu0 0.0
    %2312 = vmatprep.subr.mxu0 0.0
    %2313 = vmatpush1.msra.mxu0 0.0
    %2314 = vmatprep.subr.mxu0 0.0
    %2315 = vmatpush1.msra.mxu0 0.0
    %2316 = vmatprep.subr.mxu0 0.0
    %2317 = vmatpush1.msra.mxu0 0.0
    %2318 = vmatprep.subr.mxu0 0.0
    %2319 = vmatpush1.msra.mxu0 0.0
    %2320 = vmatprep.subr.mxu0 0.0
    %2321 = vmatpush1.msra.mxu0 0.0
    %2322 = vmatprep.subr.mxu0 0.0
    %2323 = vmatpush1.msra.mxu0 0.0
    %2324 = vmatprep.subr.mxu0 0.0
    %2325 = vmatpush1.msra.mxu0 0.0
    %2326 = vmatprep.subr.mxu0 0.0
    %2327 = vmatpush1.msra.mxu0 0.0
    %2328 = vmatprep.subr.mxu0 0.0
    %2329 = vmatpush1.msra.mxu0 0.0
    %2330 = vmatprep.subr.mxu0 0.0
    %2331 = vmatpush1.msra.mxu0 0.0
    %2332 = vmatprep.subr.mxu0 0.0
    %2333 = vmatpush1.msra.mxu0 0.0
    %2334 = vmatprep.subr.mxu0 0.0
    %2335 = vmatpush1.msra.mxu0 0.0
    %2336 = vmatprep.subr.mxu0 0.0
    %2337 = vmatpush1.msra.mxu0 0.0
    %2338 = vmatprep.subr.mxu0 0.0
    %2339 = vmatpush1.msra.mxu0 0.0
    %2340 = vmatprep.subr.mxu0 0.0
    %2341 = vmatpush1.msra.mxu0 0.0
    %2342 = vmatprep.mubr.f32.mxu0 0.0
    %v2343 = vand.u32 %v267, 4294901760
    %2344 = vmatmul.mubr.f32.gmra.mrb[0].mxu0 %v2343
    %v2345 = vpop.f32.mrb[0].mxu0
    %v2346 = vadd.f32 %v2258, %v2345
    %v2347 = vpop.f32.mrb[0].mxu0
    %v2348 = vadd.f32 %v2260, %v2347
    %2349 = vdwg.mxu0
    %v2350 = vmax.f32 %v1689, 1.0
    %v2351 = vmax.f32 %v1702, 1.0
    %v2352 = vrcp.pop %v2350
    %v2353 = vmul.f32 %v2346, %v2352
    %v2354 = vrcp.pop %v2351
    %v2355 = vmul.f32 %v2348, %v2354
    %v2357 = vsel %vm955, %v2353, 0
    %v2360 = vsel %vm955, %v2355, 0
    %v2362 = vand.u32 %v2360, 4294901760
    %2363 = vmatprep.subr.mxu0 %v2362
    %v2364 = vand.u32 %v2357, 4294901760
    %2365 = vmatpush1.msra.mxu0 %v2364
    %2366 = vmatprep.subr.mxu0 0.0
    %2367 = vmatpush1.msra.mxu0 0.0
    %2368 = vmatprep.subr.mxu0 0.0
    %2369 = vmatpush1.msra.mxu0 0.0
    %2370 = vmatprep.subr.mxu0 0.0
    %2371 = vmatpush1.msra.mxu0 0.0
    %2372 = vmatprep.subr.mxu0 0.0
    %2373 = vmatpush1.msra.mxu0 0.0
    %2374 = vmatprep.subr.mxu0 0.0
    %2375 = vmatpush1.msra.mxu0 0.0
    %2376 = vmatprep.subr.mxu0 0.0
    %2377 = vmatpush1.msra.mxu0 0.0
    %2378 = vmatprep.subr.mxu0 0.0
    %2379 = vmatpush1.msra.mxu0 0.0
    %2380 = vmatprep.subr.mxu0 0.0
    %2381 = vmatpush1.msra.mxu0 0.0
    %2382 = vmatprep.subr.mxu0 0.0
    %2383 = vmatpush1.msra.mxu0 0.0
    %2384 = vmatprep.subr.mxu0 0.0
    %2385 = vmatpush1.msra.mxu0 0.0
    %2386 = vmatprep.subr.mxu0 0.0
    %2387 = vmatpush1.msra.mxu0 0.0
    %2388 = vmatprep.subr.mxu0 0.0
    %2389 = vmatpush1.msra.mxu0 0.0
    %2390 = vmatprep.subr.mxu0 0.0
    %2391 = vmatpush1.msra.mxu0 0.0
    %2392 = vmatprep.subr.mxu0 0.0
    %2393 = vmatpush1.msra.mxu0 0.0
    %2394 = vmatprep.subr.mxu0 0.0
    %2395 = vmatpush1.msra.mxu0 0.0
    %2396 = vmatprep.subr.mxu0 0.0
    %2397 = vmatpush1.msra.mxu0 0.0
    %2398 = vmatprep.subr.mxu0 0.0
    %2399 = vmatpush1.msra.mxu0 0.0
    %2400 = vmatprep.subr.mxu0 0.0
    %2401 = vmatpush1.msra.mxu0 0.0
    %2402 = vmatprep.subr.mxu0 0.0
    %2403 = vmatpush1.msra.mxu0 0.0
    %2404 = vmatprep.subr.mxu0 0.0
    %2405 = vmatpush1.msra.mxu0 0.0
    %2406 = vmatprep.subr.mxu0 0.0
    %2407 = vmatpush1.msra.mxu0 0.0
    %2408 = vmatprep.subr.mxu0 0.0
    %2409 = vmatpush1.msra.mxu0 0.0
    %2410 = vmatprep.subr.mxu0 0.0
    %2411 = vmatpush1.msra.mxu0 0.0
    %2412 = vmatprep.subr.mxu0 0.0
    %2413 = vmatpush1.msra.mxu0 0.0
    %2414 = vmatprep.subr.mxu0 0.0
    %2415 = vmatpush1.msra.mxu0 0.0
    %2416 = vmatprep.subr.mxu0 0.0
    %2417 = vmatpush1.msra.mxu0 0.0
    %2418 = vmatprep.subr.mxu0 0.0
    %2419 = vmatpush1.msra.mxu0 0.0
    %2420 = vmatprep.subr.mxu0 0.0
    %2421 = vmatpush1.msra.mxu0 0.0
    %2422 = vmatprep.subr.mxu0 0.0
    %2423 = vmatpush1.msra.mxu0 0.0
    %2424 = vmatprep.subr.mxu0 0.0
    %2425 = vmatpush1.msra.mxu0 0.0
    %2426 = vmatprep.subr.mxu0 0.0
    %2427 = vmatpush1.msra.mxu0 0.0
    %2428 = vmatprep.mubr.f32.mxu0 0.0
    %v2429 = vand.u32 %v944, 4294901760
    %v2430 = vsub.f32 %v944, %v2429
    %v2431 = vand.u32 %v2430, 4294901760
    %v2432 = vsub.f32 %v2430, %v2431
    %v2433 = vand.u32 %v2432, 4294901760
    %2434 = vmatmul.mubr.f32.gmra.mrb[0].mxu0 %v2433
    %v2435 = vpop.f32.mrb[0].mxu0
    %v2436 = vadd.f32 %v925, %v2435
    %v2437 = vpop.f32.mrb[0].mxu0
    %v2438 = vadd.f32 %v925, %v2437
    %2439 = vmatprep.mubr.f32.mxu0 0.0
    %v2440 = vand.u32 %v947, 4294901760
    %v2441 = vsub.f32 %v947, %v2440
    %v2442 = vand.u32 %v2441, 4294901760
    %v2443 = vsub.f32 %v2441, %v2442
    %v2444 = vand.u32 %v2443, 4294901760
    %2445 = vmatmul.mubr.f32.gmra.mrb[0].mxu0 %v2444
    %v2446 = vpop.f32.mrb[0].mxu0
    %v2447 = vadd.f32 %v930, %v2446
    %v2448 = vpop.f32.mrb[0].mxu0
    %v2449 = vadd.f32 %v930, %v2448
    %2450 = vmatprep.mubr.f32.mxu0 0.0
    %v2451 = vand.u32 %v950, 4294901760
    %v2452 = vsub.f32 %v950, %v2451
    %v2453 = vand.u32 %v2452, 4294901760
    %v2454 = vsub.f32 %v2452, %v2453
    %v2455 = vand.u32 %v2454, 4294901760
    %2456 = vmatmul.mubr.f32.gmra.mrb[0].mxu0 %v2455
    %v2457 = vpop.f32.mrb[0].mxu0
    %v2458 = vadd.f32 %v935, %v2457
    %v2459 = vpop.f32.mrb[0].mxu0
    %v2460 = vadd.f32 %v935, %v2459
    %2461 = vmatprep.mubr.f32.mxu0 0.0
    %v2462 = vand.u32 %v953, 4294901760
    %v2463 = vsub.f32 %v953, %v2462
    %v2464 = vand.u32 %v2463, 4294901760
    %v2465 = vsub.f32 %v2463, %v2464
    %v2466 = vand.u32 %v2465, 4294901760
    %2467 = vmatmul.mubr.f32.gmra.mrb[0].mxu0 %v2466
    %v2468 = vpop.f32.mrb[0].mxu0
    %v2469 = vadd.f32 %v940, %v2468
    %v2470 = vpop.f32.mrb[0].mxu0
    %v2471 = vadd.f32 %v940, %v2470
    %2472 = vdwg.mxu0
    %v2473 = vand.u32 %v2360, 4294901760
    %v2474 = vsub.f32 %v2360, %v2473
    %v2475 = vand.u32 %v2474, 4294901760
    %v2476 = vsub.f32 %v2474, %v2475
    %v2477 = vand.u32 %v2476, 4294901760
    %2478 = vmatprep.subr.mxu0 %v2477
    %v2479 = vand.u32 %v2357, 4294901760
    %v2480 = vsub.f32 %v2357, %v2479
    %v2481 = vand.u32 %v2480, 4294901760
    %v2482 = vsub.f32 %v2480, %v2481
    %v2483 = vand.u32 %v2482, 4294901760
    %2484 = vmatpush1.msra.mxu0 %v2483
    %2485 = vmatprep.subr.mxu0 0.0
    %2486 = vmatpush1.msra.mxu0 0.0
    %2487 = vmatprep.subr.mxu0 0.0
    %2488 = vmatpush1.msra.mxu0 0.0
    %2489 = vmatprep.subr.mxu0 0.0
    %2490 = vmatpush1.msra.mxu0 0.0
    %2491 = vmatprep.subr.mxu0 0.0
    %2492 = vmatpush1.msra.mxu0 0.0
    %2493 = vmatprep.subr.mxu0 0.0
    %2494 = vmatpush1.msra.mxu0 0.0
    %2495 = vmatprep.subr.mxu0 0.0
    %2496 = vmatpush1.msra.mxu0 0.0
    %2497 = vmatprep.subr.mxu0 0.0
    %2498 = vmatpush1.msra.mxu0 0.0
    %2499 = vmatprep.subr.mxu0 0.0
    %2500 = vmatpush1.msra.mxu0 0.0
    %2501 = vmatprep.subr.mxu0 0.0
    %2502 = vmatpush1.msra.mxu0 0.0
    %2503 = vmatprep.subr.mxu0 0.0
    %2504 = vmatpush1.msra.mxu0 0.0
    %2505 = vmatprep.subr.mxu0 0.0
    %2506 = vmatpush1.msra.mxu0 0.0
    %2507 = vmatprep.subr.mxu0 0.0
    %2508 = vmatpush1.msra.mxu0 0.0
    %2509 = vmatprep.subr.mxu0 0.0
    %2510 = vmatpush1.msra.mxu0 0.0
    %2511 = vmatprep.subr.mxu0 0.0
    %2512 = vmatpush1.msra.mxu0 0.0
    %2513 = vmatprep.subr.mxu0 0.0
    %2514 = vmatpush1.msra.mxu0 0.0
    %2515 = vmatprep.subr.mxu0 0.0
    %2516 = vmatpush1.msra.mxu0 0.0
    %2517 = vmatprep.subr.mxu0 0.0
    %2518 = vmatpush1.msra.mxu0 0.0
    %2519 = vmatprep.subr.mxu0 0.0
    %2520 = vmatpush1.msra.mxu0 0.0
    %2521 = vmatprep.subr.mxu0 0.0
    %2522 = vmatpush1.msra.mxu0 0.0
    %2523 = vmatprep.subr.mxu0 0.0
    %2524 = vmatpush1.msra.mxu0 0.0
    %2525 = vmatprep.subr.mxu0 0.0
    %2526 = vmatpush1.msra.mxu0 0.0
    %2527 = vmatprep.subr.mxu0 0.0
    %2528 = vmatpush1.msra.mxu0 0.0
    %2529 = vmatprep.subr.mxu0 0.0
    %2530 = vmatpush1.msra.mxu0 0.0
    %2531 = vmatprep.subr.mxu0 0.0
    %2532 = vmatpush1.msra.mxu0 0.0
    %2533 = vmatprep.subr.mxu0 0.0
    %2534 = vmatpush1.msra.mxu0 0.0
    %2535 = vmatprep.subr.mxu0 0.0
    %2536 = vmatpush1.msra.mxu0 0.0
    %2537 = vmatprep.subr.mxu0 0.0
    %2538 = vmatpush1.msra.mxu0 0.0
    %2539 = vmatprep.subr.mxu0 0.0
    %2540 = vmatpush1.msra.mxu0 0.0
    %2541 = vmatprep.subr.mxu0 0.0
    %2542 = vmatpush1.msra.mxu0 0.0
    %2543 = vmatprep.subr.mxu0 0.0
    %2544 = vmatpush1.msra.mxu0 0.0
    %2545 = vmatprep.subr.mxu0 0.0
    %2546 = vmatpush1.msra.mxu0 0.0
    %2547 = vmatprep.mubr.f32.mxu0 0.0
    %v2548 = vand.u32 %v944, 4294901760
    %2549 = vmatmul.mubr.f32.gmra.mrb[0].mxu0 %v2548
    %v2550 = vpop.f32.mrb[0].mxu0
    %v2551 = vadd.f32 %v2436, %v2550
    %v2552 = vpop.f32.mrb[0].mxu0
    %v2553 = vadd.f32 %v2438, %v2552
    %2554 = vmatprep.mubr.f32.mxu0 0.0
    %v2555 = vand.u32 %v947, 4294901760
    %2556 = vmatmul.mubr.f32.gmra.mrb[0].mxu0 %v2555
    %v2557 = vpop.f32.mrb[0].mxu0
    %v2558 = vadd.f32 %v2447, %v2557
    %v2559 = vpop.f32.mrb[0].mxu0
    %v2560 = vadd.f32 %v2449, %v2559
    %2561 = vmatprep.mubr.f32.mxu0 0.0
    %v2562 = vand.u32 %v950, 4294901760
    %2563 = vmatmul.mubr.f32.gmra.mrb[0].mxu0 %v2562
    %v2564 = vpop.f32.mrb[0].mxu0
    %v2565 = vadd.f32 %v2458, %v2564
    %v2566 = vpop.f32.mrb[0].mxu0
    %v2567 = vadd.f32 %v2460, %v2566
    %2568 = vmatprep.mubr.f32.mxu0 0.0
    %v2569 = vand.u32 %v953, 4294901760
    %2570 = vmatmul.mubr.f32.gmra.mrb[0].mxu0 %v2569
    %v2571 = vpop.f32.mrb[0].mxu0
    %v2572 = vadd.f32 %v2469, %v2571
    %v2573 = vpop.f32.mrb[0].mxu0
    %v2574 = vadd.f32 %v2471, %v2573
    %2575 = vdwg.mxu0
    %v2576 = vand.u32 %v2360, 4294901760
    %v2577 = vsub.f32 %v2360, %v2576
    %2578 = vmatprep.subr.mxu0 %v2577
    %v2579 = vand.u32 %v2357, 4294901760
    %v2580 = vsub.f32 %v2357, %v2579
    %2581 = vmatpush1.msra.mxu0 %v2580
    %2582 = vmatprep.subr.mxu0 0.0
    %2583 = vmatpush1.msra.mxu0 0.0
    %2584 = vmatprep.subr.mxu0 0.0
    %2585 = vmatpush1.msra.mxu0 0.0
    %2586 = vmatprep.subr.mxu0 0.0
    %2587 = vmatpush1.msra.mxu0 0.0
    %2588 = vmatprep.subr.mxu0 0.0
    %2589 = vmatpush1.msra.mxu0 0.0
    %2590 = vmatprep.subr.mxu0 0.0
    %2591 = vmatpush1.msra.mxu0 0.0
    %2592 = vmatprep.subr.mxu0 0.0
    %2593 = vmatpush1.msra.mxu0 0.0
    %2594 = vmatprep.subr.mxu0 0.0
    %2595 = vmatpush1.msra.mxu0 0.0
    %2596 = vmatprep.subr.mxu0 0.0
    %2597 = vmatpush1.msra.mxu0 0.0
    %2598 = vmatprep.subr.mxu0 0.0
    %2599 = vmatpush1.msra.mxu0 0.0
    %2600 = vmatprep.subr.mxu0 0.0
    %2601 = vmatpush1.msra.mxu0 0.0
    %2602 = vmatprep.subr.mxu0 0.0
    %2603 = vmatpush1.msra.mxu0 0.0
    %2604 = vmatprep.subr.mxu0 0.0
    %2605 = vmatpush1.msra.mxu0 0.0
    %2606 = vmatprep.subr.mxu0 0.0
    %2607 = vmatpush1.msra.mxu0 0.0
    %2608 = vmatprep.subr.mxu0 0.0
    %2609 = vmatpush1.msra.mxu0 0.0
    %2610 = vmatprep.subr.mxu0 0.0
    %2611 = vmatpush1.msra.mxu0 0.0
    %2612 = vmatprep.subr.mxu0 0.0
    %2613 = vmatpush1.msra.mxu0 0.0
    %2614 = vmatprep.subr.mxu0 0.0
    %2615 = vmatpush1.msra.mxu0 0.0
    %2616 = vmatprep.subr.mxu0 0.0
    %2617 = vmatpush1.msra.mxu0 0.0
    %2618 = vmatprep.subr.mxu0 0.0
    %2619 = vmatpush1.msra.mxu0 0.0
    %2620 = vmatprep.subr.mxu0 0.0
    %2621 = vmatpush1.msra.mxu0 0.0
    %2622 = vmatprep.subr.mxu0 0.0
    %2623 = vmatpush1.msra.mxu0 0.0
    %2624 = vmatprep.subr.mxu0 0.0
    %2625 = vmatpush1.msra.mxu0 0.0
    %2626 = vmatprep.subr.mxu0 0.0
    %2627 = vmatpush1.msra.mxu0 0.0
    %2628 = vmatprep.subr.mxu0 0.0
    %2629 = vmatpush1.msra.mxu0 0.0
    %2630 = vmatprep.subr.mxu0 0.0
    %2631 = vmatpush1.msra.mxu0 0.0
    %2632 = vmatprep.subr.mxu0 0.0
    %2633 = vmatpush1.msra.mxu0 0.0
    %2634 = vmatprep.subr.mxu0 0.0
    %2635 = vmatpush1.msra.mxu0 0.0
    %2636 = vmatprep.subr.mxu0 0.0
    %2637 = vmatpush1.msra.mxu0 0.0
    %2638 = vmatprep.subr.mxu0 0.0
    %2639 = vmatpush1.msra.mxu0 0.0
    %2640 = vmatprep.subr.mxu0 0.0
    %2641 = vmatpush1.msra.mxu0 0.0
    %2642 = vmatprep.subr.mxu0 0.0
    %2643 = vmatpush1.msra.mxu0 0.0
    %2644 = vmatprep.mubr.f32.mxu0 0.0
    %v2645 = vand.u32 %v944, 4294901760
    %v2646 = vsub.f32 %v944, %v2645
    %2647 = vmatmul.mubr.f32.gmra.mrb[0].mxu0 %v2646
    %v2648 = vpop.f32.mrb[0].mxu0
    %v2649 = vadd.f32 %v2551, %v2648
    %v2650 = vpop.f32.mrb[0].mxu0
    %v2651 = vadd.f32 %v2553, %v2650
    %2652 = vmatprep.mubr.f32.mxu0 0.0
    %v2653 = vand.u32 %v947, 4294901760
    %v2654 = vsub.f32 %v947, %v2653
    %2655 = vmatmul.mubr.f32.gmra.mrb[0].mxu0 %v2654
    %v2656 = vpop.f32.mrb[0].mxu0
    %v2657 = vadd.f32 %v2558, %v2656
    %v2658 = vpop.f32.mrb[0].mxu0
    %v2659 = vadd.f32 %v2560, %v2658
    %2660 = vmatprep.mubr.f32.mxu0 0.0
    %v2661 = vand.u32 %v950, 4294901760
    %v2662 = vsub.f32 %v950, %v2661
    %2663 = vmatmul.mubr.f32.gmra.mrb[0].mxu0 %v2662
    %v2664 = vpop.f32.mrb[0].mxu0
    %v2665 = vadd.f32 %v2565, %v2664
    %v2666 = vpop.f32.mrb[0].mxu0
    %v2667 = vadd.f32 %v2567, %v2666
    %2668 = vmatprep.mubr.f32.mxu0 0.0
    %v2669 = vand.u32 %v953, 4294901760
    %v2670 = vsub.f32 %v953, %v2669
    %2671 = vmatmul.mubr.f32.gmra.mrb[0].mxu0 %v2670
    %v2672 = vpop.f32.mrb[0].mxu0
    %v2673 = vadd.f32 %v2572, %v2672
    %v2674 = vpop.f32.mrb[0].mxu0
    %v2675 = vadd.f32 %v2574, %v2674
    %2676 = vdwg.mxu0
    %v2677 = vand.u32 %v2360, 4294901760
    %2678 = vmatprep.subr.mxu0 %v2677
    %v2679 = vand.u32 %v2357, 4294901760
    %2680 = vmatpush1.msra.mxu0 %v2679
    %2681 = vmatprep.subr.mxu0 0.0
    %2682 = vmatpush1.msra.mxu0 0.0
    %2683 = vmatprep.subr.mxu0 0.0
    %2684 = vmatpush1.msra.mxu0 0.0
    %2685 = vmatprep.subr.mxu0 0.0
    %2686 = vmatpush1.msra.mxu0 0.0
    %2687 = vmatprep.subr.mxu0 0.0
    %2688 = vmatpush1.msra.mxu0 0.0
    %2689 = vmatprep.subr.mxu0 0.0
    %2690 = vmatpush1.msra.mxu0 0.0
    %2691 = vmatprep.subr.mxu0 0.0
    %2692 = vmatpush1.msra.mxu0 0.0
    %2693 = vmatprep.subr.mxu0 0.0
    %2694 = vmatpush1.msra.mxu0 0.0
    %2695 = vmatprep.subr.mxu0 0.0
    %2696 = vmatpush1.msra.mxu0 0.0
    %2697 = vmatprep.subr.mxu0 0.0
    %2698 = vmatpush1.msra.mxu0 0.0
    %2699 = vmatprep.subr.mxu0 0.0
    %2700 = vmatpush1.msra.mxu0 0.0
    %2701 = vmatprep.subr.mxu0 0.0
    %2702 = vmatpush1.msra.mxu0 0.0
    %2703 = vmatprep.subr.mxu0 0.0
    %2704 = vmatpush1.msra.mxu0 0.0
    %2705 = vmatprep.subr.mxu0 0.0
    %2706 = vmatpush1.msra.mxu0 0.0
    %2707 = vmatprep.subr.mxu0 0.0
    %2708 = vmatpush1.msra.mxu0 0.0
    %2709 = vmatprep.subr.mxu0 0.0
    %2710 = vmatpush1.msra.mxu0 0.0
    %2711 = vmatprep.subr.mxu0 0.0
    %2712 = vmatpush1.msra.mxu0 0.0
    %2713 = vmatprep.subr.mxu0 0.0
    %2714 = vmatpush1.msra.mxu0 0.0
    %2715 = vmatprep.subr.mxu0 0.0
    %2716 = vmatpush1.msra.mxu0 0.0
    %2717 = vmatprep.subr.mxu0 0.0
    %2718 = vmatpush1.msra.mxu0 0.0
    %2719 = vmatprep.subr.mxu0 0.0
    %2720 = vmatpush1.msra.mxu0 0.0
    %2721 = vmatprep.subr.mxu0 0.0
    %2722 = vmatpush1.msra.mxu0 0.0
    %2723 = vmatprep.subr.mxu0 0.0
    %2724 = vmatpush1.msra.mxu0 0.0
    %2725 = vmatprep.subr.mxu0 0.0
    %2726 = vmatpush1.msra.mxu0 0.0
    %2727 = vmatprep.subr.mxu0 0.0
    %2728 = vmatpush1.msra.mxu0 0.0
    %2729 = vmatprep.subr.mxu0 0.0
    %2730 = vmatpush1.msra.mxu0 0.0
    %2731 = vmatprep.subr.mxu0 0.0
    %2732 = vmatpush1.msra.mxu0 0.0
    %2733 = vmatprep.subr.mxu0 0.0
    %2734 = vmatpush1.msra.mxu0 0.0
    %2735 = vmatprep.subr.mxu0 0.0
    %2736 = vmatpush1.msra.mxu0 0.0
    %2737 = vmatprep.subr.mxu0 0.0
    %2738 = vmatpush1.msra.mxu0 0.0
    %2739 = vmatprep.subr.mxu0 0.0
    %2740 = vmatpush1.msra.mxu0 0.0
    %2741 = vmatprep.subr.mxu0 0.0
    %2742 = vmatpush1.msra.mxu0 0.0
    %2743 = vmatprep.mubr.f32.mxu0 0.0
    %v2744 = vand.u32 %v944, 4294901760
    %v2745 = vsub.f32 %v944, %v2744
    %v2746 = vand.u32 %v2745, 4294901760
    %2747 = vmatmul.mubr.f32.gmra.mrb[0].mxu0 %v2746
    %v2748 = vpop.f32.mrb[0].mxu0
    %v2749 = vadd.f32 %v2649, %v2748
    %v2750 = vpop.f32.mrb[0].mxu0
    %v2751 = vadd.f32 %v2651, %v2750
    %2752 = vmatprep.mubr.f32.mxu0 0.0
    %v2753 = vand.u32 %v947, 4294901760
    %v2754 = vsub.f32 %v947, %v2753
    %v2755 = vand.u32 %v2754, 4294901760
    %2756 = vmatmul.mubr.f32.gmra.mrb[0].mxu0 %v2755
    %v2757 = vpop.f32.mrb[0].mxu0
    %v2758 = vadd.f32 %v2657, %v2757
    %v2759 = vpop.f32.mrb[0].mxu0
    %v2760 = vadd.f32 %v2659, %v2759
    %2761 = vmatprep.mubr.f32.mxu0 0.0
    %v2762 = vand.u32 %v950, 4294901760
    %v2763 = vsub.f32 %v950, %v2762
    %v2764 = vand.u32 %v2763, 4294901760
    %2765 = vmatmul.mubr.f32.gmra.mrb[0].mxu0 %v2764
    %v2766 = vpop.f32.mrb[0].mxu0
    %v2767 = vadd.f32 %v2665, %v2766
    %v2768 = vpop.f32.mrb[0].mxu0
    %v2769 = vadd.f32 %v2667, %v2768
    %2770 = vmatprep.mubr.f32.mxu0 0.0
    %v2771 = vand.u32 %v953, 4294901760
    %v2772 = vsub.f32 %v953, %v2771
    %v2773 = vand.u32 %v2772, 4294901760
    %2774 = vmatmul.mubr.f32.gmra.mrb[0].mxu0 %v2773
    %v2775 = vpop.f32.mrb[0].mxu0
    %v2776 = vadd.f32 %v2673, %v2775
    %v2777 = vpop.f32.mrb[0].mxu0
    %v2778 = vadd.f32 %v2675, %v2777
    %2779 = vdwg.mxu0
    %v2780 = vand.u32 %v2360, 4294901760
    %v2781 = vsub.f32 %v2360, %v2780
    %v2782 = vand.u32 %v2781, 4294901760
    %2783 = vmatprep.subr.mxu0 %v2782
    %v2784 = vand.u32 %v2357, 4294901760
    %v2785 = vsub.f32 %v2357, %v2784
    %v2786 = vand.u32 %v2785, 4294901760
    %2787 = vmatpush1.msra.mxu0 %v2786
    %2788 = vmatprep.subr.mxu0 0.0
    %2789 = vmatpush1.msra.mxu0 0.0
    %2790 = vmatprep.subr.mxu0 0.0
    %2791 = vmatpush1.msra.mxu0 0.0
    %2792 = vmatprep.subr.mxu0 0.0
    %2793 = vmatpush1.msra.mxu0 0.0
    %2794 = vmatprep.subr.mxu0 0.0
    %2795 = vmatpush1.msra.mxu0 0.0
    %2796 = vmatprep.subr.mxu0 0.0
    %2797 = vmatpush1.msra.mxu0 0.0
    %2798 = vmatprep.subr.mxu0 0.0
    %2799 = vmatpush1.msra.mxu0 0.0
    %2800 = vmatprep.subr.mxu0 0.0
    %2801 = vmatpush1.msra.mxu0 0.0
    %2802 = vmatprep.subr.mxu0 0.0
    %2803 = vmatpush1.msra.mxu0 0.0
    %2804 = vmatprep.subr.mxu0 0.0
    %2805 = vmatpush1.msra.mxu0 0.0
    %2806 = vmatprep.subr.mxu0 0.0
    %2807 = vmatpush1.msra.mxu0 0.0
    %2808 = vmatprep.subr.mxu0 0.0
    %2809 = vmatpush1.msra.mxu0 0.0
    %2810 = vmatprep.subr.mxu0 0.0
    %2811 = vmatpush1.msra.mxu0 0.0
    %2812 = vmatprep.subr.mxu0 0.0
    %2813 = vmatpush1.msra.mxu0 0.0
    %2814 = vmatprep.subr.mxu0 0.0
    %2815 = vmatpush1.msra.mxu0 0.0
    %2816 = vmatprep.subr.mxu0 0.0
    %2817 = vmatpush1.msra.mxu0 0.0
    %2818 = vmatprep.subr.mxu0 0.0
    %2819 = vmatpush1.msra.mxu0 0.0
    %2820 = vmatprep.subr.mxu0 0.0
    %2821 = vmatpush1.msra.mxu0 0.0
    %2822 = vmatprep.subr.mxu0 0.0
    %2823 = vmatpush1.msra.mxu0 0.0
    %2824 = vmatprep.subr.mxu0 0.0
    %2825 = vmatpush1.msra.mxu0 0.0
    %2826 = vmatprep.subr.mxu0 0.0
    %2827 = vmatpush1.msra.mxu0 0.0
    %2828 = vmatprep.subr.mxu0 0.0
    %2829 = vmatpush1.msra.mxu0 0.0
    %2830 = vmatprep.subr.mxu0 0.0
    %2831 = vmatpush1.msra.mxu0 0.0
    %2832 = vmatprep.subr.mxu0 0.0
    %2833 = vmatpush1.msra.mxu0 0.0
    %2834 = vmatprep.subr.mxu0 0.0
    %2835 = vmatpush1.msra.mxu0 0.0
    %2836 = vmatprep.subr.mxu0 0.0
    %2837 = vmatpush1.msra.mxu0 0.0
    %2838 = vmatprep.subr.mxu0 0.0
    %2839 = vmatpush1.msra.mxu0 0.0
    %2840 = vmatprep.subr.mxu0 0.0
    %2841 = vmatpush1.msra.mxu0 0.0
    %2842 = vmatprep.subr.mxu0 0.0
    %2843 = vmatpush1.msra.mxu0 0.0
    %2844 = vmatprep.subr.mxu0 0.0
    %2845 = vmatpush1.msra.mxu0 0.0
    %2846 = vmatprep.subr.mxu0 0.0
    %2847 = vmatpush1.msra.mxu0 0.0
    %2848 = vmatprep.subr.mxu0 0.0
    %2849 = vmatpush1.msra.mxu0 0.0
    %2850 = vmatprep.mubr.f32.mxu0 0.0
    %v2851 = vand.u32 %v944, 4294901760
    %2852 = vmatmul.mubr.f32.gmra.mrb[0].mxu0 %v2851
    %v2853 = vpop.f32.mrb[0].mxu0
    %v2854 = vadd.f32 %v2749, %v2853
    %v2855 = vpop.f32.mrb[0].mxu0
    %v2856 = vadd.f32 %v2751, %v2855
    %2857 = vmatprep.mubr.f32.mxu0 0.0
    %v2858 = vand.u32 %v947, 4294901760
    %2859 = vmatmul.mubr.f32.gmra.mrb[0].mxu0 %v2858
    %v2860 = vpop.f32.mrb[0].mxu0
    %v2861 = vadd.f32 %v2758, %v2860
    %v2862 = vpop.f32.mrb[0].mxu0
    %v2863 = vadd.f32 %v2760, %v2862
    %2864 = vmatprep.mubr.f32.mxu0 0.0
    %v2865 = vand.u32 %v950, 4294901760
    %2866 = vmatmul.mubr.f32.gmra.mrb[0].mxu0 %v2865
    %v2867 = vpop.f32.mrb[0].mxu0
    %v2868 = vadd.f32 %v2767, %v2867
    %v2869 = vpop.f32.mrb[0].mxu0
    %v2870 = vadd.f32 %v2769, %v2869
    %2871 = vmatprep.mubr.f32.mxu0 0.0
    %v2872 = vand.u32 %v953, 4294901760
    %2873 = vmatmul.mubr.f32.gmra.mrb[0].mxu0 %v2872
    %v2874 = vpop.f32.mrb[0].mxu0
    %v2875 = vadd.f32 %v2776, %v2874
    %v2876 = vpop.f32.mrb[0].mxu0
    %v2877 = vadd.f32 %v2778, %v2876
    %2878 = vdwg.mxu0
    %v2879 = vand.u32 %v2360, 4294901760
    %2880 = vmatprep.subr.mxu0 %v2879
    %v2881 = vand.u32 %v2357, 4294901760
    %2882 = vmatpush1.msra.mxu0 %v2881
    %2883 = vmatprep.subr.mxu0 0.0
    %2884 = vmatpush1.msra.mxu0 0.0
    %2885 = vmatprep.subr.mxu0 0.0
    %2886 = vmatpush1.msra.mxu0 0.0
    %2887 = vmatprep.subr.mxu0 0.0
    %2888 = vmatpush1.msra.mxu0 0.0
    %2889 = vmatprep.subr.mxu0 0.0
    %2890 = vmatpush1.msra.mxu0 0.0
    %2891 = vmatprep.subr.mxu0 0.0
    %2892 = vmatpush1.msra.mxu0 0.0
    %2893 = vmatprep.subr.mxu0 0.0
    %2894 = vmatpush1.msra.mxu0 0.0
    %2895 = vmatprep.subr.mxu0 0.0
    %2896 = vmatpush1.msra.mxu0 0.0
    %2897 = vmatprep.subr.mxu0 0.0
    %2898 = vmatpush1.msra.mxu0 0.0
    %2899 = vmatprep.subr.mxu0 0.0
    %2900 = vmatpush1.msra.mxu0 0.0
    %2901 = vmatprep.subr.mxu0 0.0
    %2902 = vmatpush1.msra.mxu0 0.0
    %2903 = vmatprep.subr.mxu0 0.0
    %2904 = vmatpush1.msra.mxu0 0.0
    %2905 = vmatprep.subr.mxu0 0.0
    %2906 = vmatpush1.msra.mxu0 0.0
    %2907 = vmatprep.subr.mxu0 0.0
    %2908 = vmatpush1.msra.mxu0 0.0
    %2909 = vmatprep.subr.mxu0 0.0
    %2910 = vmatpush1.msra.mxu0 0.0
    %2911 = vmatprep.subr.mxu0 0.0
    %2912 = vmatpush1.msra.mxu0 0.0
    %2913 = vmatprep.subr.mxu0 0.0
    %2914 = vmatpush1.msra.mxu0 0.0
    %2915 = vmatprep.subr.mxu0 0.0
    %2916 = vmatpush1.msra.mxu0 0.0
    %2917 = vmatprep.subr.mxu0 0.0
    %2918 = vmatpush1.msra.mxu0 0.0
    %2919 = vmatprep.subr.mxu0 0.0
    %2920 = vmatpush1.msra.mxu0 0.0
    %2921 = vmatprep.subr.mxu0 0.0
    %2922 = vmatpush1.msra.mxu0 0.0
    %2923 = vmatprep.subr.mxu0 0.0
    %2924 = vmatpush1.msra.mxu0 0.0
    %2925 = vmatprep.subr.mxu0 0.0
    %2926 = vmatpush1.msra.mxu0 0.0
    %2927 = vmatprep.subr.mxu0 0.0
    %2928 = vmatpush1.msra.mxu0 0.0
    %2929 = vmatprep.subr.mxu0 0.0
    %2930 = vmatpush1.msra.mxu0 0.0
    %2931 = vmatprep.subr.mxu0 0.0
    %2932 = vmatpush1.msra.mxu0 0.0
    %2933 = vmatprep.subr.mxu0 0.0
    %2934 = vmatpush1.msra.mxu0 0.0
    %2935 = vmatprep.subr.mxu0 0.0
    %2936 = vmatpush1.msra.mxu0 0.0
    %2937 = vmatprep.subr.mxu0 0.0
    %2938 = vmatpush1.msra.mxu0 0.0
    %2939 = vmatprep.subr.mxu0 0.0
    %2940 = vmatpush1.msra.mxu0 0.0
    %2941 = vmatprep.subr.mxu0 0.0
    %2942 = vmatpush1.msra.mxu0 0.0
    %2943 = vmatprep.subr.mxu0 0.0
    %2944 = vmatpush1.msra.mxu0 0.0
    %2945 = vmatprep.mubr.f32.mxu0 0.0
    %v2946 = vand.u32 %v944, 4294901760
    %2947 = vmatmul.mubr.f32.gmra.mrb[0].mxu0 %v2946
    %v2948 = vpop.f32.mrb[0].mxu0
    %v2949 = vadd.f32 %v2854, %v2948
    %v2950 = vpop.f32.mrb[0].mxu0
    %v2951 = vadd.f32 %v2856, %v2950
    %2952 = vmatprep.mubr.f32.mxu0 0.0
    %v2953 = vand.u32 %v947, 4294901760
    %2954 = vmatmul.mubr.f32.gmra.mrb[0].mxu0 %v2953
    %v2955 = vpop.f32.mrb[0].mxu0
    %v2956 = vadd.f32 %v2861, %v2955
    %v2957 = vpop.f32.mrb[0].mxu0
    %v2958 = vadd.f32 %v2863, %v2957
    %2959 = vmatprep.mubr.f32.mxu0 0.0
    %v2960 = vand.u32 %v950, 4294901760
    %2961 = vmatmul.mubr.f32.gmra.mrb[0].mxu0 %v2960
    %v2962 = vpop.f32.mrb[0].mxu0
    %v2963 = vadd.f32 %v2868, %v2962
    %v2964 = vpop.f32.mrb[0].mxu0
    %v2965 = vadd.f32 %v2870, %v2964
    %2966 = vmatprep.mubr.f32.mxu0 0.0
    %v2967 = vand.u32 %v953, 4294901760
    %2968 = vmatmul.mubr.f32.gmra.mrb[0].mxu0 %v2967
    %v2969 = vpop.f32.mrb[0].mxu0
    %v2970 = vadd.f32 %v2875, %v2969
    %v2971 = vpop.f32.mrb[0].mxu0
    %v2972 = vadd.f32 %v2877, %v2971
    %2973 = vdwg.mxu0
    %vm2974 = vcmp.gt.f32.partialorder %v1689, 0.0
    %vm2975 = vcmp.gt.f32.partialorder %v1702, 0.0
    %v2976 = vsel %vm2974, 1, 0
    %v2977 = vsel %vm2975, 1, 0
    %vm2978 = vcmp.eq.s32.totalorder %v2976, 1
    %vm2979 = vcmp.eq.s32.totalorder %v2977, 1
    %v2980 = vsel %vm2978, %v2949, 0.0
    %v2981 = vsel %vm2979, %v2951, 0.0
    %v2982 = vsel %vm2978, %v2956, 0.0
    %v2983 = vsel %vm2979, %v2958, 0.0
    %v2984 = vsel %vm2978, %v2963, 0.0
    %v2985 = vsel %vm2979, %v2965, 0.0
    %v2986 = vsel %vm2978, %v2970, 0.0
    %v2987 = vsel %vm2979, %v2972, 0.0
    %s2988 = scalar_lea.vmem [#allocation2], 16
    %2989 = vst [vmem:[%s2988] sm:$0xff] %v2980
    %2990 = vst [vmem:[%s2988 + $0x8] sm:$0xff] %v2981
    %2991 = vst [vmem:[%s2988 + $0x20] sm:$0xff] %v2982
    %2992 = vst [vmem:[%s2988 + $0x28] sm:$0xff] %v2983
    %2993 = vst [vmem:[%s2988 + $0x40] sm:$0xff] %v2984
    %2994 = vst [vmem:[%s2988 + $0x48] sm:$0xff] %v2985
    %2995 = vst [vmem:[%s2988 + $0x60] sm:$0xff] %v2986
    %2996 = vst [vmem:[%s2988 + $0x68] sm:$0xff] %v2987
    %s2997 = scalar_lea.vmem %s0, 64
    %v2998 = vld [vmem:[%s2997] sm:$0xff]
    %v2999 = vld [vmem:[%s2997 + $0x8] sm:$0xff]
    %v3000 = vld [vmem:[%s2997 + $0x10] sm:$0xff]
    %v3001 = vld [vmem:[%s2997 + $0x18] sm:$0xff]
    %v3002 = vld [vmem:[%s2997 + $0x20] sm:$0xff]
    %v3003 = vld [vmem:[%s2997 + $0x28] sm:$0xff]
    %v3004 = vld [vmem:[%s2997 + $0x30] sm:$0xff]
    %v3005 = vld [vmem:[%s2997 + $0x38] sm:$0xff]
    %s3006 = scalar_lea.vmem %s1, 8
    %v3007 = vld [vmem:[%s3006] sm:$0x3f]
    %v3008 = vsub.f32 %v2998, -1.0
    %v3009 = vsub.f32 %v2999, -1.0
    %v3010 = vsub.f32 %v3000, -1.0
    %v3011 = vsub.f32 %v3001, -1.0
    %v3012 = vsub.f32 %v3002, -1.0
    %v3013 = vsub.f32 %v3003, -1.0
    %v3014 = vsub.f32 %v3004, -1.0
    %v3015 = vsub.f32 %v3005, -1.0
    %v3016 = vmul.f32 %v3008, 4.0
    %v3017 = vmul.f32 %v3009, 4.0
    %v3018 = vmul.f32 %v3010, 4.0
    %v3019 = vmul.f32 %v3011, 4.0
    %v3020 = vmul.f32 %v3012, 4.0
    %v3021 = vmul.f32 %v3013, 4.0
    %v3022 = vmul.f32 %v3014, 4.0
    %v3023 = vmul.f32 %v3015, 4.0
    %v3024 = vcvt.f32.s32.to.zero.pseudo %v3016
    %v3025 = vcvt.f32.s32.to.zero.pseudo %v3017
    %v3026 = vcvt.f32.s32.to.zero.pseudo %v3018
    %v3027 = vcvt.f32.s32.to.zero.pseudo %v3019
    %v3028 = vcvt.f32.s32.to.zero.pseudo %v3020
    %v3029 = vcvt.f32.s32.to.zero.pseudo %v3021
    %v3030 = vcvt.f32.s32.to.zero.pseudo %v3022
    %v3031 = vcvt.f32.s32.to.zero.pseudo %v3023
    %vm3032 = vcmp.gt.s32.totalorder %v3024, 0
    %v3033 = vsel %vm3032, %v3024, 0
    %vm3034 = vcmp.gt.s32.totalorder %v3025, 0
    %v3035 = vsel %vm3034, %v3025, 0
    %vm3036 = vcmp.gt.s32.totalorder %v3026, 0
    %v3037 = vsel %vm3036, %v3026, 0
    %vm3038 = vcmp.gt.s32.totalorder %v3027, 0
    %v3039 = vsel %vm3038, %v3027, 0
    %vm3040 = vcmp.gt.s32.totalorder %v3028, 0
    %v3041 = vsel %vm3040, %v3028, 0
    %vm3042 = vcmp.gt.s32.totalorder %v3029, 0
    %v3043 = vsel %vm3042, %v3029, 0
    %vm3044 = vcmp.gt.s32.totalorder %v3030, 0
    %v3045 = vsel %vm3044, %v3030, 0
    %vm3046 = vcmp.gt.s32.totalorder %v3031, 0
    %v3047 = vsel %vm3046, %v3031, 0
    %vm3048 = vcmp.lt.s32.totalorder %v3033, 7
    %v3049 = vsel %vm3048, %v3033, 7
    %vm3050 = vcmp.lt.s32.totalorder %v3035, 7
    %v3051 = vsel %vm3050, %v3035, 7
    %vm3052 = vcmp.lt.s32.totalorder %v3037, 7
    %v3053 = vsel %vm3052, %v3037, 7
    %vm3054 = vcmp.lt.s32.totalorder %v3039, 7
    %v3055 = vsel %vm3054, %v3039, 7
    %vm3056 = vcmp.lt.s32.totalorder %v3041, 7
    %v3057 = vsel %vm3056, %v3041, 7
    %vm3058 = vcmp.lt.s32.totalorder %v3043, 7
    %v3059 = vsel %vm3058, %v3043, 7
    %vm3060 = vcmp.lt.s32.totalorder %v3045, 7
    %v3061 = vsel %vm3060, %v3045, 7
    %vm3062 = vcmp.lt.s32.totalorder %v3047, 7
    %v3063 = vsel %vm3062, %v3047, 7
    %v3064 = vmul.u32 %v3049, 64
    %v3065 = vmul.u32 %v3051, 64
    %v3066 = vmul.u32 %v3053, 64
    %v3067 = vmul.u32 %v3055, 64
    %v3068 = vmul.u32 %v3057, 64
    %v3069 = vmul.u32 %v3059, 64
    %v3070 = vmul.u32 %v3061, 64
    %v3071 = vmul.u32 %v3063, 64
    %v3072 = vmul.u32 %v3049, 8
    %v3073 = vmul.u32 %v3051, 8
    %v3074 = vmul.u32 %v3053, 8
    %v3075 = vmul.u32 %v3055, 8
    %v3076 = vmul.u32 %v3057, 8
    %v3077 = vmul.u32 %v3059, 8
    %v3078 = vmul.u32 %v3061, 8
    %v3079 = vmul.u32 %v3063, 8
    %3080 = vrot.lane.b32.xlu0 %v3072, 127
    %v3081 = vpop.permute.xlu0 %3080
    %3082 = vrot.lane.b32.xlu0 %v3073, 127
    %v3083 = vpop.permute.xlu0 %3082
    %3084 = vrot.lane.b32.xlu0 %v3074, 127
    %v3085 = vpop.permute.xlu0 %3084
    %3086 = vrot.lane.b32.xlu0 %v3075, 127
    %v3087 = vpop.permute.xlu0 %3086
    %3088 = vrot.lane.b32.xlu0 %v3076, 127
    %v3089 = vpop.permute.xlu0 %3088
    %3090 = vrot.lane.b32.xlu0 %v3077, 127
    %v3091 = vpop.permute.xlu0 %3090
    %3092 = vrot.lane.b32.xlu0 %v3078, 127
    %v3093 = vpop.permute.xlu0 %3092
    %3094 = vrot.lane.b32.xlu0 %v3079, 127
    %v3095 = vpop.permute.xlu0 %3094
    %v3096 = vadd.s32 %v3064, %v3081
    %v3097 = vadd.s32 %v3065, %v3083
    %v3098 = vadd.s32 %v3066, %v3085
    %v3099 = vadd.s32 %v3067, %v3087
    %v3100 = vadd.s32 %v3068, %v3089
    %v3101 = vadd.s32 %v3069, %v3091
    %v3102 = vadd.s32 %v3070, %v3093
    %v3103 = vadd.s32 %v3071, %v3095
    %3104 = vrot.lane.b32.xlu0 %v3049, 126
    %v3105 = vpop.permute.xlu0 %3104
    %3106 = vrot.lane.b32.xlu0 %v3051, 126
    %v3107 = vpop.permute.xlu0 %3106
    %3108 = vrot.lane.b32.xlu0 %v3053, 126
    %v3109 = vpop.permute.xlu0 %3108
    %3110 = vrot.lane.b32.xlu0 %v3055, 126
    %v3111 = vpop.permute.xlu0 %3110
    %3112 = vrot.lane.b32.xlu0 %v3057, 126
    %v3113 = vpop.permute.xlu0 %3112
    %3114 = vrot.lane.b32.xlu0 %v3059, 126
    %v3115 = vpop.permute.xlu0 %3114
    %3116 = vrot.lane.b32.xlu0 %v3061, 126
    %v3117 = vpop.permute.xlu0 %3116
    %3118 = vrot.lane.b32.xlu0 %v3063, 126
    %v3119 = vpop.permute.xlu0 %3118
    %v3120 = vadd.s32 %v3096, %v3105
    %v3121 = vadd.s32 %v3097, %v3107
    %v3122 = vadd.s32 %v3098, %v3109
    %v3123 = vadd.s32 %v3099, %v3111
    %v3124 = vadd.s32 %v3100, %v3113
    %v3125 = vadd.s32 %v3101, %v3115
    %v3126 = vadd.s32 %v3102, %v3117
    %v3127 = vadd.s32 %v3103, %v3119
    %v3128 = vsub.s32 %v3120, %v158
    %v3129 = vsub.s32 %v3121, %v158
    %v3130 = vsub.s32 %v3122, %v158
    %v3131 = vsub.s32 %v3123, %v158
    %v3132 = vsub.s32 %v3124, %v158
    %v3133 = vsub.s32 %v3125, %v158
    %v3134 = vsub.s32 %v3126, %v158
    %v3135 = vsub.s32 %v3127, %v158
    %3136 = vset.pattern.permute.xlu0 3
    %3137 = vperm.xlu0 %3136, %v3128
    %v3138 = vpop.permute.xlu0 %3137
    %3139 = vset.pattern.permute.xlu0 3
    %3140 = vperm.xlu0 %3139, %v3129
    %v3141 = vpop.permute.xlu0 %3140
    %3142 = vset.pattern.permute.xlu0 3
    %3143 = vperm.xlu0 %3142, %v3130
    %v3144 = vpop.permute.xlu0 %3143
    %3145 = vset.pattern.permute.xlu0 3
    %3146 = vperm.xlu0 %3145, %v3131
    %v3147 = vpop.permute.xlu0 %3146
    %3148 = vset.pattern.permute.xlu0 3
    %3149 = vperm.xlu0 %3148, %v3132
    %v3150 = vpop.permute.xlu0 %3149
    %3151 = vset.pattern.permute.xlu0 3
    %3152 = vperm.xlu0 %3151, %v3133
    %v3153 = vpop.permute.xlu0 %3152
    %3154 = vset.pattern.permute.xlu0 3
    %3155 = vperm.xlu0 %3154, %v3134
    %v3156 = vpop.permute.xlu0 %3155
    %3157 = vset.pattern.permute.xlu0 3
    %3158 = vperm.xlu0 %3157, %v3135
    %v3159 = vpop.permute.xlu0 %3158
    %vm3160 = vcmp.eq.s32.totalorder %v27, %v3138
    %vm3161 = vcmp.eq.s32.totalorder %v28, %v3138
    %vm3162 = vcmp.eq.s32.totalorder %v27, %v3141
    %vm3163 = vcmp.eq.s32.totalorder %v28, %v3141
    %vm3164 = vcmp.eq.s32.totalorder %v27, %v3144
    %vm3165 = vcmp.eq.s32.totalorder %v28, %v3144
    %vm3166 = vcmp.eq.s32.totalorder %v27, %v3147
    %vm3167 = vcmp.eq.s32.totalorder %v28, %v3147
    %vm3168 = vcmp.eq.s32.totalorder %v27, %v3150
    %vm3169 = vcmp.eq.s32.totalorder %v28, %v3150
    %vm3170 = vcmp.eq.s32.totalorder %v27, %v3153
    %vm3171 = vcmp.eq.s32.totalorder %v28, %v3153
    %vm3172 = vcmp.eq.s32.totalorder %v27, %v3156
    %vm3173 = vcmp.eq.s32.totalorder %v28, %v3156
    %vm3174 = vcmp.eq.s32.totalorder %v27, %v3159
    %vm3175 = vcmp.eq.s32.totalorder %v28, %v3159
    %v3176 = vsel %vm3160, 1, 0
    %v3177 = vsel %vm3161, 1, 0
    %v3178 = vsel %vm3162, 1, 0
    %v3179 = vsel %vm3163, 1, 0
    %v3180 = vsel %vm3164, 1, 0
    %v3181 = vsel %vm3165, 1, 0
    %v3182 = vsel %vm3166, 1, 0
    %v3183 = vsel %vm3167, 1, 0
    %v3184 = vsel %vm3168, 1, 0
    %v3185 = vsel %vm3169, 1, 0
    %v3186 = vsel %vm3170, 1, 0
    %v3187 = vsel %vm3171, 1, 0
    %v3188 = vsel %vm3172, 1, 0
    %v3189 = vsel %vm3173, 1, 0
    %v3190 = vsel %vm3174, 1, 0
    %v3191 = vsel %vm3175, 1, 0
    %v3192 = vcvt.s32.f32 %v3176
    %v3193 = vcvt.s32.f32 %v3177
    %v3194 = vcvt.s32.f32 %v3178
    %v3195 = vcvt.s32.f32 %v3179
    %v3196 = vcvt.s32.f32 %v3180
    %v3197 = vcvt.s32.f32 %v3181
    %v3198 = vcvt.s32.f32 %v3182
    %v3199 = vcvt.s32.f32 %v3183
    %v3200 = vcvt.s32.f32 %v3184
    %v3201 = vcvt.s32.f32 %v3185
    %v3202 = vcvt.s32.f32 %v3186
    %v3203 = vcvt.s32.f32 %v3187
    %v3204 = vcvt.s32.f32 %v3188
    %v3205 = vcvt.s32.f32 %v3189
    %v3206 = vcvt.s32.f32 %v3190
    %v3207 = vcvt.s32.f32 %v3191
    %v3208 = vadd.f32 %v3192, %v3194
    %v3209 = vadd.f32 %v3208, %v3196
    %v3210 = vadd.f32 %v3209, %v3198
    %v3211 = vadd.f32 %v3210, %v3200
    %v3212 = vadd.f32 %v3211, %v3202
    %v3213 = vadd.f32 %v3212, %v3204
    %v3214 = vadd.f32 %v3213, %v3206
    %v3215 = vrot.slane %v3214, 4
    %v3216 = vadd.f32 %v3214, %v3215
    %v3217 = vrot.slane %v3216, 2
    %v3218 = vadd.f32 %v3216, %v3217
    %v3219 = vrot.slane %v3218, 1
    %v3220 = vadd.f32 %v3218, %v3219
    %v3221 = vadd.f32 %v3193, %v3195
    %v3222 = vadd.f32 %v3221, %v3197
    %v3223 = vadd.f32 %v3222, %v3199
    %v3224 = vadd.f32 %v3223, %v3201
    %v3225 = vadd.f32 %v3224, %v3203
    %v3226 = vadd.f32 %v3225, %v3205
    %v3227 = vadd.f32 %v3226, %v3207
    %v3228 = vrot.slane %v3227, 4
    %v3229 = vadd.f32 %v3227, %v3228
    %v3230 = vrot.slane %v3229, 2
    %v3231 = vadd.f32 %v3229, %v3230
    %v3232 = vrot.slane %v3231, 1
    %v3233 = vadd.f32 %v3231, %v3232
    %v3235 = vsel %vm265, %v3007, 0
    %v3237 = vand.u32 %v3193, 4294901760
    %3238 = vmatprep.subr.mxu0 %v3237
    %v3239 = vand.u32 %v3192, 4294901760
    %3240 = vmatpush1.msra.mxu0 %v3239
    %v3241 = vand.u32 %v3195, 4294901760
    %3242 = vmatprep.subr.mxu0 %v3241
    %v3243 = vand.u32 %v3194, 4294901760
    %3244 = vmatpush1.msra.mxu0 %v3243
    %v3245 = vand.u32 %v3197, 4294901760
    %3246 = vmatprep.subr.mxu0 %v3245
    %v3247 = vand.u32 %v3196, 4294901760
    %3248 = vmatpush1.msra.mxu0 %v3247
    %v3249 = vand.u32 %v3199, 4294901760
    %3250 = vmatprep.subr.mxu0 %v3249
    %v3251 = vand.u32 %v3198, 4294901760
    %3252 = vmatpush1.msra.mxu0 %v3251
    %v3253 = vand.u32 %v3201, 4294901760
    %3254 = vmatprep.subr.mxu0 %v3253
    %v3255 = vand.u32 %v3200, 4294901760
    %3256 = vmatpush1.msra.mxu0 %v3255
    %v3257 = vand.u32 %v3203, 4294901760
    %3258 = vmatprep.subr.mxu0 %v3257
    %v3259 = vand.u32 %v3202, 4294901760
    %3260 = vmatpush1.msra.mxu0 %v3259
    %v3261 = vand.u32 %v3205, 4294901760
    %3262 = vmatprep.subr.mxu0 %v3261
    %v3263 = vand.u32 %v3204, 4294901760
    %3264 = vmatpush1.msra.mxu0 %v3263
    %v3265 = vand.u32 %v3207, 4294901760
    %3266 = vmatprep.subr.mxu0 %v3265
    %v3267 = vand.u32 %v3206, 4294901760
    %3268 = vmatpush1.msra.mxu0 %v3267
    %3269 = vmatprep.subr.mxu0 0.0
    %3270 = vmatpush1.msra.mxu0 0.0
    %3271 = vmatprep.subr.mxu0 0.0
    %3272 = vmatpush1.msra.mxu0 0.0
    %3273 = vmatprep.subr.mxu0 0.0
    %3274 = vmatpush1.msra.mxu0 0.0
    %3275 = vmatprep.subr.mxu0 0.0
    %3276 = vmatpush1.msra.mxu0 0.0
    %3277 = vmatprep.subr.mxu0 0.0
    %3278 = vmatpush1.msra.mxu0 0.0
    %3279 = vmatprep.subr.mxu0 0.0
    %3280 = vmatpush1.msra.mxu0 0.0
    %3281 = vmatprep.subr.mxu0 0.0
    %3282 = vmatpush1.msra.mxu0 0.0
    %3283 = vmatprep.subr.mxu0 0.0
    %3284 = vmatpush1.msra.mxu0 0.0
    %3285 = vmatprep.subr.mxu0 0.0
    %3286 = vmatpush1.msra.mxu0 0.0
    %3287 = vmatprep.subr.mxu0 0.0
    %3288 = vmatpush1.msra.mxu0 0.0
    %3289 = vmatprep.subr.mxu0 0.0
    %3290 = vmatpush1.msra.mxu0 0.0
    %3291 = vmatprep.subr.mxu0 0.0
    %3292 = vmatpush1.msra.mxu0 0.0
    %3293 = vmatprep.subr.mxu0 0.0
    %3294 = vmatpush1.msra.mxu0 0.0
    %3295 = vmatprep.subr.mxu0 0.0
    %3296 = vmatpush1.msra.mxu0 0.0
    %3297 = vmatprep.subr.mxu0 0.0
    %3298 = vmatpush1.msra.mxu0 0.0
    %3299 = vmatprep.subr.mxu0 0.0
    %3300 = vmatpush1.msra.mxu0 0.0
    %3301 = vmatprep.subr.mxu0 0.0
    %3302 = vmatpush1.msra.mxu0 0.0
    %3303 = vmatprep.subr.mxu0 0.0
    %3304 = vmatpush1.msra.mxu0 0.0
    %3305 = vmatprep.subr.mxu0 0.0
    %3306 = vmatpush1.msra.mxu0 0.0
    %3307 = vmatprep.subr.mxu0 0.0
    %3308 = vmatpush1.msra.mxu0 0.0
    %3309 = vmatprep.subr.mxu0 0.0
    %3310 = vmatpush1.msra.mxu0 0.0
    %3311 = vmatprep.subr.mxu0 0.0
    %3312 = vmatpush1.msra.mxu0 0.0
    %3313 = vmatprep.subr.mxu0 0.0
    %3314 = vmatpush1.msra.mxu0 0.0
    %3315 = vmatprep.subr.mxu0 0.0
    %3316 = vmatpush1.msra.mxu0 0.0
    %3317 = vmatprep.mubr.f32.mxu0 0.0
    %v3318 = vand.u32 %v3235, 4294901760
    %v3319 = vsub.f32 %v3235, %v3318
    %v3320 = vand.u32 %v3319, 4294901760
    %v3321 = vsub.f32 %v3319, %v3320
    %v3322 = vand.u32 %v3321, 4294901760
    %3323 = vmatmul.mubr.f32.gmra.mrb[0].mxu0 %v3322
    %v3324 = vpop.f32.mrb[0].mxu0
    %v3325 = vadd.f32 0.0, %v3324
    %v3326 = vpop.f32.mrb[0].mxu0
    %v3327 = vadd.f32 0.0, %v3326
    %3328 = vdwg.mxu0
    %v3329 = vand.u32 %v3193, 4294901760
    %v3330 = vsub.f32 %v3193, %v3329
    %v3331 = vand.u32 %v3330, 4294901760
    %v3332 = vsub.f32 %v3330, %v3331
    %v3333 = vand.u32 %v3332, 4294901760
    %3334 = vmatprep.subr.mxu0 %v3333
    %v3335 = vand.u32 %v3192, 4294901760
    %v3336 = vsub.f32 %v3192, %v3335
    %v3337 = vand.u32 %v3336, 4294901760
    %v3338 = vsub.f32 %v3336, %v3337
    %v3339 = vand.u32 %v3338, 4294901760
    %3340 = vmatpush1.msra.mxu0 %v3339
    %v3341 = vand.u32 %v3195, 4294901760
    %v3342 = vsub.f32 %v3195, %v3341
    %v3343 = vand.u32 %v3342, 4294901760
    %v3344 = vsub.f32 %v3342, %v3343
    %v3345 = vand.u32 %v3344, 4294901760
    %3346 = vmatprep.subr.mxu0 %v3345
    %v3347 = vand.u32 %v3194, 4294901760
    %v3348 = vsub.f32 %v3194, %v3347
    %v3349 = vand.u32 %v3348, 4294901760
    %v3350 = vsub.f32 %v3348, %v3349
    %v3351 = vand.u32 %v3350, 4294901760
    %3352 = vmatpush1.msra.mxu0 %v3351
    %v3353 = vand.u32 %v3197, 4294901760
    %v3354 = vsub.f32 %v3197, %v3353
    %v3355 = vand.u32 %v3354, 4294901760
    %v3356 = vsub.f32 %v3354, %v3355
    %v3357 = vand.u32 %v3356, 4294901760
    %3358 = vmatprep.subr.mxu0 %v3357
    %v3359 = vand.u32 %v3196, 4294901760
    %v3360 = vsub.f32 %v3196, %v3359
    %v3361 = vand.u32 %v3360, 4294901760
    %v3362 = vsub.f32 %v3360, %v3361
    %v3363 = vand.u32 %v3362, 4294901760
    %3364 = vmatpush1.msra.mxu0 %v3363
    %v3365 = vand.u32 %v3199, 4294901760
    %v3366 = vsub.f32 %v3199, %v3365
    %v3367 = vand.u32 %v3366, 4294901760
    %v3368 = vsub.f32 %v3366, %v3367
    %v3369 = vand.u32 %v3368, 4294901760
    %3370 = vmatprep.subr.mxu0 %v3369
    %v3371 = vand.u32 %v3198, 4294901760
    %v3372 = vsub.f32 %v3198, %v3371
    %v3373 = vand.u32 %v3372, 4294901760
    %v3374 = vsub.f32 %v3372, %v3373
    %v3375 = vand.u32 %v3374, 4294901760
    %3376 = vmatpush1.msra.mxu0 %v3375
    %v3377 = vand.u32 %v3201, 4294901760
    %v3378 = vsub.f32 %v3201, %v3377
    %v3379 = vand.u32 %v3378, 4294901760
    %v3380 = vsub.f32 %v3378, %v3379
    %v3381 = vand.u32 %v3380, 4294901760
    %3382 = vmatprep.subr.mxu0 %v3381
    %v3383 = vand.u32 %v3200, 4294901760
    %v3384 = vsub.f32 %v3200, %v3383
    %v3385 = vand.u32 %v3384, 4294901760
    %v3386 = vsub.f32 %v3384, %v3385
    %v3387 = vand.u32 %v3386, 4294901760
    %3388 = vmatpush1.msra.mxu0 %v3387
    %v3389 = vand.u32 %v3203, 4294901760
    %v3390 = vsub.f32 %v3203, %v3389
    %v3391 = vand.u32 %v3390, 4294901760
    %v3392 = vsub.f32 %v3390, %v3391
    %v3393 = vand.u32 %v3392, 4294901760
    %3394 = vmatprep.subr.mxu0 %v3393
    %v3395 = vand.u32 %v3202, 4294901760
    %v3396 = vsub.f32 %v3202, %v3395
    %v3397 = vand.u32 %v3396, 4294901760
    %v3398 = vsub.f32 %v3396, %v3397
    %v3399 = vand.u32 %v3398, 4294901760
    %3400 = vmatpush1.msra.mxu0 %v3399
    %v3401 = vand.u32 %v3205, 4294901760
    %v3402 = vsub.f32 %v3205, %v3401
    %v3403 = vand.u32 %v3402, 4294901760
    %v3404 = vsub.f32 %v3402, %v3403
    %v3405 = vand.u32 %v3404, 4294901760
    %3406 = vmatprep.subr.mxu0 %v3405
    %v3407 = vand.u32 %v3204, 4294901760
    %v3408 = vsub.f32 %v3204, %v3407
    %v3409 = vand.u32 %v3408, 4294901760
    %v3410 = vsub.f32 %v3408, %v3409
    %v3411 = vand.u32 %v3410, 4294901760
    %3412 = vmatpush1.msra.mxu0 %v3411
    %v3413 = vand.u32 %v3207, 4294901760
    %v3414 = vsub.f32 %v3207, %v3413
    %v3415 = vand.u32 %v3414, 4294901760
    %v3416 = vsub.f32 %v3414, %v3415
    %v3417 = vand.u32 %v3416, 4294901760
    %3418 = vmatprep.subr.mxu0 %v3417
    %v3419 = vand.u32 %v3206, 4294901760
    %v3420 = vsub.f32 %v3206, %v3419
    %v3421 = vand.u32 %v3420, 4294901760
    %v3422 = vsub.f32 %v3420, %v3421
    %v3423 = vand.u32 %v3422, 4294901760
    %3424 = vmatpush1.msra.mxu0 %v3423
    %3425 = vmatprep.subr.mxu0 0.0
    %3426 = vmatpush1.msra.mxu0 0.0
    %3427 = vmatprep.subr.mxu0 0.0
    %3428 = vmatpush1.msra.mxu0 0.0
    %3429 = vmatprep.subr.mxu0 0.0
    %3430 = vmatpush1.msra.mxu0 0.0
    %3431 = vmatprep.subr.mxu0 0.0
    %3432 = vmatpush1.msra.mxu0 0.0
    %3433 = vmatprep.subr.mxu0 0.0
    %3434 = vmatpush1.msra.mxu0 0.0
    %3435 = vmatprep.subr.mxu0 0.0
    %3436 = vmatpush1.msra.mxu0 0.0
    %3437 = vmatprep.subr.mxu0 0.0
    %3438 = vmatpush1.msra.mxu0 0.0
    %3439 = vmatprep.subr.mxu0 0.0
    %3440 = vmatpush1.msra.mxu0 0.0
    %3441 = vmatprep.subr.mxu0 0.0
    %3442 = vmatpush1.msra.mxu0 0.0
    %3443 = vmatprep.subr.mxu0 0.0
    %3444 = vmatpush1.msra.mxu0 0.0
    %3445 = vmatprep.subr.mxu0 0.0
    %3446 = vmatpush1.msra.mxu0 0.0
    %3447 = vmatprep.subr.mxu0 0.0
    %3448 = vmatpush1.msra.mxu0 0.0
    %3449 = vmatprep.subr.mxu0 0.0
    %3450 = vmatpush1.msra.mxu0 0.0
    %3451 = vmatprep.subr.mxu0 0.0
    %3452 = vmatpush1.msra.mxu0 0.0
    %3453 = vmatprep.subr.mxu0 0.0
    %3454 = vmatpush1.msra.mxu0 0.0
    %3455 = vmatprep.subr.mxu0 0.0
    %3456 = vmatpush1.msra.mxu0 0.0
    %3457 = vmatprep.subr.mxu0 0.0
    %3458 = vmatpush1.msra.mxu0 0.0
    %3459 = vmatprep.subr.mxu0 0.0
    %3460 = vmatpush1.msra.mxu0 0.0
    %3461 = vmatprep.subr.mxu0 0.0
    %3462 = vmatpush1.msra.mxu0 0.0
    %3463 = vmatprep.subr.mxu0 0.0
    %3464 = vmatpush1.msra.mxu0 0.0
    %3465 = vmatprep.subr.mxu0 0.0
    %3466 = vmatpush1.msra.mxu0 0.0
    %3467 = vmatprep.subr.mxu0 0.0
    %3468 = vmatpush1.msra.mxu0 0.0
    %3469 = vmatprep.subr.mxu0 0.0
    %3470 = vmatpush1.msra.mxu0 0.0
    %3471 = vmatprep.subr.mxu0 0.0
    %3472 = vmatpush1.msra.mxu0 0.0
    %3473 = vmatprep.mubr.f32.mxu0 0.0
    %v3474 = vand.u32 %v3235, 4294901760
    %3475 = vmatmul.mubr.f32.gmra.mrb[0].mxu0 %v3474
    %v3476 = vpop.f32.mrb[0].mxu0
    %v3477 = vadd.f32 %v3325, %v3476
    %v3478 = vpop.f32.mrb[0].mxu0
    %v3479 = vadd.f32 %v3327, %v3478
    %3480 = vdwg.mxu0
    %v3481 = vand.u32 %v3193, 4294901760
    %v3482 = vsub.f32 %v3193, %v3481
    %3483 = vmatprep.subr.mxu0 %v3482
    %v3484 = vand.u32 %v3192, 4294901760
    %v3485 = vsub.f32 %v3192, %v3484
    %3486 = vmatpush1.msra.mxu0 %v3485
    %v3487 = vand.u32 %v3195, 4294901760
    %v3488 = vsub.f32 %v3195, %v3487
    %3489 = vmatprep.subr.mxu0 %v3488
    %v3490 = vand.u32 %v3194, 4294901760
    %v3491 = vsub.f32 %v3194, %v3490
    %3492 = vmatpush1.msra.mxu0 %v3491
    %v3493 = vand.u32 %v3197, 4294901760
    %v3494 = vsub.f32 %v3197, %v3493
    %3495 = vmatprep.subr.mxu0 %v3494
    %v3496 = vand.u32 %v3196, 4294901760
    %v3497 = vsub.f32 %v3196, %v3496
    %3498 = vmatpush1.msra.mxu0 %v3497
    %v3499 = vand.u32 %v3199, 4294901760
    %v3500 = vsub.f32 %v3199, %v3499
    %3501 = vmatprep.subr.mxu0 %v3500
    %v3502 = vand.u32 %v3198, 4294901760
    %v3503 = vsub.f32 %v3198, %v3502
    %3504 = vmatpush1.msra.mxu0 %v3503
    %v3505 = vand.u32 %v3201, 4294901760
    %v3506 = vsub.f32 %v3201, %v3505
    %3507 = vmatprep.subr.mxu0 %v3506
    %v3508 = vand.u32 %v3200, 4294901760
    %v3509 = vsub.f32 %v3200, %v3508
    %3510 = vmatpush1.msra.mxu0 %v3509
    %v3511 = vand.u32 %v3203, 4294901760
    %v3512 = vsub.f32 %v3203, %v3511
    %3513 = vmatprep.subr.mxu0 %v3512
    %v3514 = vand.u32 %v3202, 4294901760
    %v3515 = vsub.f32 %v3202, %v3514
    %3516 = vmatpush1.msra.mxu0 %v3515
    %v3517 = vand.u32 %v3205, 4294901760
    %v3518 = vsub.f32 %v3205, %v3517
    %3519 = vmatprep.subr.mxu0 %v3518
    %v3520 = vand.u32 %v3204, 4294901760
    %v3521 = vsub.f32 %v3204, %v3520
    %3522 = vmatpush1.msra.mxu0 %v3521
    %v3523 = vand.u32 %v3207, 4294901760
    %v3524 = vsub.f32 %v3207, %v3523
    %3525 = vmatprep.subr.mxu0 %v3524
    %v3526 = vand.u32 %v3206, 4294901760
    %v3527 = vsub.f32 %v3206, %v3526
    %3528 = vmatpush1.msra.mxu0 %v3527
    %3529 = vmatprep.subr.mxu0 0.0
    %3530 = vmatpush1.msra.mxu0 0.0
    %3531 = vmatprep.subr.mxu0 0.0
    %3532 = vmatpush1.msra.mxu0 0.0
    %3533 = vmatprep.subr.mxu0 0.0
    %3534 = vmatpush1.msra.mxu0 0.0
    %3535 = vmatprep.subr.mxu0 0.0
    %3536 = vmatpush1.msra.mxu0 0.0
    %3537 = vmatprep.subr.mxu0 0.0
    %3538 = vmatpush1.msra.mxu0 0.0
    %3539 = vmatprep.subr.mxu0 0.0
    %3540 = vmatpush1.msra.mxu0 0.0
    %3541 = vmatprep.subr.mxu0 0.0
    %3542 = vmatpush1.msra.mxu0 0.0
    %3543 = vmatprep.subr.mxu0 0.0
    %3544 = vmatpush1.msra.mxu0 0.0
    %3545 = vmatprep.subr.mxu0 0.0
    %3546 = vmatpush1.msra.mxu0 0.0
    %3547 = vmatprep.subr.mxu0 0.0
    %3548 = vmatpush1.msra.mxu0 0.0
    %3549 = vmatprep.subr.mxu0 0.0
    %3550 = vmatpush1.msra.mxu0 0.0
    %3551 = vmatprep.subr.mxu0 0.0
    %3552 = vmatpush1.msra.mxu0 0.0
    %3553 = vmatprep.subr.mxu0 0.0
    %3554 = vmatpush1.msra.mxu0 0.0
    %3555 = vmatprep.subr.mxu0 0.0
    %3556 = vmatpush1.msra.mxu0 0.0
    %3557 = vmatprep.subr.mxu0 0.0
    %3558 = vmatpush1.msra.mxu0 0.0
    %3559 = vmatprep.subr.mxu0 0.0
    %3560 = vmatpush1.msra.mxu0 0.0
    %3561 = vmatprep.subr.mxu0 0.0
    %3562 = vmatpush1.msra.mxu0 0.0
    %3563 = vmatprep.subr.mxu0 0.0
    %3564 = vmatpush1.msra.mxu0 0.0
    %3565 = vmatprep.subr.mxu0 0.0
    %3566 = vmatpush1.msra.mxu0 0.0
    %3567 = vmatprep.subr.mxu0 0.0
    %3568 = vmatpush1.msra.mxu0 0.0
    %3569 = vmatprep.subr.mxu0 0.0
    %3570 = vmatpush1.msra.mxu0 0.0
    %3571 = vmatprep.subr.mxu0 0.0
    %3572 = vmatpush1.msra.mxu0 0.0
    %3573 = vmatprep.subr.mxu0 0.0
    %3574 = vmatpush1.msra.mxu0 0.0
    %3575 = vmatprep.subr.mxu0 0.0
    %3576 = vmatpush1.msra.mxu0 0.0
    %3577 = vmatprep.mubr.f32.mxu0 0.0
    %v3578 = vand.u32 %v3235, 4294901760
    %v3579 = vsub.f32 %v3235, %v3578
    %3580 = vmatmul.mubr.f32.gmra.mrb[0].mxu0 %v3579
    %v3581 = vpop.f32.mrb[0].mxu0
    %v3582 = vadd.f32 %v3477, %v3581
    %v3583 = vpop.f32.mrb[0].mxu0
    %v3584 = vadd.f32 %v3479, %v3583
    %3585 = vdwg.mxu0
    %v3586 = vand.u32 %v3193, 4294901760
    %3587 = vmatprep.subr.mxu0 %v3586
    %v3588 = vand.u32 %v3192, 4294901760
    %3589 = vmatpush1.msra.mxu0 %v3588
    %v3590 = vand.u32 %v3195, 4294901760
    %3591 = vmatprep.subr.mxu0 %v3590
    %v3592 = vand.u32 %v3194, 4294901760
    %3593 = vmatpush1.msra.mxu0 %v3592
    %v3594 = vand.u32 %v3197, 4294901760
    %3595 = vmatprep.subr.mxu0 %v3594
    %v3596 = vand.u32 %v3196, 4294901760
    %3597 = vmatpush1.msra.mxu0 %v3596
    %v3598 = vand.u32 %v3199, 4294901760
    %3599 = vmatprep.subr.mxu0 %v3598
    %v3600 = vand.u32 %v3198, 4294901760
    %3601 = vmatpush1.msra.mxu0 %v3600
    %v3602 = vand.u32 %v3201, 4294901760
    %3603 = vmatprep.subr.mxu0 %v3602
    %v3604 = vand.u32 %v3200, 4294901760
    %3605 = vmatpush1.msra.mxu0 %v3604
    %v3606 = vand.u32 %v3203, 4294901760
    %3607 = vmatprep.subr.mxu0 %v3606
    %v3608 = vand.u32 %v3202, 4294901760
    %3609 = vmatpush1.msra.mxu0 %v3608
    %v3610 = vand.u32 %v3205, 4294901760
    %3611 = vmatprep.subr.mxu0 %v3610
    %v3612 = vand.u32 %v3204, 4294901760
    %3613 = vmatpush1.msra.mxu0 %v3612
    %v3614 = vand.u32 %v3207, 4294901760
    %3615 = vmatprep.subr.mxu0 %v3614
    %v3616 = vand.u32 %v3206, 4294901760
    %3617 = vmatpush1.msra.mxu0 %v3616
    %3618 = vmatprep.subr.mxu0 0.0
    %3619 = vmatpush1.msra.mxu0 0.0
    %3620 = vmatprep.subr.mxu0 0.0
    %3621 = vmatpush1.msra.mxu0 0.0
    %3622 = vmatprep.subr.mxu0 0.0
    %3623 = vmatpush1.msra.mxu0 0.0
    %3624 = vmatprep.subr.mxu0 0.0
    %3625 = vmatpush1.msra.mxu0 0.0
    %3626 = vmatprep.subr.mxu0 0.0
    %3627 = vmatpush1.msra.mxu0 0.0
    %3628 = vmatprep.subr.mxu0 0.0
    %3629 = vmatpush1.msra.mxu0 0.0
    %3630 = vmatprep.subr.mxu0 0.0
    %3631 = vmatpush1.msra.mxu0 0.0
    %3632 = vmatprep.subr.mxu0 0.0
    %3633 = vmatpush1.msra.mxu0 0.0
    %3634 = vmatprep.subr.mxu0 0.0
    %3635 = vmatpush1.msra.mxu0 0.0
    %3636 = vmatprep.subr.mxu0 0.0
    %3637 = vmatpush1.msra.mxu0 0.0
    %3638 = vmatprep.subr.mxu0 0.0
    %3639 = vmatpush1.msra.mxu0 0.0
    %3640 = vmatprep.subr.mxu0 0.0
    %3641 = vmatpush1.msra.mxu0 0.0
    %3642 = vmatprep.subr.mxu0 0.0
    %3643 = vmatpush1.msra.mxu0 0.0
    %3644 = vmatprep.subr.mxu0 0.0
    %3645 = vmatpush1.msra.mxu0 0.0
    %3646 = vmatprep.subr.mxu0 0.0
    %3647 = vmatpush1.msra.mxu0 0.0
    %3648 = vmatprep.subr.mxu0 0.0
    %3649 = vmatpush1.msra.mxu0 0.0
    %3650 = vmatprep.subr.mxu0 0.0
    %3651 = vmatpush1.msra.mxu0 0.0
    %3652 = vmatprep.subr.mxu0 0.0
    %3653 = vmatpush1.msra.mxu0 0.0
    %3654 = vmatprep.subr.mxu0 0.0
    %3655 = vmatpush1.msra.mxu0 0.0
    %3656 = vmatprep.subr.mxu0 0.0
    %3657 = vmatpush1.msra.mxu0 0.0
    %3658 = vmatprep.subr.mxu0 0.0
    %3659 = vmatpush1.msra.mxu0 0.0
    %3660 = vmatprep.subr.mxu0 0.0
    %3661 = vmatpush1.msra.mxu0 0.0
    %3662 = vmatprep.subr.mxu0 0.0
    %3663 = vmatpush1.msra.mxu0 0.0
    %3664 = vmatprep.subr.mxu0 0.0
    %3665 = vmatpush1.msra.mxu0 0.0
    %3666 = vmatprep.mubr.f32.mxu0 0.0
    %v3667 = vand.u32 %v3235, 4294901760
    %v3668 = vsub.f32 %v3235, %v3667
    %v3669 = vand.u32 %v3668, 4294901760
    %3670 = vmatmul.mubr.f32.gmra.mrb[0].mxu0 %v3669
    %v3671 = vpop.f32.mrb[0].mxu0
    %v3672 = vadd.f32 %v3582, %v3671
    %v3673 = vpop.f32.mrb[0].mxu0
    %v3674 = vadd.f32 %v3584, %v3673
    %3675 = vdwg.mxu0
    %v3676 = vand.u32 %v3193, 4294901760
    %v3677 = vsub.f32 %v3193, %v3676
    %v3678 = vand.u32 %v3677, 4294901760
    %3679 = vmatprep.subr.mxu0 %v3678
    %v3680 = vand.u32 %v3192, 4294901760
    %v3681 = vsub.f32 %v3192, %v3680
    %v3682 = vand.u32 %v3681, 4294901760
    %3683 = vmatpush1.msra.mxu0 %v3682
    %v3684 = vand.u32 %v3195, 4294901760
    %v3685 = vsub.f32 %v3195, %v3684
    %v3686 = vand.u32 %v3685, 4294901760
    %3687 = vmatprep.subr.mxu0 %v3686
    %v3688 = vand.u32 %v3194, 4294901760
    %v3689 = vsub.f32 %v3194, %v3688
    %v3690 = vand.u32 %v3689, 4294901760
    %3691 = vmatpush1.msra.mxu0 %v3690
    %v3692 = vand.u32 %v3197, 4294901760
    %v3693 = vsub.f32 %v3197, %v3692
    %v3694 = vand.u32 %v3693, 4294901760
    %3695 = vmatprep.subr.mxu0 %v3694
    %v3696 = vand.u32 %v3196, 4294901760
    %v3697 = vsub.f32 %v3196, %v3696
    %v3698 = vand.u32 %v3697, 4294901760
    %3699 = vmatpush1.msra.mxu0 %v3698
    %v3700 = vand.u32 %v3199, 4294901760
    %v3701 = vsub.f32 %v3199, %v3700
    %v3702 = vand.u32 %v3701, 4294901760
    %3703 = vmatprep.subr.mxu0 %v3702
    %v3704 = vand.u32 %v3198, 4294901760
    %v3705 = vsub.f32 %v3198, %v3704
    %v3706 = vand.u32 %v3705, 4294901760
    %3707 = vmatpush1.msra.mxu0 %v3706
    %v3708 = vand.u32 %v3201, 4294901760
    %v3709 = vsub.f32 %v3201, %v3708
    %v3710 = vand.u32 %v3709, 4294901760
    %3711 = vmatprep.subr.mxu0 %v3710
    %v3712 = vand.u32 %v3200, 4294901760
    %v3713 = vsub.f32 %v3200, %v3712
    %v3714 = vand.u32 %v3713, 4294901760
    %3715 = vmatpush1.msra.mxu0 %v3714
    %v3716 = vand.u32 %v3203, 4294901760
    %v3717 = vsub.f32 %v3203, %v3716
    %v3718 = vand.u32 %v3717, 4294901760
    %3719 = vmatprep.subr.mxu0 %v3718
    %v3720 = vand.u32 %v3202, 4294901760
    %v3721 = vsub.f32 %v3202, %v3720
    %v3722 = vand.u32 %v3721, 4294901760
    %3723 = vmatpush1.msra.mxu0 %v3722
    %v3724 = vand.u32 %v3205, 4294901760
    %v3725 = vsub.f32 %v3205, %v3724
    %v3726 = vand.u32 %v3725, 4294901760
    %3727 = vmatprep.subr.mxu0 %v3726
    %v3728 = vand.u32 %v3204, 4294901760
    %v3729 = vsub.f32 %v3204, %v3728
    %v3730 = vand.u32 %v3729, 4294901760
    %3731 = vmatpush1.msra.mxu0 %v3730
    %v3732 = vand.u32 %v3207, 4294901760
    %v3733 = vsub.f32 %v3207, %v3732
    %v3734 = vand.u32 %v3733, 4294901760
    %3735 = vmatprep.subr.mxu0 %v3734
    %v3736 = vand.u32 %v3206, 4294901760
    %v3737 = vsub.f32 %v3206, %v3736
    %v3738 = vand.u32 %v3737, 4294901760
    %3739 = vmatpush1.msra.mxu0 %v3738
    %3740 = vmatprep.subr.mxu0 0.0
    %3741 = vmatpush1.msra.mxu0 0.0
    %3742 = vmatprep.subr.mxu0 0.0
    %3743 = vmatpush1.msra.mxu0 0.0
    %3744 = vmatprep.subr.mxu0 0.0
    %3745 = vmatpush1.msra.mxu0 0.0
    %3746 = vmatprep.subr.mxu0 0.0
    %3747 = vmatpush1.msra.mxu0 0.0
    %3748 = vmatprep.subr.mxu0 0.0
    %3749 = vmatpush1.msra.mxu0 0.0
    %3750 = vmatprep.subr.mxu0 0.0
    %3751 = vmatpush1.msra.mxu0 0.0
    %3752 = vmatprep.subr.mxu0 0.0
    %3753 = vmatpush1.msra.mxu0 0.0
    %3754 = vmatprep.subr.mxu0 0.0
    %3755 = vmatpush1.msra.mxu0 0.0
    %3756 = vmatprep.subr.mxu0 0.0
    %3757 = vmatpush1.msra.mxu0 0.0
    %3758 = vmatprep.subr.mxu0 0.0
    %3759 = vmatpush1.msra.mxu0 0.0
    %3760 = vmatprep.subr.mxu0 0.0
    %3761 = vmatpush1.msra.mxu0 0.0
    %3762 = vmatprep.subr.mxu0 0.0
    %3763 = vmatpush1.msra.mxu0 0.0
    %3764 = vmatprep.subr.mxu0 0.0
    %3765 = vmatpush1.msra.mxu0 0.0
    %3766 = vmatprep.subr.mxu0 0.0
    %3767 = vmatpush1.msra.mxu0 0.0
    %3768 = vmatprep.subr.mxu0 0.0
    %3769 = vmatpush1.msra.mxu0 0.0
    %3770 = vmatprep.subr.mxu0 0.0
    %3771 = vmatpush1.msra.mxu0 0.0
    %3772 = vmatprep.subr.mxu0 0.0
    %3773 = vmatpush1.msra.mxu0 0.0
    %3774 = vmatprep.subr.mxu0 0.0
    %3775 = vmatpush1.msra.mxu0 0.0
    %3776 = vmatprep.subr.mxu0 0.0
    %3777 = vmatpush1.msra.mxu0 0.0
    %3778 = vmatprep.subr.mxu0 0.0
    %3779 = vmatpush1.msra.mxu0 0.0
    %3780 = vmatprep.subr.mxu0 0.0
    %3781 = vmatpush1.msra.mxu0 0.0
    %3782 = vmatprep.subr.mxu0 0.0
    %3783 = vmatpush1.msra.mxu0 0.0
    %3784 = vmatprep.subr.mxu0 0.0
    %3785 = vmatpush1.msra.mxu0 0.0
    %3786 = vmatprep.subr.mxu0 0.0
    %3787 = vmatpush1.msra.mxu0 0.0
    %3788 = vmatprep.mubr.f32.mxu0 0.0
    %v3789 = vand.u32 %v3235, 4294901760
    %3790 = vmatmul.mubr.f32.gmra.mrb[0].mxu0 %v3789
    %v3791 = vpop.f32.mrb[0].mxu0
    %v3792 = vadd.f32 %v3672, %v3791
    %v3793 = vpop.f32.mrb[0].mxu0
    %v3794 = vadd.f32 %v3674, %v3793
    %3795 = vdwg.mxu0
    %v3796 = vand.u32 %v3193, 4294901760
    %3797 = vmatprep.subr.mxu0 %v3796
    %v3798 = vand.u32 %v3192, 4294901760
    %3799 = vmatpush1.msra.mxu0 %v3798
    %v3800 = vand.u32 %v3195, 4294901760
    %3801 = vmatprep.subr.mxu0 %v3800
    %v3802 = vand.u32 %v3194, 4294901760
    %3803 = vmatpush1.msra.mxu0 %v3802
    %v3804 = vand.u32 %v3197, 4294901760
    %3805 = vmatprep.subr.mxu0 %v3804
    %v3806 = vand.u32 %v3196, 4294901760
    %3807 = vmatpush1.msra.mxu0 %v3806
    %v3808 = vand.u32 %v3199, 4294901760
    %3809 = vmatprep.subr.mxu0 %v3808
    %v3810 = vand.u32 %v3198, 4294901760
    %3811 = vmatpush1.msra.mxu0 %v3810
    %v3812 = vand.u32 %v3201, 4294901760
    %3813 = vmatprep.subr.mxu0 %v3812
    %v3814 = vand.u32 %v3200, 4294901760
    %3815 = vmatpush1.msra.mxu0 %v3814
    %v3816 = vand.u32 %v3203, 4294901760
    %3817 = vmatprep.subr.mxu0 %v3816
    %v3818 = vand.u32 %v3202, 4294901760
    %3819 = vmatpush1.msra.mxu0 %v3818
    %v3820 = vand.u32 %v3205, 4294901760
    %3821 = vmatprep.subr.mxu0 %v3820
    %v3822 = vand.u32 %v3204, 4294901760
    %3823 = vmatpush1.msra.mxu0 %v3822
    %v3824 = vand.u32 %v3207, 4294901760
    %3825 = vmatprep.subr.mxu0 %v3824
    %v3826 = vand.u32 %v3206, 4294901760
    %3827 = vmatpush1.msra.mxu0 %v3826
    %3828 = vmatprep.subr.mxu0 0.0
    %3829 = vmatpush1.msra.mxu0 0.0
    %3830 = vmatprep.subr.mxu0 0.0
    %3831 = vmatpush1.msra.mxu0 0.0
    %3832 = vmatprep.subr.mxu0 0.0
    %3833 = vmatpush1.msra.mxu0 0.0
    %3834 = vmatprep.subr.mxu0 0.0
    %3835 = vmatpush1.msra.mxu0 0.0
    %3836 = vmatprep.subr.mxu0 0.0
    %3837 = vmatpush1.msra.mxu0 0.0
    %3838 = vmatprep.subr.mxu0 0.0
    %3839 = vmatpush1.msra.mxu0 0.0
    %3840 = vmatprep.subr.mxu0 0.0
    %3841 = vmatpush1.msra.mxu0 0.0
    %3842 = vmatprep.subr.mxu0 0.0
    %3843 = vmatpush1.msra.mxu0 0.0
    %3844 = vmatprep.subr.mxu0 0.0
    %3845 = vmatpush1.msra.mxu0 0.0
    %3846 = vmatprep.subr.mxu0 0.0
    %3847 = vmatpush1.msra.mxu0 0.0
    %3848 = vmatprep.subr.mxu0 0.0
    %3849 = vmatpush1.msra.mxu0 0.0
    %3850 = vmatprep.subr.mxu0 0.0
    %3851 = vmatpush1.msra.mxu0 0.0
    %3852 = vmatprep.subr.mxu0 0.0
    %3853 = vmatpush1.msra.mxu0 0.0
    %3854 = vmatprep.subr.mxu0 0.0
    %3855 = vmatpush1.msra.mxu0 0.0
    %3856 = vmatprep.subr.mxu0 0.0
    %3857 = vmatpush1.msra.mxu0 0.0
    %3858 = vmatprep.subr.mxu0 0.0
    %3859 = vmatpush1.msra.mxu0 0.0
    %3860 = vmatprep.subr.mxu0 0.0
    %3861 = vmatpush1.msra.mxu0 0.0
    %3862 = vmatprep.subr.mxu0 0.0
    %3863 = vmatpush1.msra.mxu0 0.0
    %3864 = vmatprep.subr.mxu0 0.0
    %3865 = vmatpush1.msra.mxu0 0.0
    %3866 = vmatprep.subr.mxu0 0.0
    %3867 = vmatpush1.msra.mxu0 0.0
    %3868 = vmatprep.subr.mxu0 0.0
    %3869 = vmatpush1.msra.mxu0 0.0
    %3870 = vmatprep.subr.mxu0 0.0
    %3871 = vmatpush1.msra.mxu0 0.0
    %3872 = vmatprep.subr.mxu0 0.0
    %3873 = vmatpush1.msra.mxu0 0.0
    %3874 = vmatprep.subr.mxu0 0.0
    %3875 = vmatpush1.msra.mxu0 0.0
    %3876 = vmatprep.mubr.f32.mxu0 0.0
    %v3877 = vand.u32 %v3235, 4294901760
    %3878 = vmatmul.mubr.f32.gmra.mrb[0].mxu0 %v3877
    %v3879 = vpop.f32.mrb[0].mxu0
    %v3880 = vadd.f32 %v3792, %v3879
    %v3881 = vpop.f32.mrb[0].mxu0
    %v3882 = vadd.f32 %v3794, %v3881
    %3883 = vdwg.mxu0
    %v3884 = vmax.f32 %v3220, 1.0
    %v3885 = vmax.f32 %v3233, 1.0
    %v3886 = vrcp.pop %v3884
    %v3887 = vmul.f32 %v3880, %v3886
    %v3888 = vrcp.pop %v3885
    %v3889 = vmul.f32 %v3882, %v3888
    %v3891 = vsel %vm955, %v3887, 0
    %v3894 = vsel %vm955, %v3889, 0
    %v3896 = vand.u32 %v3894, 4294901760
    %3897 = vmatprep.subr.mxu0 %v3896
    %v3898 = vand.u32 %v3891, 4294901760
    %3899 = vmatpush1.msra.mxu0 %v3898
    %3900 = vmatprep.subr.mxu0 0.0
    %3901 = vmatpush1.msra.mxu0 0.0
    %3902 = vmatprep.subr.mxu0 0.0
    %3903 = vmatpush1.msra.mxu0 0.0
    %3904 = vmatprep.subr.mxu0 0.0
    %3905 = vmatpush1.msra.mxu0 0.0
    %3906 = vmatprep.subr.mxu0 0.0
    %3907 = vmatpush1.msra.mxu0 0.0
    %3908 = vmatprep.subr.mxu0 0.0
    %3909 = vmatpush1.msra.mxu0 0.0
    %3910 = vmatprep.subr.mxu0 0.0
    %3911 = vmatpush1.msra.mxu0 0.0
    %3912 = vmatprep.subr.mxu0 0.0
    %3913 = vmatpush1.msra.mxu0 0.0
    %3914 = vmatprep.subr.mxu0 0.0
    %3915 = vmatpush1.msra.mxu0 0.0
    %3916 = vmatprep.subr.mxu0 0.0
    %3917 = vmatpush1.msra.mxu0 0.0
    %3918 = vmatprep.subr.mxu0 0.0
    %3919 = vmatpush1.msra.mxu0 0.0
    %3920 = vmatprep.subr.mxu0 0.0
    %3921 = vmatpush1.msra.mxu0 0.0
    %3922 = vmatprep.subr.mxu0 0.0
    %3923 = vmatpush1.msra.mxu0 0.0
    %3924 = vmatprep.subr.mxu0 0.0
    %3925 = vmatpush1.msra.mxu0 0.0
    %3926 = vmatprep.subr.mxu0 0.0
    %3927 = vmatpush1.msra.mxu0 0.0
    %3928 = vmatprep.subr.mxu0 0.0
    %3929 = vmatpush1.msra.mxu0 0.0
    %3930 = vmatprep.subr.mxu0 0.0
    %3931 = vmatpush1.msra.mxu0 0.0
    %3932 = vmatprep.subr.mxu0 0.0
    %3933 = vmatpush1.msra.mxu0 0.0
    %3934 = vmatprep.subr.mxu0 0.0
    %3935 = vmatpush1.msra.mxu0 0.0
    %3936 = vmatprep.subr.mxu0 0.0
    %3937 = vmatpush1.msra.mxu0 0.0
    %3938 = vmatprep.subr.mxu0 0.0
    %3939 = vmatpush1.msra.mxu0 0.0
    %3940 = vmatprep.subr.mxu0 0.0
    %3941 = vmatpush1.msra.mxu0 0.0
    %3942 = vmatprep.subr.mxu0 0.0
    %3943 = vmatpush1.msra.mxu0 0.0
    %3944 = vmatprep.subr.mxu0 0.0
    %3945 = vmatpush1.msra.mxu0 0.0
    %3946 = vmatprep.subr.mxu0 0.0
    %3947 = vmatpush1.msra.mxu0 0.0
    %3948 = vmatprep.subr.mxu0 0.0
    %3949 = vmatpush1.msra.mxu0 0.0
    %3950 = vmatprep.subr.mxu0 0.0
    %3951 = vmatpush1.msra.mxu0 0.0
    %3952 = vmatprep.subr.mxu0 0.0
    %3953 = vmatpush1.msra.mxu0 0.0
    %3954 = vmatprep.subr.mxu0 0.0
    %3955 = vmatpush1.msra.mxu0 0.0
    %3956 = vmatprep.subr.mxu0 0.0
    %3957 = vmatpush1.msra.mxu0 0.0
    %3958 = vmatprep.subr.mxu0 0.0
    %3959 = vmatpush1.msra.mxu0 0.0
    %3960 = vmatprep.subr.mxu0 0.0
    %3961 = vmatpush1.msra.mxu0 0.0
    %3962 = vmatprep.mubr.f32.mxu0 0.0
    %v3963 = vand.u32 %v944, 4294901760
    %v3964 = vsub.f32 %v944, %v3963
    %v3965 = vand.u32 %v3964, 4294901760
    %v3966 = vsub.f32 %v3964, %v3965
    %v3967 = vand.u32 %v3966, 4294901760
    %3968 = vmatmul.mubr.f32.gmra.mrb[0].mxu0 %v3967
    %v3969 = vpop.f32.mrb[0].mxu0
    %v3970 = vadd.f32 %v925, %v3969
    %v3971 = vpop.f32.mrb[0].mxu0
    %v3972 = vadd.f32 %v925, %v3971
    %3973 = vmatprep.mubr.f32.mxu0 0.0
    %v3974 = vand.u32 %v947, 4294901760
    %v3975 = vsub.f32 %v947, %v3974
    %v3976 = vand.u32 %v3975, 4294901760
    %v3977 = vsub.f32 %v3975, %v3976
    %v3978 = vand.u32 %v3977, 4294901760
    %3979 = vmatmul.mubr.f32.gmra.mrb[0].mxu0 %v3978
    %v3980 = vpop.f32.mrb[0].mxu0
    %v3981 = vadd.f32 %v930, %v3980
    %v3982 = vpop.f32.mrb[0].mxu0
    %v3983 = vadd.f32 %v930, %v3982
    %3984 = vmatprep.mubr.f32.mxu0 0.0
    %v3985 = vand.u32 %v950, 4294901760
    %v3986 = vsub.f32 %v950, %v3985
    %v3987 = vand.u32 %v3986, 4294901760
    %v3988 = vsub.f32 %v3986, %v3987
    %v3989 = vand.u32 %v3988, 4294901760
    %3990 = vmatmul.mubr.f32.gmra.mrb[0].mxu0 %v3989
    %v3991 = vpop.f32.mrb[0].mxu0
    %v3992 = vadd.f32 %v935, %v3991
    %v3993 = vpop.f32.mrb[0].mxu0
    %v3994 = vadd.f32 %v935, %v3993
    %3995 = vmatprep.mubr.f32.mxu0 0.0
    %v3996 = vand.u32 %v953, 4294901760
    %v3997 = vsub.f32 %v953, %v3996
    %v3998 = vand.u32 %v3997, 4294901760
    %v3999 = vsub.f32 %v3997, %v3998
    %v4000 = vand.u32 %v3999, 4294901760
    %4001 = vmatmul.mubr.f32.gmra.mrb[0].mxu0 %v4000
    %v4002 = vpop.f32.mrb[0].mxu0
    %v4003 = vadd.f32 %v940, %v4002
    %v4004 = vpop.f32.mrb[0].mxu0
    %v4005 = vadd.f32 %v940, %v4004
    %4006 = vdwg.mxu0
    %v4007 = vand.u32 %v3894, 4294901760
    %v4008 = vsub.f32 %v3894, %v4007
    %v4009 = vand.u32 %v4008, 4294901760
    %v4010 = vsub.f32 %v4008, %v4009
    %v4011 = vand.u32 %v4010, 4294901760
    %4012 = vmatprep.subr.mxu0 %v4011
    %v4013 = vand.u32 %v3891, 4294901760
    %v4014 = vsub.f32 %v3891, %v4013
    %v4015 = vand.u32 %v4014, 4294901760
    %v4016 = vsub.f32 %v4014, %v4015
    %v4017 = vand.u32 %v4016, 4294901760
    %4018 = vmatpush1.msra.mxu0 %v4017
    %4019 = vmatprep.subr.mxu0 0.0
    %4020 = vmatpush1.msra.mxu0 0.0
    %4021 = vmatprep.subr.mxu0 0.0
    %4022 = vmatpush1.msra.mxu0 0.0
    %4023 = vmatprep.subr.mxu0 0.0
    %4024 = vmatpush1.msra.mxu0 0.0
    %4025 = vmatprep.subr.mxu0 0.0
    %4026 = vmatpush1.msra.mxu0 0.0
    %4027 = vmatprep.subr.mxu0 0.0
    %4028 = vmatpush1.msra.mxu0 0.0
    %4029 = vmatprep.subr.mxu0 0.0
    %4030 = vmatpush1.msra.mxu0 0.0
    %4031 = vmatprep.subr.mxu0 0.0
    %4032 = vmatpush1.msra.mxu0 0.0
    %4033 = vmatprep.subr.mxu0 0.0
    %4034 = vmatpush1.msra.mxu0 0.0
    %4035 = vmatprep.subr.mxu0 0.0
    %4036 = vmatpush1.msra.mxu0 0.0
    %4037 = vmatprep.subr.mxu0 0.0
    %4038 = vmatpush1.msra.mxu0 0.0
    %4039 = vmatprep.subr.mxu0 0.0
    %4040 = vmatpush1.msra.mxu0 0.0
    %4041 = vmatprep.subr.mxu0 0.0
    %4042 = vmatpush1.msra.mxu0 0.0
    %4043 = vmatprep.subr.mxu0 0.0
    %4044 = vmatpush1.msra.mxu0 0.0
    %4045 = vmatprep.subr.mxu0 0.0
    %4046 = vmatpush1.msra.mxu0 0.0
    %4047 = vmatprep.subr.mxu0 0.0
    %4048 = vmatpush1.msra.mxu0 0.0
    %4049 = vmatprep.subr.mxu0 0.0
    %4050 = vmatpush1.msra.mxu0 0.0
    %4051 = vmatprep.subr.mxu0 0.0
    %4052 = vmatpush1.msra.mxu0 0.0
    %4053 = vmatprep.subr.mxu0 0.0
    %4054 = vmatpush1.msra.mxu0 0.0
    %4055 = vmatprep.subr.mxu0 0.0
    %4056 = vmatpush1.msra.mxu0 0.0
    %4057 = vmatprep.subr.mxu0 0.0
    %4058 = vmatpush1.msra.mxu0 0.0
    %4059 = vmatprep.subr.mxu0 0.0
    %4060 = vmatpush1.msra.mxu0 0.0
    %4061 = vmatprep.subr.mxu0 0.0
    %4062 = vmatpush1.msra.mxu0 0.0
    %4063 = vmatprep.subr.mxu0 0.0
    %4064 = vmatpush1.msra.mxu0 0.0
    %4065 = vmatprep.subr.mxu0 0.0
    %4066 = vmatpush1.msra.mxu0 0.0
    %4067 = vmatprep.subr.mxu0 0.0
    %4068 = vmatpush1.msra.mxu0 0.0
    %4069 = vmatprep.subr.mxu0 0.0
    %4070 = vmatpush1.msra.mxu0 0.0
    %4071 = vmatprep.subr.mxu0 0.0
    %4072 = vmatpush1.msra.mxu0 0.0
    %4073 = vmatprep.subr.mxu0 0.0
    %4074 = vmatpush1.msra.mxu0 0.0
    %4075 = vmatprep.subr.mxu0 0.0
    %4076 = vmatpush1.msra.mxu0 0.0
    %4077 = vmatprep.subr.mxu0 0.0
    %4078 = vmatpush1.msra.mxu0 0.0
    %4079 = vmatprep.subr.mxu0 0.0
    %4080 = vmatpush1.msra.mxu0 0.0
    %4081 = vmatprep.mubr.f32.mxu0 0.0
    %v4082 = vand.u32 %v944, 4294901760
    %4083 = vmatmul.mubr.f32.gmra.mrb[0].mxu0 %v4082
    %v4084 = vpop.f32.mrb[0].mxu0
    %v4085 = vadd.f32 %v3970, %v4084
    %v4086 = vpop.f32.mrb[0].mxu0
    %v4087 = vadd.f32 %v3972, %v4086
    %4088 = vmatprep.mubr.f32.mxu0 0.0
    %v4089 = vand.u32 %v947, 4294901760
    %4090 = vmatmul.mubr.f32.gmra.mrb[0].mxu0 %v4089
    %v4091 = vpop.f32.mrb[0].mxu0
    %v4092 = vadd.f32 %v3981, %v4091
    %v4093 = vpop.f32.mrb[0].mxu0
    %v4094 = vadd.f32 %v3983, %v4093
    %4095 = vmatprep.mubr.f32.mxu0 0.0
    %v4096 = vand.u32 %v950, 4294901760
    %4097 = vmatmul.mubr.f32.gmra.mrb[0].mxu0 %v4096
    %v4098 = vpop.f32.mrb[0].mxu0
    %v4099 = vadd.f32 %v3992, %v4098
    %v4100 = vpop.f32.mrb[0].mxu0
    %v4101 = vadd.f32 %v3994, %v4100
    %4102 = vmatprep.mubr.f32.mxu0 0.0
    %v4103 = vand.u32 %v953, 4294901760
    %4104 = vmatmul.mubr.f32.gmra.mrb[0].mxu0 %v4103
    %v4105 = vpop.f32.mrb[0].mxu0
    %v4106 = vadd.f32 %v4003, %v4105
    %v4107 = vpop.f32.mrb[0].mxu0
    %v4108 = vadd.f32 %v4005, %v4107
    %4109 = vdwg.mxu0
    %v4110 = vand.u32 %v3894, 4294901760
    %v4111 = vsub.f32 %v3894, %v4110
    %4112 = vmatprep.subr.mxu0 %v4111
    %v4113 = vand.u32 %v3891, 4294901760
    %v4114 = vsub.f32 %v3891, %v4113
    %4115 = vmatpush1.msra.mxu0 %v4114
    %4116 = vmatprep.subr.mxu0 0.0
    %4117 = vmatpush1.msra.mxu0 0.0
    %4118 = vmatprep.subr.mxu0 0.0
    %4119 = vmatpush1.msra.mxu0 0.0
    %4120 = vmatprep.subr.mxu0 0.0
    %4121 = vmatpush1.msra.mxu0 0.0
    %4122 = vmatprep.subr.mxu0 0.0
    %4123 = vmatpush1.msra.mxu0 0.0
    %4124 = vmatprep.subr.mxu0 0.0
    %4125 = vmatpush1.msra.mxu0 0.0
    %4126 = vmatprep.subr.mxu0 0.0
    %4127 = vmatpush1.msra.mxu0 0.0
    %4128 = vmatprep.subr.mxu0 0.0
    %4129 = vmatpush1.msra.mxu0 0.0
    %4130 = vmatprep.subr.mxu0 0.0
    %4131 = vmatpush1.msra.mxu0 0.0
    %4132 = vmatprep.subr.mxu0 0.0
    %4133 = vmatpush1.msra.mxu0 0.0
    %4134 = vmatprep.subr.mxu0 0.0
    %4135 = vmatpush1.msra.mxu0 0.0
    %4136 = vmatprep.subr.mxu0 0.0
    %4137 = vmatpush1.msra.mxu0 0.0
    %4138 = vmatprep.subr.mxu0 0.0
    %4139 = vmatpush1.msra.mxu0 0.0
    %4140 = vmatprep.subr.mxu0 0.0
    %4141 = vmatpush1.msra.mxu0 0.0
    %4142 = vmatprep.subr.mxu0 0.0
    %4143 = vmatpush1.msra.mxu0 0.0
    %4144 = vmatprep.subr.mxu0 0.0
    %4145 = vmatpush1.msra.mxu0 0.0
    %4146 = vmatprep.subr.mxu0 0.0
    %4147 = vmatpush1.msra.mxu0 0.0
    %4148 = vmatprep.subr.mxu0 0.0
    %4149 = vmatpush1.msra.mxu0 0.0
    %4150 = vmatprep.subr.mxu0 0.0
    %4151 = vmatpush1.msra.mxu0 0.0
    %4152 = vmatprep.subr.mxu0 0.0
    %4153 = vmatpush1.msra.mxu0 0.0
    %4154 = vmatprep.subr.mxu0 0.0
    %4155 = vmatpush1.msra.mxu0 0.0
    %4156 = vmatprep.subr.mxu0 0.0
    %4157 = vmatpush1.msra.mxu0 0.0
    %4158 = vmatprep.subr.mxu0 0.0
    %4159 = vmatpush1.msra.mxu0 0.0
    %4160 = vmatprep.subr.mxu0 0.0
    %4161 = vmatpush1.msra.mxu0 0.0
    %4162 = vmatprep.subr.mxu0 0.0
    %4163 = vmatpush1.msra.mxu0 0.0
    %4164 = vmatprep.subr.mxu0 0.0
    %4165 = vmatpush1.msra.mxu0 0.0
    %4166 = vmatprep.subr.mxu0 0.0
    %4167 = vmatpush1.msra.mxu0 0.0
    %4168 = vmatprep.subr.mxu0 0.0
    %4169 = vmatpush1.msra.mxu0 0.0
    %4170 = vmatprep.subr.mxu0 0.0
    %4171 = vmatpush1.msra.mxu0 0.0
    %4172 = vmatprep.subr.mxu0 0.0
    %4173 = vmatpush1.msra.mxu0 0.0
    %4174 = vmatprep.subr.mxu0 0.0
    %4175 = vmatpush1.msra.mxu0 0.0
    %4176 = vmatprep.subr.mxu0 0.0
    %4177 = vmatpush1.msra.mxu0 0.0
    %4178 = vmatprep.mubr.f32.mxu0 0.0
    %v4179 = vand.u32 %v944, 4294901760
    %v4180 = vsub.f32 %v944, %v4179
    %4181 = vmatmul.mubr.f32.gmra.mrb[0].mxu0 %v4180
    %v4182 = vpop.f32.mrb[0].mxu0
    %v4183 = vadd.f32 %v4085, %v4182
    %v4184 = vpop.f32.mrb[0].mxu0
    %v4185 = vadd.f32 %v4087, %v4184
    %4186 = vmatprep.mubr.f32.mxu0 0.0
    %v4187 = vand.u32 %v947, 4294901760
    %v4188 = vsub.f32 %v947, %v4187
    %4189 = vmatmul.mubr.f32.gmra.mrb[0].mxu0 %v4188
    %v4190 = vpop.f32.mrb[0].mxu0
    %v4191 = vadd.f32 %v4092, %v4190
    %v4192 = vpop.f32.mrb[0].mxu0
    %v4193 = vadd.f32 %v4094, %v4192
    %4194 = vmatprep.mubr.f32.mxu0 0.0
    %v4195 = vand.u32 %v950, 4294901760
    %v4196 = vsub.f32 %v950, %v4195
    %4197 = vmatmul.mubr.f32.gmra.mrb[0].mxu0 %v4196
    %v4198 = vpop.f32.mrb[0].mxu0
    %v4199 = vadd.f32 %v4099, %v4198
    %v4200 = vpop.f32.mrb[0].mxu0
    %v4201 = vadd.f32 %v4101, %v4200
    %4202 = vmatprep.mubr.f32.mxu0 0.0
    %v4203 = vand.u32 %v953, 4294901760
    %v4204 = vsub.f32 %v953, %v4203
    %4205 = vmatmul.mubr.f32.gmra.mrb[0].mxu0 %v4204
    %v4206 = vpop.f32.mrb[0].mxu0
    %v4207 = vadd.f32 %v4106, %v4206
    %v4208 = vpop.f32.mrb[0].mxu0
    %v4209 = vadd.f32 %v4108, %v4208
    %4210 = vdwg.mxu0
    %v4211 = vand.u32 %v3894, 4294901760
    %4212 = vmatprep.subr.mxu0 %v4211
    %v4213 = vand.u32 %v3891, 4294901760
    %4214 = vmatpush1.msra.mxu0 %v4213
    %4215 = vmatprep.subr.mxu0 0.0
    %4216 = vmatpush1.msra.mxu0 0.0
    %4217 = vmatprep.subr.mxu0 0.0
    %4218 = vmatpush1.msra.mxu0 0.0
    %4219 = vmatprep.subr.mxu0 0.0
    %4220 = vmatpush1.msra.mxu0 0.0
    %4221 = vmatprep.subr.mxu0 0.0
    %4222 = vmatpush1.msra.mxu0 0.0
    %4223 = vmatprep.subr.mxu0 0.0
    %4224 = vmatpush1.msra.mxu0 0.0
    %4225 = vmatprep.subr.mxu0 0.0
    %4226 = vmatpush1.msra.mxu0 0.0
    %4227 = vmatprep.subr.mxu0 0.0
    %4228 = vmatpush1.msra.mxu0 0.0
    %4229 = vmatprep.subr.mxu0 0.0
    %4230 = vmatpush1.msra.mxu0 0.0
    %4231 = vmatprep.subr.mxu0 0.0
    %4232 = vmatpush1.msra.mxu0 0.0
    %4233 = vmatprep.subr.mxu0 0.0
    %4234 = vmatpush1.msra.mxu0 0.0
    %4235 = vmatprep.subr.mxu0 0.0
    %4236 = vmatpush1.msra.mxu0 0.0
    %4237 = vmatprep.subr.mxu0 0.0
    %4238 = vmatpush1.msra.mxu0 0.0
    %4239 = vmatprep.subr.mxu0 0.0
    %4240 = vmatpush1.msra.mxu0 0.0
    %4241 = vmatprep.subr.mxu0 0.0
    %4242 = vmatpush1.msra.mxu0 0.0
    %4243 = vmatprep.subr.mxu0 0.0
    %4244 = vmatpush1.msra.mxu0 0.0
    %4245 = vmatprep.subr.mxu0 0.0
    %4246 = vmatpush1.msra.mxu0 0.0
    %4247 = vmatprep.subr.mxu0 0.0
    %4248 = vmatpush1.msra.mxu0 0.0
    %4249 = vmatprep.subr.mxu0 0.0
    %4250 = vmatpush1.msra.mxu0 0.0
    %4251 = vmatprep.subr.mxu0 0.0
    %4252 = vmatpush1.msra.mxu0 0.0
    %4253 = vmatprep.subr.mxu0 0.0
    %4254 = vmatpush1.msra.mxu0 0.0
    %4255 = vmatprep.subr.mxu0 0.0
    %4256 = vmatpush1.msra.mxu0 0.0
    %4257 = vmatprep.subr.mxu0 0.0
    %4258 = vmatpush1.msra.mxu0 0.0
    %4259 = vmatprep.subr.mxu0 0.0
    %4260 = vmatpush1.msra.mxu0 0.0
    %4261 = vmatprep.subr.mxu0 0.0
    %4262 = vmatpush1.msra.mxu0 0.0
    %4263 = vmatprep.subr.mxu0 0.0
    %4264 = vmatpush1.msra.mxu0 0.0
    %4265 = vmatprep.subr.mxu0 0.0
    %4266 = vmatpush1.msra.mxu0 0.0
    %4267 = vmatprep.subr.mxu0 0.0
    %4268 = vmatpush1.msra.mxu0 0.0
    %4269 = vmatprep.subr.mxu0 0.0
    %4270 = vmatpush1.msra.mxu0 0.0
    %4271 = vmatprep.subr.mxu0 0.0
    %4272 = vmatpush1.msra.mxu0 0.0
    %4273 = vmatprep.subr.mxu0 0.0
    %4274 = vmatpush1.msra.mxu0 0.0
    %4275 = vmatprep.subr.mxu0 0.0
    %4276 = vmatpush1.msra.mxu0 0.0
    %4277 = vmatprep.mubr.f32.mxu0 0.0
    %v4278 = vand.u32 %v944, 4294901760
    %v4279 = vsub.f32 %v944, %v4278
    %v4280 = vand.u32 %v4279, 4294901760
    %4281 = vmatmul.mubr.f32.gmra.mrb[0].mxu0 %v4280
    %v4282 = vpop.f32.mrb[0].mxu0
    %v4283 = vadd.f32 %v4183, %v4282
    %v4284 = vpop.f32.mrb[0].mxu0
    %v4285 = vadd.f32 %v4185, %v4284
    %4286 = vmatprep.mubr.f32.mxu0 0.0
    %v4287 = vand.u32 %v947, 4294901760
    %v4288 = vsub.f32 %v947, %v4287
    %v4289 = vand.u32 %v4288, 4294901760
    %4290 = vmatmul.mubr.f32.gmra.mrb[0].mxu0 %v4289
    %v4291 = vpop.f32.mrb[0].mxu0
    %v4292 = vadd.f32 %v4191, %v4291
    %v4293 = vpop.f32.mrb[0].mxu0
    %v4294 = vadd.f32 %v4193, %v4293
    %4295 = vmatprep.mubr.f32.mxu0 0.0
    %v4296 = vand.u32 %v950, 4294901760
    %v4297 = vsub.f32 %v950, %v4296
    %v4298 = vand.u32 %v4297, 4294901760
    %4299 = vmatmul.mubr.f32.gmra.mrb[0].mxu0 %v4298
    %v4300 = vpop.f32.mrb[0].mxu0
    %v4301 = vadd.f32 %v4199, %v4300
    %v4302 = vpop.f32.mrb[0].mxu0
    %v4303 = vadd.f32 %v4201, %v4302
    %4304 = vmatprep.mubr.f32.mxu0 0.0
    %v4305 = vand.u32 %v953, 4294901760
    %v4306 = vsub.f32 %v953, %v4305
    %v4307 = vand.u32 %v4306, 4294901760
    %4308 = vmatmul.mubr.f32.gmra.mrb[0].mxu0 %v4307
    %v4309 = vpop.f32.mrb[0].mxu0
    %v4310 = vadd.f32 %v4207, %v4309
    %v4311 = vpop.f32.mrb[0].mxu0
    %v4312 = vadd.f32 %v4209, %v4311
    %4313 = vdwg.mxu0
    %v4314 = vand.u32 %v3894, 4294901760
    %v4315 = vsub.f32 %v3894, %v4314
    %v4316 = vand.u32 %v4315, 4294901760
    %4317 = vmatprep.subr.mxu0 %v4316
    %v4318 = vand.u32 %v3891, 4294901760
    %v4319 = vsub.f32 %v3891, %v4318
    %v4320 = vand.u32 %v4319, 4294901760
    %4321 = vmatpush1.msra.mxu0 %v4320
    %4322 = vmatprep.subr.mxu0 0.0
    %4323 = vmatpush1.msra.mxu0 0.0
    %4324 = vmatprep.subr.mxu0 0.0
    %4325 = vmatpush1.msra.mxu0 0.0
    %4326 = vmatprep.subr.mxu0 0.0
    %4327 = vmatpush1.msra.mxu0 0.0
    %4328 = vmatprep.subr.mxu0 0.0
    %4329 = vmatpush1.msra.mxu0 0.0
    %4330 = vmatprep.subr.mxu0 0.0
    %4331 = vmatpush1.msra.mxu0 0.0
    %4332 = vmatprep.subr.mxu0 0.0
    %4333 = vmatpush1.msra.mxu0 0.0
    %4334 = vmatprep.subr.mxu0 0.0
    %4335 = vmatpush1.msra.mxu0 0.0
    %4336 = vmatprep.subr.mxu0 0.0
    %4337 = vmatpush1.msra.mxu0 0.0
    %4338 = vmatprep.subr.mxu0 0.0
    %4339 = vmatpush1.msra.mxu0 0.0
    %4340 = vmatprep.subr.mxu0 0.0
    %4341 = vmatpush1.msra.mxu0 0.0
    %4342 = vmatprep.subr.mxu0 0.0
    %4343 = vmatpush1.msra.mxu0 0.0
    %4344 = vmatprep.subr.mxu0 0.0
    %4345 = vmatpush1.msra.mxu0 0.0
    %4346 = vmatprep.subr.mxu0 0.0
    %4347 = vmatpush1.msra.mxu0 0.0
    %4348 = vmatprep.subr.mxu0 0.0
    %4349 = vmatpush1.msra.mxu0 0.0
    %4350 = vmatprep.subr.mxu0 0.0
    %4351 = vmatpush1.msra.mxu0 0.0
    %4352 = vmatprep.subr.mxu0 0.0
    %4353 = vmatpush1.msra.mxu0 0.0
    %4354 = vmatprep.subr.mxu0 0.0
    %4355 = vmatpush1.msra.mxu0 0.0
    %4356 = vmatprep.subr.mxu0 0.0
    %4357 = vmatpush1.msra.mxu0 0.0
    %4358 = vmatprep.subr.mxu0 0.0
    %4359 = vmatpush1.msra.mxu0 0.0
    %4360 = vmatprep.subr.mxu0 0.0
    %4361 = vmatpush1.msra.mxu0 0.0
    %4362 = vmatprep.subr.mxu0 0.0
    %4363 = vmatpush1.msra.mxu0 0.0
    %4364 = vmatprep.subr.mxu0 0.0
    %4365 = vmatpush1.msra.mxu0 0.0
    %4366 = vmatprep.subr.mxu0 0.0
    %4367 = vmatpush1.msra.mxu0 0.0
    %4368 = vmatprep.subr.mxu0 0.0
    %4369 = vmatpush1.msra.mxu0 0.0
    %4370 = vmatprep.subr.mxu0 0.0
    %4371 = vmatpush1.msra.mxu0 0.0
    %4372 = vmatprep.subr.mxu0 0.0
    %4373 = vmatpush1.msra.mxu0 0.0
    %4374 = vmatprep.subr.mxu0 0.0
    %4375 = vmatpush1.msra.mxu0 0.0
    %4376 = vmatprep.subr.mxu0 0.0
    %4377 = vmatpush1.msra.mxu0 0.0
    %4378 = vmatprep.subr.mxu0 0.0
    %4379 = vmatpush1.msra.mxu0 0.0
    %4380 = vmatprep.subr.mxu0 0.0
    %4381 = vmatpush1.msra.mxu0 0.0
    %4382 = vmatprep.subr.mxu0 0.0
    %4383 = vmatpush1.msra.mxu0 0.0
    %4384 = vmatprep.mubr.f32.mxu0 0.0
    %v4385 = vand.u32 %v944, 4294901760
    %4386 = vmatmul.mubr.f32.gmra.mrb[0].mxu0 %v4385
    %v4387 = vpop.f32.mrb[0].mxu0
    %v4388 = vadd.f32 %v4283, %v4387
    %v4389 = vpop.f32.mrb[0].mxu0
    %v4390 = vadd.f32 %v4285, %v4389
    %4391 = vmatprep.mubr.f32.mxu0 0.0
    %v4392 = vand.u32 %v947, 4294901760
    %4393 = vmatmul.mubr.f32.gmra.mrb[0].mxu0 %v4392
    %v4394 = vpop.f32.mrb[0].mxu0
    %v4395 = vadd.f32 %v4292, %v4394
    %v4396 = vpop.f32.mrb[0].mxu0
    %v4397 = vadd.f32 %v4294, %v4396
    %4398 = vmatprep.mubr.f32.mxu0 0.0
    %v4399 = vand.u32 %v950, 4294901760
    %4400 = vmatmul.mubr.f32.gmra.mrb[0].mxu0 %v4399
    %v4401 = vpop.f32.mrb[0].mxu0
    %v4402 = vadd.f32 %v4301, %v4401
    %v4403 = vpop.f32.mrb[0].mxu0
    %v4404 = vadd.f32 %v4303, %v4403
    %4405 = vmatprep.mubr.f32.mxu0 0.0
    %v4406 = vand.u32 %v953, 4294901760
    %4407 = vmatmul.mubr.f32.gmra.mrb[0].mxu0 %v4406
    %v4408 = vpop.f32.mrb[0].mxu0
    %v4409 = vadd.f32 %v4310, %v4408
    %v4410 = vpop.f32.mrb[0].mxu0
    %v4411 = vadd.f32 %v4312, %v4410
    %4412 = vdwg.mxu0
    %v4413 = vand.u32 %v3894, 4294901760
    %4414 = vmatprep.subr.mxu0 %v4413
    %v4415 = vand.u32 %v3891, 4294901760
    %4416 = vmatpush1.msra.mxu0 %v4415
    %4417 = vmatprep.subr.mxu0 0.0
    %4418 = vmatpush1.msra.mxu0 0.0
    %4419 = vmatprep.subr.mxu0 0.0
    %4420 = vmatpush1.msra.mxu0 0.0
    %4421 = vmatprep.subr.mxu0 0.0
    %4422 = vmatpush1.msra.mxu0 0.0
    %4423 = vmatprep.subr.mxu0 0.0
    %4424 = vmatpush1.msra.mxu0 0.0
    %4425 = vmatprep.subr.mxu0 0.0
    %4426 = vmatpush1.msra.mxu0 0.0
    %4427 = vmatprep.subr.mxu0 0.0
    %4428 = vmatpush1.msra.mxu0 0.0
    %4429 = vmatprep.subr.mxu0 0.0
    %4430 = vmatpush1.msra.mxu0 0.0
    %4431 = vmatprep.subr.mxu0 0.0
    %4432 = vmatpush1.msra.mxu0 0.0
    %4433 = vmatprep.subr.mxu0 0.0
    %4434 = vmatpush1.msra.mxu0 0.0
    %4435 = vmatprep.subr.mxu0 0.0
    %4436 = vmatpush1.msra.mxu0 0.0
    %4437 = vmatprep.subr.mxu0 0.0
    %4438 = vmatpush1.msra.mxu0 0.0
    %4439 = vmatprep.subr.mxu0 0.0
    %4440 = vmatpush1.msra.mxu0 0.0
    %4441 = vmatprep.subr.mxu0 0.0
    %4442 = vmatpush1.msra.mxu0 0.0
    %4443 = vmatprep.subr.mxu0 0.0
    %4444 = vmatpush1.msra.mxu0 0.0
    %4445 = vmatprep.subr.mxu0 0.0
    %4446 = vmatpush1.msra.mxu0 0.0
    %4447 = vmatprep.subr.mxu0 0.0
    %4448 = vmatpush1.msra.mxu0 0.0
    %4449 = vmatprep.subr.mxu0 0.0
    %4450 = vmatpush1.msra.mxu0 0.0
    %4451 = vmatprep.subr.mxu0 0.0
    %4452 = vmatpush1.msra.mxu0 0.0
    %4453 = vmatprep.subr.mxu0 0.0
    %4454 = vmatpush1.msra.mxu0 0.0
    %4455 = vmatprep.subr.mxu0 0.0
    %4456 = vmatpush1.msra.mxu0 0.0
    %4457 = vmatprep.subr.mxu0 0.0
    %4458 = vmatpush1.msra.mxu0 0.0
    %4459 = vmatprep.subr.mxu0 0.0
    %4460 = vmatpush1.msra.mxu0 0.0
    %4461 = vmatprep.subr.mxu0 0.0
    %4462 = vmatpush1.msra.mxu0 0.0
    %4463 = vmatprep.subr.mxu0 0.0
    %4464 = vmatpush1.msra.mxu0 0.0
    %4465 = vmatprep.subr.mxu0 0.0
    %4466 = vmatpush1.msra.mxu0 0.0
    %4467 = vmatprep.subr.mxu0 0.0
    %4468 = vmatpush1.msra.mxu0 0.0
    %4469 = vmatprep.subr.mxu0 0.0
    %4470 = vmatpush1.msra.mxu0 0.0
    %4471 = vmatprep.subr.mxu0 0.0
    %4472 = vmatpush1.msra.mxu0 0.0
    %4473 = vmatprep.subr.mxu0 0.0
    %4474 = vmatpush1.msra.mxu0 0.0
    %4475 = vmatprep.subr.mxu0 0.0
    %4476 = vmatpush1.msra.mxu0 0.0
    %4477 = vmatprep.subr.mxu0 0.0
    %4478 = vmatpush1.msra.mxu0 0.0
    %4479 = vmatprep.mubr.f32.mxu0 0.0
    %v4480 = vand.u32 %v944, 4294901760
    %4481 = vmatmul.mubr.f32.gmra.mrb[0].mxu0 %v4480
    %v4482 = vpop.f32.mrb[0].mxu0
    %v4483 = vadd.f32 %v4388, %v4482
    %v4484 = vpop.f32.mrb[0].mxu0
    %v4485 = vadd.f32 %v4390, %v4484
    %4486 = vmatprep.mubr.f32.mxu0 0.0
    %v4487 = vand.u32 %v947, 4294901760
    %4488 = vmatmul.mubr.f32.gmra.mrb[0].mxu0 %v4487
    %v4489 = vpop.f32.mrb[0].mxu0
    %v4490 = vadd.f32 %v4395, %v4489
    %v4491 = vpop.f32.mrb[0].mxu0
    %v4492 = vadd.f32 %v4397, %v4491
    %4493 = vmatprep.mubr.f32.mxu0 0.0
    %v4494 = vand.u32 %v950, 4294901760
    %4495 = vmatmul.mubr.f32.gmra.mrb[0].mxu0 %v4494
    %v4496 = vpop.f32.mrb[0].mxu0
    %v4497 = vadd.f32 %v4402, %v4496
    %v4498 = vpop.f32.mrb[0].mxu0
    %v4499 = vadd.f32 %v4404, %v4498
    %4500 = vmatprep.mubr.f32.mxu0 0.0
    %v4501 = vand.u32 %v953, 4294901760
    %4502 = vmatmul.mubr.f32.gmra.mrb[0].mxu0 %v4501
    %v4503 = vpop.f32.mrb[0].mxu0
    %v4504 = vadd.f32 %v4409, %v4503
    %v4505 = vpop.f32.mrb[0].mxu0
    %v4506 = vadd.f32 %v4411, %v4505
    %4507 = vdwg.mxu0
    %vm4508 = vcmp.gt.f32.partialorder %v3220, 0.0
    %vm4509 = vcmp.gt.f32.partialorder %v3233, 0.0
    %v4510 = vsel %vm4508, 1, 0
    %v4511 = vsel %vm4509, 1, 0
    %vm4512 = vcmp.eq.s32.totalorder %v4510, 1
    %vm4513 = vcmp.eq.s32.totalorder %v4511, 1
    %v4514 = vsel %vm4512, %v4483, 0.0
    %v4515 = vsel %vm4513, %v4485, 0.0
    %v4516 = vsel %vm4512, %v4490, 0.0
    %v4517 = vsel %vm4513, %v4492, 0.0
    %v4518 = vsel %vm4512, %v4497, 0.0
    %v4519 = vsel %vm4513, %v4499, 0.0
    %v4520 = vsel %vm4512, %v4504, 0.0
    %v4521 = vsel %vm4513, %v4506, 0.0
    %s4522 = sadd.s32 0, 16
    %s4523 = smul.addr %s4522, 8
    %s4524 = scalar_lea.vmem [#allocation2], %s4523
    %4525 = vst [vmem:[%s4524] sm:$0xff] %v4514
    %4526 = vst [vmem:[%s4524 + $0x8] sm:$0xff] %v4515
    %4527 = vst [vmem:[%s4524 + $0x20] sm:$0xff] %v4516
    %4528 = vst [vmem:[%s4524 + $0x28] sm:$0xff] %v4517
    %4529 = vst [vmem:[%s4524 + $0x40] sm:$0xff] %v4518
    %4530 = vst [vmem:[%s4524 + $0x48] sm:$0xff] %v4519
    %4531 = vst [vmem:[%s4524 + $0x60] sm:$0xff] %v4520
    %4532 = vst [vmem:[%s4524 + $0x68] sm:$0xff] %v4521
    %v4533 = vsub.s32 %v3120, %v1596
    %v4534 = vsub.s32 %v3121, %v1596
    %v4535 = vsub.s32 %v3122, %v1596
    %v4536 = vsub.s32 %v3123, %v1596
    %v4537 = vsub.s32 %v3124, %v1596
    %v4538 = vsub.s32 %v3125, %v1596
    %v4539 = vsub.s32 %v3126, %v1596
    %v4540 = vsub.s32 %v3127, %v1596
    %4541 = vset.pattern.permute.xlu0 3
    %4542 = vperm.xlu0 %4541, %v4533
    %v4543 = vpop.permute.xlu0 %4542
    %4544 = vset.pattern.permute.xlu0 3
    %4545 = vperm.xlu0 %4544, %v4534
    %v4546 = vpop.permute.xlu0 %4545
    %4547 = vset.pattern.permute.xlu0 3
    %4548 = vperm.xlu0 %4547, %v4535
    %v4549 = vpop.permute.xlu0 %4548
    %4550 = vset.pattern.permute.xlu0 3
    %4551 = vperm.xlu0 %4550, %v4536
    %v4552 = vpop.permute.xlu0 %4551
    %4553 = vset.pattern.permute.xlu0 3
    %4554 = vperm.xlu0 %4553, %v4537
    %v4555 = vpop.permute.xlu0 %4554
    %4556 = vset.pattern.permute.xlu0 3
    %4557 = vperm.xlu0 %4556, %v4538
    %v4558 = vpop.permute.xlu0 %4557
    %4559 = vset.pattern.permute.xlu0 3
    %4560 = vperm.xlu0 %4559, %v4539
    %v4561 = vpop.permute.xlu0 %4560
    %4562 = vset.pattern.permute.xlu0 3
    %4563 = vperm.xlu0 %4562, %v4540
    %v4564 = vpop.permute.xlu0 %4563
    %vm4565 = vcmp.eq.s32.totalorder %v27, %v4543
    %vm4566 = vcmp.eq.s32.totalorder %v28, %v4543
    %vm4567 = vcmp.eq.s32.totalorder %v27, %v4546
    %vm4568 = vcmp.eq.s32.totalorder %v28, %v4546
    %vm4569 = vcmp.eq.s32.totalorder %v27, %v4549
    %vm4570 = vcmp.eq.s32.totalorder %v28, %v4549
    %vm4571 = vcmp.eq.s32.totalorder %v27, %v4552
    %vm4572 = vcmp.eq.s32.totalorder %v28, %v4552
    %vm4573 = vcmp.eq.s32.totalorder %v27, %v4555
    %vm4574 = vcmp.eq.s32.totalorder %v28, %v4555
    %vm4575 = vcmp.eq.s32.totalorder %v27, %v4558
    %vm4576 = vcmp.eq.s32.totalorder %v28, %v4558
    %vm4577 = vcmp.eq.s32.totalorder %v27, %v4561
    %vm4578 = vcmp.eq.s32.totalorder %v28, %v4561
    %vm4579 = vcmp.eq.s32.totalorder %v27, %v4564
    %vm4580 = vcmp.eq.s32.totalorder %v28, %v4564
    %v4581 = vsel %vm4565, 1, 0
    %v4582 = vsel %vm4566, 1, 0
    %v4583 = vsel %vm4567, 1, 0
    %v4584 = vsel %vm4568, 1, 0
    %v4585 = vsel %vm4569, 1, 0
    %v4586 = vsel %vm4570, 1, 0
    %v4587 = vsel %vm4571, 1, 0
    %v4588 = vsel %vm4572, 1, 0
    %v4589 = vsel %vm4573, 1, 0
    %v4590 = vsel %vm4574, 1, 0
    %v4591 = vsel %vm4575, 1, 0
    %v4592 = vsel %vm4576, 1, 0
    %v4593 = vsel %vm4577, 1, 0
    %v4594 = vsel %vm4578, 1, 0
    %v4595 = vsel %vm4579, 1, 0
    %v4596 = vsel %vm4580, 1, 0
    %v4597 = vcvt.s32.f32 %v4581
    %v4598 = vcvt.s32.f32 %v4582
    %v4599 = vcvt.s32.f32 %v4583
    %v4600 = vcvt.s32.f32 %v4584
    %v4601 = vcvt.s32.f32 %v4585
    %v4602 = vcvt.s32.f32 %v4586
    %v4603 = vcvt.s32.f32 %v4587
    %v4604 = vcvt.s32.f32 %v4588
    %v4605 = vcvt.s32.f32 %v4589
    %v4606 = vcvt.s32.f32 %v4590
    %v4607 = vcvt.s32.f32 %v4591
    %v4608 = vcvt.s32.f32 %v4592
    %v4609 = vcvt.s32.f32 %v4593
    %v4610 = vcvt.s32.f32 %v4594
    %v4611 = vcvt.s32.f32 %v4595
    %v4612 = vcvt.s32.f32 %v4596
    %v4613 = vadd.f32 %v4597, %v4599
    %v4614 = vadd.f32 %v4613, %v4601
    %v4615 = vadd.f32 %v4614, %v4603
    %v4616 = vadd.f32 %v4615, %v4605
    %v4617 = vadd.f32 %v4616, %v4607
    %v4618 = vadd.f32 %v4617, %v4609
    %v4619 = vadd.f32 %v4618, %v4611
    %v4620 = vrot.slane %v4619, 4
    %v4621 = vadd.f32 %v4619, %v4620
    %v4622 = vrot.slane %v4621, 2
    %v4623 = vadd.f32 %v4621, %v4622
    %v4624 = vrot.slane %v4623, 1
    %v4625 = vadd.f32 %v4623, %v4624
    %v4626 = vadd.f32 %v4598, %v4600
    %v4627 = vadd.f32 %v4626, %v4602
    %v4628 = vadd.f32 %v4627, %v4604
    %v4629 = vadd.f32 %v4628, %v4606
    %v4630 = vadd.f32 %v4629, %v4608
    %v4631 = vadd.f32 %v4630, %v4610
    %v4632 = vadd.f32 %v4631, %v4612
    %v4633 = vrot.slane %v4632, 4
    %v4634 = vadd.f32 %v4632, %v4633
    %v4635 = vrot.slane %v4634, 2
    %v4636 = vadd.f32 %v4634, %v4635
    %v4637 = vrot.slane %v4636, 1
    %v4638 = vadd.f32 %v4636, %v4637
    %v4639 = vand.u32 %v4598, 4294901760
    %4640 = vmatprep.subr.mxu0 %v4639
    %v4641 = vand.u32 %v4597, 4294901760
    %4642 = vmatpush1.msra.mxu0 %v4641
    %v4643 = vand.u32 %v4600, 4294901760
    %4644 = vmatprep.subr.mxu0 %v4643
    %v4645 = vand.u32 %v4599, 4294901760
    %4646 = vmatpush1.msra.mxu0 %v4645
    %v4647 = vand.u32 %v4602, 4294901760
    %4648 = vmatprep.subr.mxu0 %v4647
    %v4649 = vand.u32 %v4601, 4294901760
    %4650 = vmatpush1.msra.mxu0 %v4649
    %v4651 = vand.u32 %v4604, 4294901760
    %4652 = vmatprep.subr.mxu0 %v4651
    %v4653 = vand.u32 %v4603, 4294901760
    %4654 = vmatpush1.msra.mxu0 %v4653
    %v4655 = vand.u32 %v4606, 4294901760
    %4656 = vmatprep.subr.mxu0 %v4655
    %v4657 = vand.u32 %v4605, 4294901760
    %4658 = vmatpush1.msra.mxu0 %v4657
    %v4659 = vand.u32 %v4608, 4294901760
    %4660 = vmatprep.subr.mxu0 %v4659
    %v4661 = vand.u32 %v4607, 4294901760
    %4662 = vmatpush1.msra.mxu0 %v4661
    %v4663 = vand.u32 %v4610, 4294901760
    %4664 = vmatprep.subr.mxu0 %v4663
    %v4665 = vand.u32 %v4609, 4294901760
    %4666 = vmatpush1.msra.mxu0 %v4665
    %v4667 = vand.u32 %v4612, 4294901760
    %4668 = vmatprep.subr.mxu0 %v4667
    %v4669 = vand.u32 %v4611, 4294901760
    %4670 = vmatpush1.msra.mxu0 %v4669
    %4671 = vmatprep.subr.mxu0 0.0
    %4672 = vmatpush1.msra.mxu0 0.0
    %4673 = vmatprep.subr.mxu0 0.0
    %4674 = vmatpush1.msra.mxu0 0.0
    %4675 = vmatprep.subr.mxu0 0.0
    %4676 = vmatpush1.msra.mxu0 0.0
    %4677 = vmatprep.subr.mxu0 0.0
    %4678 = vmatpush1.msra.mxu0 0.0
    %4679 = vmatprep.subr.mxu0 0.0
    %4680 = vmatpush1.msra.mxu0 0.0
    %4681 = vmatprep.subr.mxu0 0.0
    %4682 = vmatpush1.msra.mxu0 0.0
    %4683 = vmatprep.subr.mxu0 0.0
    %4684 = vmatpush1.msra.mxu0 0.0
    %4685 = vmatprep.subr.mxu0 0.0
    %4686 = vmatpush1.msra.mxu0 0.0
    %4687 = vmatprep.subr.mxu0 0.0
    %4688 = vmatpush1.msra.mxu0 0.0
    %4689 = vmatprep.subr.mxu0 0.0
    %4690 = vmatpush1.msra.mxu0 0.0
    %4691 = vmatprep.subr.mxu0 0.0
    %4692 = vmatpush1.msra.mxu0 0.0
    %4693 = vmatprep.subr.mxu0 0.0
    %4694 = vmatpush1.msra.mxu0 0.0
    %4695 = vmatprep.subr.mxu0 0.0
    %4696 = vmatpush1.msra.mxu0 0.0
    %4697 = vmatprep.subr.mxu0 0.0
    %4698 = vmatpush1.msra.mxu0 0.0
    %4699 = vmatprep.subr.mxu0 0.0
    %4700 = vmatpush1.msra.mxu0 0.0
    %4701 = vmatprep.subr.mxu0 0.0
    %4702 = vmatpush1.msra.mxu0 0.0
    %4703 = vmatprep.subr.mxu0 0.0
    %4704 = vmatpush1.msra.mxu0 0.0
    %4705 = vmatprep.subr.mxu0 0.0
    %4706 = vmatpush1.msra.mxu0 0.0
    %4707 = vmatprep.subr.mxu0 0.0
    %4708 = vmatpush1.msra.mxu0 0.0
    %4709 = vmatprep.subr.mxu0 0.0
    %4710 = vmatpush1.msra.mxu0 0.0
    %4711 = vmatprep.subr.mxu0 0.0
    %4712 = vmatpush1.msra.mxu0 0.0
    %4713 = vmatprep.subr.mxu0 0.0
    %4714 = vmatpush1.msra.mxu0 0.0
    %4715 = vmatprep.subr.mxu0 0.0
    %4716 = vmatpush1.msra.mxu0 0.0
    %4717 = vmatprep.subr.mxu0 0.0
    %4718 = vmatpush1.msra.mxu0 0.0
    %4719 = vmatprep.mubr.f32.mxu0 0.0
    %v4720 = vand.u32 %v3235, 4294901760
    %v4721 = vsub.f32 %v3235, %v4720
    %v4722 = vand.u32 %v4721, 4294901760
    %v4723 = vsub.f32 %v4721, %v4722
    %v4724 = vand.u32 %v4723, 4294901760
    %4725 = vmatmul.mubr.f32.gmra.mrb[0].mxu0 %v4724
    %v4726 = vpop.f32.mrb[0].mxu0
    %v4727 = vadd.f32 0.0, %v4726
    %v4728 = vpop.f32.mrb[0].mxu0
    %v4729 = vadd.f32 0.0, %v4728
    %4730 = vdwg.mxu0
    %v4731 = vand.u32 %v4598, 4294901760
    %v4732 = vsub.f32 %v4598, %v4731
    %v4733 = vand.u32 %v4732, 4294901760
    %v4734 = vsub.f32 %v4732, %v4733
    %v4735 = vand.u32 %v4734, 4294901760
    %4736 = vmatprep.subr.mxu0 %v4735
    %v4737 = vand.u32 %v4597, 4294901760
    %v4738 = vsub.f32 %v4597, %v4737
    %v4739 = vand.u32 %v4738, 4294901760
    %v4740 = vsub.f32 %v4738, %v4739
    %v4741 = vand.u32 %v4740, 4294901760
    %4742 = vmatpush1.msra.mxu0 %v4741
    %v4743 = vand.u32 %v4600, 4294901760
    %v4744 = vsub.f32 %v4600, %v4743
    %v4745 = vand.u32 %v4744, 4294901760
    %v4746 = vsub.f32 %v4744, %v4745
    %v4747 = vand.u32 %v4746, 4294901760
    %4748 = vmatprep.subr.mxu0 %v4747
    %v4749 = vand.u32 %v4599, 4294901760
    %v4750 = vsub.f32 %v4599, %v4749
    %v4751 = vand.u32 %v4750, 4294901760
    %v4752 = vsub.f32 %v4750, %v4751
    %v4753 = vand.u32 %v4752, 4294901760
    %4754 = vmatpush1.msra.mxu0 %v4753
    %v4755 = vand.u32 %v4602, 4294901760
    %v4756 = vsub.f32 %v4602, %v4755
    %v4757 = vand.u32 %v4756, 4294901760
    %v4758 = vsub.f32 %v4756, %v4757
    %v4759 = vand.u32 %v4758, 4294901760
    %4760 = vmatprep.subr.mxu0 %v4759
    %v4761 = vand.u32 %v4601, 4294901760
    %v4762 = vsub.f32 %v4601, %v4761
    %v4763 = vand.u32 %v4762, 4294901760
    %v4764 = vsub.f32 %v4762, %v4763
    %v4765 = vand.u32 %v4764, 4294901760
    %4766 = vmatpush1.msra.mxu0 %v4765
    %v4767 = vand.u32 %v4604, 4294901760
    %v4768 = vsub.f32 %v4604, %v4767
    %v4769 = vand.u32 %v4768, 4294901760
    %v4770 = vsub.f32 %v4768, %v4769
    %v4771 = vand.u32 %v4770, 4294901760
    %4772 = vmatprep.subr.mxu0 %v4771
    %v4773 = vand.u32 %v4603, 4294901760
    %v4774 = vsub.f32 %v4603, %v4773
    %v4775 = vand.u32 %v4774, 4294901760
    %v4776 = vsub.f32 %v4774, %v4775
    %v4777 = vand.u32 %v4776, 4294901760
    %4778 = vmatpush1.msra.mxu0 %v4777
    %v4779 = vand.u32 %v4606, 4294901760
    %v4780 = vsub.f32 %v4606, %v4779
    %v4781 = vand.u32 %v4780, 4294901760
    %v4782 = vsub.f32 %v4780, %v4781
    %v4783 = vand.u32 %v4782, 4294901760
    %4784 = vmatprep.subr.mxu0 %v4783
    %v4785 = vand.u32 %v4605, 4294901760
    %v4786 = vsub.f32 %v4605, %v4785
    %v4787 = vand.u32 %v4786, 4294901760
    %v4788 = vsub.f32 %v4786, %v4787
    %v4789 = vand.u32 %v4788, 4294901760
    %4790 = vmatpush1.msra.mxu0 %v4789
    %v4791 = vand.u32 %v4608, 4294901760
    %v4792 = vsub.f32 %v4608, %v4791
    %v4793 = vand.u32 %v4792, 4294901760
    %v4794 = vsub.f32 %v4792, %v4793
    %v4795 = vand.u32 %v4794, 4294901760
    %4796 = vmatprep.subr.mxu0 %v4795
    %v4797 = vand.u32 %v4607, 4294901760
    %v4798 = vsub.f32 %v4607, %v4797
    %v4799 = vand.u32 %v4798, 4294901760
    %v4800 = vsub.f32 %v4798, %v4799
    %v4801 = vand.u32 %v4800, 4294901760
    %4802 = vmatpush1.msra.mxu0 %v4801
    %v4803 = vand.u32 %v4610, 4294901760
    %v4804 = vsub.f32 %v4610, %v4803
    %v4805 = vand.u32 %v4804, 4294901760
    %v4806 = vsub.f32 %v4804, %v4805
    %v4807 = vand.u32 %v4806, 4294901760
    %4808 = vmatprep.subr.mxu0 %v4807
    %v4809 = vand.u32 %v4609, 4294901760
    %v4810 = vsub.f32 %v4609, %v4809
    %v4811 = vand.u32 %v4810, 4294901760
    %v4812 = vsub.f32 %v4810, %v4811
    %v4813 = vand.u32 %v4812, 4294901760
    %4814 = vmatpush1.msra.mxu0 %v4813
    %v4815 = vand.u32 %v4612, 4294901760
    %v4816 = vsub.f32 %v4612, %v4815
    %v4817 = vand.u32 %v4816, 4294901760
    %v4818 = vsub.f32 %v4816, %v4817
    %v4819 = vand.u32 %v4818, 4294901760
    %4820 = vmatprep.subr.mxu0 %v4819
    %v4821 = vand.u32 %v4611, 4294901760
    %v4822 = vsub.f32 %v4611, %v4821
    %v4823 = vand.u32 %v4822, 4294901760
    %v4824 = vsub.f32 %v4822, %v4823
    %v4825 = vand.u32 %v4824, 4294901760
    %4826 = vmatpush1.msra.mxu0 %v4825
    %4827 = vmatprep.subr.mxu0 0.0
    %4828 = vmatpush1.msra.mxu0 0.0
    %4829 = vmatprep.subr.mxu0 0.0
    %4830 = vmatpush1.msra.mxu0 0.0
    %4831 = vmatprep.subr.mxu0 0.0
    %4832 = vmatpush1.msra.mxu0 0.0
    %4833 = vmatprep.subr.mxu0 0.0
    %4834 = vmatpush1.msra.mxu0 0.0
    %4835 = vmatprep.subr.mxu0 0.0
    %4836 = vmatpush1.msra.mxu0 0.0
    %4837 = vmatprep.subr.mxu0 0.0
    %4838 = vmatpush1.msra.mxu0 0.0
    %4839 = vmatprep.subr.mxu0 0.0
    %4840 = vmatpush1.msra.mxu0 0.0
    %4841 = vmatprep.subr.mxu0 0.0
    %4842 = vmatpush1.msra.mxu0 0.0
    %4843 = vmatprep.subr.mxu0 0.0
    %4844 = vmatpush1.msra.mxu0 0.0
    %4845 = vmatprep.subr.mxu0 0.0
    %4846 = vmatpush1.msra.mxu0 0.0
    %4847 = vmatprep.subr.mxu0 0.0
    %4848 = vmatpush1.msra.mxu0 0.0
    %4849 = vmatprep.subr.mxu0 0.0
    %4850 = vmatpush1.msra.mxu0 0.0
    %4851 = vmatprep.subr.mxu0 0.0
    %4852 = vmatpush1.msra.mxu0 0.0
    %4853 = vmatprep.subr.mxu0 0.0
    %4854 = vmatpush1.msra.mxu0 0.0
    %4855 = vmatprep.subr.mxu0 0.0
    %4856 = vmatpush1.msra.mxu0 0.0
    %4857 = vmatprep.subr.mxu0 0.0
    %4858 = vmatpush1.msra.mxu0 0.0
    %4859 = vmatprep.subr.mxu0 0.0
    %4860 = vmatpush1.msra.mxu0 0.0
    %4861 = vmatprep.subr.mxu0 0.0
    %4862 = vmatpush1.msra.mxu0 0.0
    %4863 = vmatprep.subr.mxu0 0.0
    %4864 = vmatpush1.msra.mxu0 0.0
    %4865 = vmatprep.subr.mxu0 0.0
    %4866 = vmatpush1.msra.mxu0 0.0
    %4867 = vmatprep.subr.mxu0 0.0
    %4868 = vmatpush1.msra.mxu0 0.0
    %4869 = vmatprep.subr.mxu0 0.0
    %4870 = vmatpush1.msra.mxu0 0.0
    %4871 = vmatprep.subr.mxu0 0.0
    %4872 = vmatpush1.msra.mxu0 0.0
    %4873 = vmatprep.subr.mxu0 0.0
    %4874 = vmatpush1.msra.mxu0 0.0
    %4875 = vmatprep.mubr.f32.mxu0 0.0
    %v4876 = vand.u32 %v3235, 4294901760
    %4877 = vmatmul.mubr.f32.gmra.mrb[0].mxu0 %v4876
    %v4878 = vpop.f32.mrb[0].mxu0
    %v4879 = vadd.f32 %v4727, %v4878
    %v4880 = vpop.f32.mrb[0].mxu0
    %v4881 = vadd.f32 %v4729, %v4880
    %4882 = vdwg.mxu0
    %v4883 = vand.u32 %v4598, 4294901760
    %v4884 = vsub.f32 %v4598, %v4883
    %4885 = vmatprep.subr.mxu0 %v4884
    %v4886 = vand.u32 %v4597, 4294901760
    %v4887 = vsub.f32 %v4597, %v4886
    %4888 = vmatpush1.msra.mxu0 %v4887
    %v4889 = vand.u32 %v4600, 4294901760
    %v4890 = vsub.f32 %v4600, %v4889
    %4891 = vmatprep.subr.mxu0 %v4890
    %v4892 = vand.u32 %v4599, 4294901760
    %v4893 = vsub.f32 %v4599, %v4892
    %4894 = vmatpush1.msra.mxu0 %v4893
    %v4895 = vand.u32 %v4602, 4294901760
    %v4896 = vsub.f32 %v4602, %v4895
    %4897 = vmatprep.subr.mxu0 %v4896
    %v4898 = vand.u32 %v4601, 4294901760
    %v4899 = vsub.f32 %v4601, %v4898
    %4900 = vmatpush1.msra.mxu0 %v4899
    %v4901 = vand.u32 %v4604, 4294901760
    %v4902 = vsub.f32 %v4604, %v4901
    %4903 = vmatprep.subr.mxu0 %v4902
    %v4904 = vand.u32 %v4603, 4294901760
    %v4905 = vsub.f32 %v4603, %v4904
    %4906 = vmatpush1.msra.mxu0 %v4905
    %v4907 = vand.u32 %v4606, 4294901760
    %v4908 = vsub.f32 %v4606, %v4907
    %4909 = vmatprep.subr.mxu0 %v4908
    %v4910 = vand.u32 %v4605, 4294901760
    %v4911 = vsub.f32 %v4605, %v4910
    %4912 = vmatpush1.msra.mxu0 %v4911
    %v4913 = vand.u32 %v4608, 4294901760
    %v4914 = vsub.f32 %v4608, %v4913
    %4915 = vmatprep.subr.mxu0 %v4914
    %v4916 = vand.u32 %v4607, 4294901760
    %v4917 = vsub.f32 %v4607, %v4916
    %4918 = vmatpush1.msra.mxu0 %v4917
    %v4919 = vand.u32 %v4610, 4294901760
    %v4920 = vsub.f32 %v4610, %v4919
    %4921 = vmatprep.subr.mxu0 %v4920
    %v4922 = vand.u32 %v4609, 4294901760
    %v4923 = vsub.f32 %v4609, %v4922
    %4924 = vmatpush1.msra.mxu0 %v4923
    %v4925 = vand.u32 %v4612, 4294901760
    %v4926 = vsub.f32 %v4612, %v4925
    %4927 = vmatprep.subr.mxu0 %v4926
    %v4928 = vand.u32 %v4611, 4294901760
    %v4929 = vsub.f32 %v4611, %v4928
    %4930 = vmatpush1.msra.mxu0 %v4929
    %4931 = vmatprep.subr.mxu0 0.0
    %4932 = vmatpush1.msra.mxu0 0.0
    %4933 = vmatprep.subr.mxu0 0.0
    %4934 = vmatpush1.msra.mxu0 0.0
    %4935 = vmatprep.subr.mxu0 0.0
    %4936 = vmatpush1.msra.mxu0 0.0
    %4937 = vmatprep.subr.mxu0 0.0
    %4938 = vmatpush1.msra.mxu0 0.0
    %4939 = vmatprep.subr.mxu0 0.0
    %4940 = vmatpush1.msra.mxu0 0.0
    %4941 = vmatprep.subr.mxu0 0.0
    %4942 = vmatpush1.msra.mxu0 0.0
    %4943 = vmatprep.subr.mxu0 0.0
    %4944 = vmatpush1.msra.mxu0 0.0
    %4945 = vmatprep.subr.mxu0 0.0
    %4946 = vmatpush1.msra.mxu0 0.0
    %4947 = vmatprep.subr.mxu0 0.0
    %4948 = vmatpush1.msra.mxu0 0.0
    %4949 = vmatprep.subr.mxu0 0.0
    %4950 = vmatpush1.msra.mxu0 0.0
    %4951 = vmatprep.subr.mxu0 0.0
    %4952 = vmatpush1.msra.mxu0 0.0
    %4953 = vmatprep.subr.mxu0 0.0
    %4954 = vmatpush1.msra.mxu0 0.0
    %4955 = vmatprep.subr.mxu0 0.0
    %4956 = vmatpush1.msra.mxu0 0.0
    %4957 = vmatprep.subr.mxu0 0.0
    %4958 = vmatpush1.msra.mxu0 0.0
    %4959 = vmatprep.subr.mxu0 0.0
    %4960 = vmatpush1.msra.mxu0 0.0
    %4961 = vmatprep.subr.mxu0 0.0
    %4962 = vmatpush1.msra.mxu0 0.0
    %4963 = vmatprep.subr.mxu0 0.0
    %4964 = vmatpush1.msra.mxu0 0.0
    %4965 = vmatprep.subr.mxu0 0.0
    %4966 = vmatpush1.msra.mxu0 0.0
    %4967 = vmatprep.subr.mxu0 0.0
    %4968 = vmatpush1.msra.mxu0 0.0
    %4969 = vmatprep.subr.mxu0 0.0
    %4970 = vmatpush1.msra.mxu0 0.0
    %4971 = vmatprep.subr.mxu0 0.0
    %4972 = vmatpush1.msra.mxu0 0.0
    %4973 = vmatprep.subr.mxu0 0.0
    %4974 = vmatpush1.msra.mxu0 0.0
    %4975 = vmatprep.subr.mxu0 0.0
    %4976 = vmatpush1.msra.mxu0 0.0
    %4977 = vmatprep.subr.mxu0 0.0
    %4978 = vmatpush1.msra.mxu0 0.0
    %4979 = vmatprep.mubr.f32.mxu0 0.0
    %v4980 = vand.u32 %v3235, 4294901760
    %v4981 = vsub.f32 %v3235, %v4980
    %4982 = vmatmul.mubr.f32.gmra.mrb[0].mxu0 %v4981
    %v4983 = vpop.f32.mrb[0].mxu0
    %v4984 = vadd.f32 %v4879, %v4983
    %v4985 = vpop.f32.mrb[0].mxu0
    %v4986 = vadd.f32 %v4881, %v4985
    %4987 = vdwg.mxu0
    %v4988 = vand.u32 %v4598, 4294901760
    %4989 = vmatprep.subr.mxu0 %v4988
    %v4990 = vand.u32 %v4597, 4294901760
    %4991 = vmatpush1.msra.mxu0 %v4990
    %v4992 = vand.u32 %v4600, 4294901760
    %4993 = vmatprep.subr.mxu0 %v4992
    %v4994 = vand.u32 %v4599, 4294901760
    %4995 = vmatpush1.msra.mxu0 %v4994
    %v4996 = vand.u32 %v4602, 4294901760
    %4997 = vmatprep.subr.mxu0 %v4996
    %v4998 = vand.u32 %v4601, 4294901760
    %4999 = vmatpush1.msra.mxu0 %v4998
    %v5000 = vand.u32 %v4604, 4294901760
    %5001 = vmatprep.subr.mxu0 %v5000
    %v5002 = vand.u32 %v4603, 4294901760
    %5003 = vmatpush1.msra.mxu0 %v5002
    %v5004 = vand.u32 %v4606, 4294901760
    %5005 = vmatprep.subr.mxu0 %v5004
    %v5006 = vand.u32 %v4605, 4294901760
    %5007 = vmatpush1.msra.mxu0 %v5006
    %v5008 = vand.u32 %v4608, 4294901760
    %5009 = vmatprep.subr.mxu0 %v5008
    %v5010 = vand.u32 %v4607, 4294901760
    %5011 = vmatpush1.msra.mxu0 %v5010
    %v5012 = vand.u32 %v4610, 4294901760
    %5013 = vmatprep.subr.mxu0 %v5012
    %v5014 = vand.u32 %v4609, 4294901760
    %5015 = vmatpush1.msra.mxu0 %v5014
    %v5016 = vand.u32 %v4612, 4294901760
    %5017 = vmatprep.subr.mxu0 %v5016
    %v5018 = vand.u32 %v4611, 4294901760
    %5019 = vmatpush1.msra.mxu0 %v5018
    %5020 = vmatprep.subr.mxu0 0.0
    %5021 = vmatpush1.msra.mxu0 0.0
    %5022 = vmatprep.subr.mxu0 0.0
    %5023 = vmatpush1.msra.mxu0 0.0
    %5024 = vmatprep.subr.mxu0 0.0
    %5025 = vmatpush1.msra.mxu0 0.0
    %5026 = vmatprep.subr.mxu0 0.0
    %5027 = vmatpush1.msra.mxu0 0.0
    %5028 = vmatprep.subr.mxu0 0.0
    %5029 = vmatpush1.msra.mxu0 0.0
    %5030 = vmatprep.subr.mxu0 0.0
    %5031 = vmatpush1.msra.mxu0 0.0
    %5032 = vmatprep.subr.mxu0 0.0
    %5033 = vmatpush1.msra.mxu0 0.0
    %5034 = vmatprep.subr.mxu0 0.0
    %5035 = vmatpush1.msra.mxu0 0.0
    %5036 = vmatprep.subr.mxu0 0.0
    %5037 = vmatpush1.msra.mxu0 0.0
    %5038 = vmatprep.subr.mxu0 0.0
    %5039 = vmatpush1.msra.mxu0 0.0
    %5040 = vmatprep.subr.mxu0 0.0
    %5041 = vmatpush1.msra.mxu0 0.0
    %5042 = vmatprep.subr.mxu0 0.0
    %5043 = vmatpush1.msra.mxu0 0.0
    %5044 = vmatprep.subr.mxu0 0.0
    %5045 = vmatpush1.msra.mxu0 0.0
    %5046 = vmatprep.subr.mxu0 0.0
    %5047 = vmatpush1.msra.mxu0 0.0
    %5048 = vmatprep.subr.mxu0 0.0
    %5049 = vmatpush1.msra.mxu0 0.0
    %5050 = vmatprep.subr.mxu0 0.0
    %5051 = vmatpush1.msra.mxu0 0.0
    %5052 = vmatprep.subr.mxu0 0.0
    %5053 = vmatpush1.msra.mxu0 0.0
    %5054 = vmatprep.subr.mxu0 0.0
    %5055 = vmatpush1.msra.mxu0 0.0
    %5056 = vmatprep.subr.mxu0 0.0
    %5057 = vmatpush1.msra.mxu0 0.0
    %5058 = vmatprep.subr.mxu0 0.0
    %5059 = vmatpush1.msra.mxu0 0.0
    %5060 = vmatprep.subr.mxu0 0.0
    %5061 = vmatpush1.msra.mxu0 0.0
    %5062 = vmatprep.subr.mxu0 0.0
    %5063 = vmatpush1.msra.mxu0 0.0
    %5064 = vmatprep.subr.mxu0 0.0
    %5065 = vmatpush1.msra.mxu0 0.0
    %5066 = vmatprep.subr.mxu0 0.0
    %5067 = vmatpush1.msra.mxu0 0.0
    %5068 = vmatprep.mubr.f32.mxu0 0.0
    %v5069 = vand.u32 %v3235, 4294901760
    %v5070 = vsub.f32 %v3235, %v5069
    %v5071 = vand.u32 %v5070, 4294901760
    %5072 = vmatmul.mubr.f32.gmra.mrb[0].mxu0 %v5071
    %v5073 = vpop.f32.mrb[0].mxu0
    %v5074 = vadd.f32 %v4984, %v5073
    %v5075 = vpop.f32.mrb[0].mxu0
    %v5076 = vadd.f32 %v4986, %v5075
    %5077 = vdwg.mxu0
    %v5078 = vand.u32 %v4598, 4294901760
    %v5079 = vsub.f32 %v4598, %v5078
    %v5080 = vand.u32 %v5079, 4294901760
    %5081 = vmatprep.subr.mxu0 %v5080
    %v5082 = vand.u32 %v4597, 4294901760
    %v5083 = vsub.f32 %v4597, %v5082
    %v5084 = vand.u32 %v5083, 4294901760
    %5085 = vmatpush1.msra.mxu0 %v5084
    %v5086 = vand.u32 %v4600, 4294901760
    %v5087 = vsub.f32 %v4600, %v5086
    %v5088 = vand.u32 %v5087, 4294901760
    %5089 = vmatprep.subr.mxu0 %v5088
    %v5090 = vand.u32 %v4599, 4294901760
    %v5091 = vsub.f32 %v4599, %v5090
    %v5092 = vand.u32 %v5091, 4294901760
    %5093 = vmatpush1.msra.mxu0 %v5092
    %v5094 = vand.u32 %v4602, 4294901760
    %v5095 = vsub.f32 %v4602, %v5094
    %v5096 = vand.u32 %v5095, 4294901760
    %5097 = vmatprep.subr.mxu0 %v5096
    %v5098 = vand.u32 %v4601, 4294901760
    %v5099 = vsub.f32 %v4601, %v5098
    %v5100 = vand.u32 %v5099, 4294901760
    %5101 = vmatpush1.msra.mxu0 %v5100
    %v5102 = vand.u32 %v4604, 4294901760
    %v5103 = vsub.f32 %v4604, %v5102
    %v5104 = vand.u32 %v5103, 4294901760
    %5105 = vmatprep.subr.mxu0 %v5104
    %v5106 = vand.u32 %v4603, 4294901760
    %v5107 = vsub.f32 %v4603, %v5106
    %v5108 = vand.u32 %v5107, 4294901760
    %5109 = vmatpush1.msra.mxu0 %v5108
    %v5110 = vand.u32 %v4606, 4294901760
    %v5111 = vsub.f32 %v4606, %v5110
    %v5112 = vand.u32 %v5111, 4294901760
    %5113 = vmatprep.subr.mxu0 %v5112
    %v5114 = vand.u32 %v4605, 4294901760
    %v5115 = vsub.f32 %v4605, %v5114
    %v5116 = vand.u32 %v5115, 4294901760
    %5117 = vmatpush1.msra.mxu0 %v5116
    %v5118 = vand.u32 %v4608, 4294901760
    %v5119 = vsub.f32 %v4608, %v5118
    %v5120 = vand.u32 %v5119, 4294901760
    %5121 = vmatprep.subr.mxu0 %v5120
    %v5122 = vand.u32 %v4607, 4294901760
    %v5123 = vsub.f32 %v4607, %v5122
    %v5124 = vand.u32 %v5123, 4294901760
    %5125 = vmatpush1.msra.mxu0 %v5124
    %v5126 = vand.u32 %v4610, 4294901760
    %v5127 = vsub.f32 %v4610, %v5126
    %v5128 = vand.u32 %v5127, 4294901760
    %5129 = vmatprep.subr.mxu0 %v5128
    %v5130 = vand.u32 %v4609, 4294901760
    %v5131 = vsub.f32 %v4609, %v5130
    %v5132 = vand.u32 %v5131, 4294901760
    %5133 = vmatpush1.msra.mxu0 %v5132
    %v5134 = vand.u32 %v4612, 4294901760
    %v5135 = vsub.f32 %v4612, %v5134
    %v5136 = vand.u32 %v5135, 4294901760
    %5137 = vmatprep.subr.mxu0 %v5136
    %v5138 = vand.u32 %v4611, 4294901760
    %v5139 = vsub.f32 %v4611, %v5138
    %v5140 = vand.u32 %v5139, 4294901760
    %5141 = vmatpush1.msra.mxu0 %v5140
    %5142 = vmatprep.subr.mxu0 0.0
    %5143 = vmatpush1.msra.mxu0 0.0
    %5144 = vmatprep.subr.mxu0 0.0
    %5145 = vmatpush1.msra.mxu0 0.0
    %5146 = vmatprep.subr.mxu0 0.0
    %5147 = vmatpush1.msra.mxu0 0.0
    %5148 = vmatprep.subr.mxu0 0.0
    %5149 = vmatpush1.msra.mxu0 0.0
    %5150 = vmatprep.subr.mxu0 0.0
    %5151 = vmatpush1.msra.mxu0 0.0
    %5152 = vmatprep.subr.mxu0 0.0
    %5153 = vmatpush1.msra.mxu0 0.0
    %5154 = vmatprep.subr.mxu0 0.0
    %5155 = vmatpush1.msra.mxu0 0.0
    %5156 = vmatprep.subr.mxu0 0.0
    %5157 = vmatpush1.msra.mxu0 0.0
    %5158 = vmatprep.subr.mxu0 0.0
    %5159 = vmatpush1.msra.mxu0 0.0
    %5160 = vmatprep.subr.mxu0 0.0
    %5161 = vmatpush1.msra.mxu0 0.0
    %5162 = vmatprep.subr.mxu0 0.0
    %5163 = vmatpush1.msra.mxu0 0.0
    %5164 = vmatprep.subr.mxu0 0.0
    %5165 = vmatpush1.msra.mxu0 0.0
    %5166 = vmatprep.subr.mxu0 0.0
    %5167 = vmatpush1.msra.mxu0 0.0
    %5168 = vmatprep.subr.mxu0 0.0
    %5169 = vmatpush1.msra.mxu0 0.0
    %5170 = vmatprep.subr.mxu0 0.0
    %5171 = vmatpush1.msra.mxu0 0.0
    %5172 = vmatprep.subr.mxu0 0.0
    %5173 = vmatpush1.msra.mxu0 0.0
    %5174 = vmatprep.subr.mxu0 0.0
    %5175 = vmatpush1.msra.mxu0 0.0
    %5176 = vmatprep.subr.mxu0 0.0
    %5177 = vmatpush1.msra.mxu0 0.0
    %5178 = vmatprep.subr.mxu0 0.0
    %5179 = vmatpush1.msra.mxu0 0.0
    %5180 = vmatprep.subr.mxu0 0.0
    %5181 = vmatpush1.msra.mxu0 0.0
    %5182 = vmatprep.subr.mxu0 0.0
    %5183 = vmatpush1.msra.mxu0 0.0
    %5184 = vmatprep.subr.mxu0 0.0
    %5185 = vmatpush1.msra.mxu0 0.0
    %5186 = vmatprep.subr.mxu0 0.0
    %5187 = vmatpush1.msra.mxu0 0.0
    %5188 = vmatprep.subr.mxu0 0.0
    %5189 = vmatpush1.msra.mxu0 0.0
    %5190 = vmatprep.mubr.f32.mxu0 0.0
    %v5191 = vand.u32 %v3235, 4294901760
    %5192 = vmatmul.mubr.f32.gmra.mrb[0].mxu0 %v5191
    %v5193 = vpop.f32.mrb[0].mxu0
    %v5194 = vadd.f32 %v5074, %v5193
    %v5195 = vpop.f32.mrb[0].mxu0
    %v5196 = vadd.f32 %v5076, %v5195
    %5197 = vdwg.mxu0
    %v5198 = vand.u32 %v4598, 4294901760
    %5199 = vmatprep.subr.mxu0 %v5198
    %v5200 = vand.u32 %v4597, 4294901760
    %5201 = vmatpush1.msra.mxu0 %v5200
    %v5202 = vand.u32 %v4600, 4294901760
    %5203 = vmatprep.subr.mxu0 %v5202
    %v5204 = vand.u32 %v4599, 4294901760
    %5205 = vmatpush1.msra.mxu0 %v5204
    %v5206 = vand.u32 %v4602, 4294901760
    %5207 = vmatprep.subr.mxu0 %v5206
    %v5208 = vand.u32 %v4601, 4294901760
    %5209 = vmatpush1.msra.mxu0 %v5208
    %v5210 = vand.u32 %v4604, 4294901760
    %5211 = vmatprep.subr.mxu0 %v5210
    %v5212 = vand.u32 %v4603, 4294901760
    %5213 = vmatpush1.msra.mxu0 %v5212
    %v5214 = vand.u32 %v4606, 4294901760
    %5215 = vmatprep.subr.mxu0 %v5214
    %v5216 = vand.u32 %v4605, 4294901760
    %5217 = vmatpush1.msra.mxu0 %v5216
    %v5218 = vand.u32 %v4608, 4294901760
    %5219 = vmatprep.subr.mxu0 %v5218
    %v5220 = vand.u32 %v4607, 4294901760
    %5221 = vmatpush1.msra.mxu0 %v5220
    %v5222 = vand.u32 %v4610, 4294901760
    %5223 = vmatprep.subr.mxu0 %v5222
    %v5224 = vand.u32 %v4609, 4294901760
    %5225 = vmatpush1.msra.mxu0 %v5224
    %v5226 = vand.u32 %v4612, 4294901760
    %5227 = vmatprep.subr.mxu0 %v5226
    %v5228 = vand.u32 %v4611, 4294901760
    %5229 = vmatpush1.msra.mxu0 %v5228
    %5230 = vmatprep.subr.mxu0 0.0
    %5231 = vmatpush1.msra.mxu0 0.0
    %5232 = vmatprep.subr.mxu0 0.0
    %5233 = vmatpush1.msra.mxu0 0.0
    %5234 = vmatprep.subr.mxu0 0.0
    %5235 = vmatpush1.msra.mxu0 0.0
    %5236 = vmatprep.subr.mxu0 0.0
    %5237 = vmatpush1.msra.mxu0 0.0
    %5238 = vmatprep.subr.mxu0 0.0
    %5239 = vmatpush1.msra.mxu0 0.0
    %5240 = vmatprep.subr.mxu0 0.0
    %5241 = vmatpush1.msra.mxu0 0.0
    %5242 = vmatprep.subr.mxu0 0.0
    %5243 = vmatpush1.msra.mxu0 0.0
    %5244 = vmatprep.subr.mxu0 0.0
    %5245 = vmatpush1.msra.mxu0 0.0
    %5246 = vmatprep.subr.mxu0 0.0
    %5247 = vmatpush1.msra.mxu0 0.0
    %5248 = vmatprep.subr.mxu0 0.0
    %5249 = vmatpush1.msra.mxu0 0.0
    %5250 = vmatprep.subr.mxu0 0.0
    %5251 = vmatpush1.msra.mxu0 0.0
    %5252 = vmatprep.subr.mxu0 0.0
    %5253 = vmatpush1.msra.mxu0 0.0
    %5254 = vmatprep.subr.mxu0 0.0
    %5255 = vmatpush1.msra.mxu0 0.0
    %5256 = vmatprep.subr.mxu0 0.0
    %5257 = vmatpush1.msra.mxu0 0.0
    %5258 = vmatprep.subr.mxu0 0.0
    %5259 = vmatpush1.msra.mxu0 0.0
    %5260 = vmatprep.subr.mxu0 0.0
    %5261 = vmatpush1.msra.mxu0 0.0
    %5262 = vmatprep.subr.mxu0 0.0
    %5263 = vmatpush1.msra.mxu0 0.0
    %5264 = vmatprep.subr.mxu0 0.0
    %5265 = vmatpush1.msra.mxu0 0.0
    %5266 = vmatprep.subr.mxu0 0.0
    %5267 = vmatpush1.msra.mxu0 0.0
    %5268 = vmatprep.subr.mxu0 0.0
    %5269 = vmatpush1.msra.mxu0 0.0
    %5270 = vmatprep.subr.mxu0 0.0
    %5271 = vmatpush1.msra.mxu0 0.0
    %5272 = vmatprep.subr.mxu0 0.0
    %5273 = vmatpush1.msra.mxu0 0.0
    %5274 = vmatprep.subr.mxu0 0.0
    %5275 = vmatpush1.msra.mxu0 0.0
    %5276 = vmatprep.subr.mxu0 0.0
    %5277 = vmatpush1.msra.mxu0 0.0
    %5278 = vmatprep.mubr.f32.mxu0 0.0
    %v5279 = vand.u32 %v3235, 4294901760
    %5280 = vmatmul.mubr.f32.gmra.mrb[0].mxu0 %v5279
    %v5281 = vpop.f32.mrb[0].mxu0
    %v5282 = vadd.f32 %v5194, %v5281
    %v5283 = vpop.f32.mrb[0].mxu0
    %v5284 = vadd.f32 %v5196, %v5283
    %5285 = vdwg.mxu0
    %v5286 = vmax.f32 %v4625, 1.0
    %v5287 = vmax.f32 %v4638, 1.0
    %v5288 = vrcp.pop %v5286
    %v5289 = vmul.f32 %v5282, %v5288
    %v5290 = vrcp.pop %v5287
    %v5291 = vmul.f32 %v5284, %v5290
    %v5293 = vsel %vm955, %v5289, 0
    %v5296 = vsel %vm955, %v5291, 0
    %v5298 = vand.u32 %v5296, 4294901760
    %5299 = vmatprep.subr.mxu0 %v5298
    %v5300 = vand.u32 %v5293, 4294901760
    %5301 = vmatpush1.msra.mxu0 %v5300
    %5302 = vmatprep.subr.mxu0 0.0
    %5303 = vmatpush1.msra.mxu0 0.0
    %5304 = vmatprep.subr.mxu0 0.0
    %5305 = vmatpush1.msra.mxu0 0.0
    %5306 = vmatprep.subr.mxu0 0.0
    %5307 = vmatpush1.msra.mxu0 0.0
    %5308 = vmatprep.subr.mxu0 0.0
    %5309 = vmatpush1.msra.mxu0 0.0
    %5310 = vmatprep.subr.mxu0 0.0
    %5311 = vmatpush1.msra.mxu0 0.0
    %5312 = vmatprep.subr.mxu0 0.0
    %5313 = vmatpush1.msra.mxu0 0.0
    %5314 = vmatprep.subr.mxu0 0.0
    %5315 = vmatpush1.msra.mxu0 0.0
    %5316 = vmatprep.subr.mxu0 0.0
    %5317 = vmatpush1.msra.mxu0 0.0
    %5318 = vmatprep.subr.mxu0 0.0
    %5319 = vmatpush1.msra.mxu0 0.0
    %5320 = vmatprep.subr.mxu0 0.0
    %5321 = vmatpush1.msra.mxu0 0.0
    %5322 = vmatprep.subr.mxu0 0.0
    %5323 = vmatpush1.msra.mxu0 0.0
    %5324 = vmatprep.subr.mxu0 0.0
    %5325 = vmatpush1.msra.mxu0 0.0
    %5326 = vmatprep.subr.mxu0 0.0
    %5327 = vmatpush1.msra.mxu0 0.0
    %5328 = vmatprep.subr.mxu0 0.0
    %5329 = vmatpush1.msra.mxu0 0.0
    %5330 = vmatprep.subr.mxu0 0.0
    %5331 = vmatpush1.msra.mxu0 0.0
    %5332 = vmatprep.subr.mxu0 0.0
    %5333 = vmatpush1.msra.mxu0 0.0
    %5334 = vmatprep.subr.mxu0 0.0
    %5335 = vmatpush1.msra.mxu0 0.0
    %5336 = vmatprep.subr.mxu0 0.0
    %5337 = vmatpush1.msra.mxu0 0.0
    %5338 = vmatprep.subr.mxu0 0.0
    %5339 = vmatpush1.msra.mxu0 0.0
    %5340 = vmatprep.subr.mxu0 0.0
    %5341 = vmatpush1.msra.mxu0 0.0
    %5342 = vmatprep.subr.mxu0 0.0
    %5343 = vmatpush1.msra.mxu0 0.0
    %5344 = vmatprep.subr.mxu0 0.0
    %5345 = vmatpush1.msra.mxu0 0.0
    %5346 = vmatprep.subr.mxu0 0.0
    %5347 = vmatpush1.msra.mxu0 0.0
    %5348 = vmatprep.subr.mxu0 0.0
    %5349 = vmatpush1.msra.mxu0 0.0
    %5350 = vmatprep.subr.mxu0 0.0
    %5351 = vmatpush1.msra.mxu0 0.0
    %5352 = vmatprep.subr.mxu0 0.0
    %5353 = vmatpush1.msra.mxu0 0.0
    %5354 = vmatprep.subr.mxu0 0.0
    %5355 = vmatpush1.msra.mxu0 0.0
    %5356 = vmatprep.subr.mxu0 0.0
    %5357 = vmatpush1.msra.mxu0 0.0
    %5358 = vmatprep.subr.mxu0 0.0
    %5359 = vmatpush1.msra.mxu0 0.0
    %5360 = vmatprep.subr.mxu0 0.0
    %5361 = vmatpush1.msra.mxu0 0.0
    %5362 = vmatprep.subr.mxu0 0.0
    %5363 = vmatpush1.msra.mxu0 0.0
    %5364 = vmatprep.mubr.f32.mxu0 0.0
    %v5365 = vand.u32 %v944, 4294901760
    %v5366 = vsub.f32 %v944, %v5365
    %v5367 = vand.u32 %v5366, 4294901760
    %v5368 = vsub.f32 %v5366, %v5367
    %v5369 = vand.u32 %v5368, 4294901760
    %5370 = vmatmul.mubr.f32.gmra.mrb[0].mxu0 %v5369
    %v5371 = vpop.f32.mrb[0].mxu0
    %v5372 = vadd.f32 %v925, %v5371
    %v5373 = vpop.f32.mrb[0].mxu0
    %v5374 = vadd.f32 %v925, %v5373
    %5375 = vmatprep.mubr.f32.mxu0 0.0
    %v5376 = vand.u32 %v947, 4294901760
    %v5377 = vsub.f32 %v947, %v5376
    %v5378 = vand.u32 %v5377, 4294901760
    %v5379 = vsub.f32 %v5377, %v5378
    %v5380 = vand.u32 %v5379, 4294901760
    %5381 = vmatmul.mubr.f32.gmra.mrb[0].mxu0 %v5380
    %v5382 = vpop.f32.mrb[0].mxu0
    %v5383 = vadd.f32 %v930, %v5382
    %v5384 = vpop.f32.mrb[0].mxu0
    %v5385 = vadd.f32 %v930, %v5384
    %5386 = vmatprep.mubr.f32.mxu0 0.0
    %v5387 = vand.u32 %v950, 4294901760
    %v5388 = vsub.f32 %v950, %v5387
    %v5389 = vand.u32 %v5388, 4294901760
    %v5390 = vsub.f32 %v5388, %v5389
    %v5391 = vand.u32 %v5390, 4294901760
    %5392 = vmatmul.mubr.f32.gmra.mrb[0].mxu0 %v5391
    %v5393 = vpop.f32.mrb[0].mxu0
    %v5394 = vadd.f32 %v935, %v5393
    %v5395 = vpop.f32.mrb[0].mxu0
    %v5396 = vadd.f32 %v935, %v5395
    %5397 = vmatprep.mubr.f32.mxu0 0.0
    %v5398 = vand.u32 %v953, 4294901760
    %v5399 = vsub.f32 %v953, %v5398
    %v5400 = vand.u32 %v5399, 4294901760
    %v5401 = vsub.f32 %v5399, %v5400
    %v5402 = vand.u32 %v5401, 4294901760
    %5403 = vmatmul.mubr.f32.gmra.mrb[0].mxu0 %v5402
    %v5404 = vpop.f32.mrb[0].mxu0
    %v5405 = vadd.f32 %v940, %v5404
    %v5406 = vpop.f32.mrb[0].mxu0
    %v5407 = vadd.f32 %v940, %v5406
    %5408 = vdwg.mxu0
    %v5409 = vand.u32 %v5296, 4294901760
    %v5410 = vsub.f32 %v5296, %v5409
    %v5411 = vand.u32 %v5410, 4294901760
    %v5412 = vsub.f32 %v5410, %v5411
    %v5413 = vand.u32 %v5412, 4294901760
    %5414 = vmatprep.subr.mxu0 %v5413
    %v5415 = vand.u32 %v5293, 4294901760
    %v5416 = vsub.f32 %v5293, %v5415
    %v5417 = vand.u32 %v5416, 4294901760
    %v5418 = vsub.f32 %v5416, %v5417
    %v5419 = vand.u32 %v5418, 4294901760
    %5420 = vmatpush1.msra.mxu0 %v5419
    %5421 = vmatprep.subr.mxu0 0.0
    %5422 = vmatpush1.msra.mxu0 0.0
    %5423 = vmatprep.subr.mxu0 0.0
    %5424 = vmatpush1.msra.mxu0 0.0
    %5425 = vmatprep.subr.mxu0 0.0
    %5426 = vmatpush1.msra.mxu0 0.0
    %5427 = vmatprep.subr.mxu0 0.0
    %5428 = vmatpush1.msra.mxu0 0.0
    %5429 = vmatprep.subr.mxu0 0.0
    %5430 = vmatpush1.msra.mxu0 0.0
    %5431 = vmatprep.subr.mxu0 0.0
    %5432 = vmatpush1.msra.mxu0 0.0
    %5433 = vmatprep.subr.mxu0 0.0
    %5434 = vmatpush1.msra.mxu0 0.0
    %5435 = vmatprep.subr.mxu0 0.0
    %5436 = vmatpush1.msra.mxu0 0.0
    %5437 = vmatprep.subr.mxu0 0.0
    %5438 = vmatpush1.msra.mxu0 0.0
    %5439 = vmatprep.subr.mxu0 0.0
    %5440 = vmatpush1.msra.mxu0 0.0
    %5441 = vmatprep.subr.mxu0 0.0
    %5442 = vmatpush1.msra.mxu0 0.0
    %5443 = vmatprep.subr.mxu0 0.0
    %5444 = vmatpush1.msra.mxu0 0.0
    %5445 = vmatprep.subr.mxu0 0.0
    %5446 = vmatpush1.msra.mxu0 0.0
    %5447 = vmatprep.subr.mxu0 0.0
    %5448 = vmatpush1.msra.mxu0 0.0
    %5449 = vmatprep.subr.mxu0 0.0
    %5450 = vmatpush1.msra.mxu0 0.0
    %5451 = vmatprep.subr.mxu0 0.0
    %5452 = vmatpush1.msra.mxu0 0.0
    %5453 = vmatprep.subr.mxu0 0.0
    %5454 = vmatpush1.msra.mxu0 0.0
    %5455 = vmatprep.subr.mxu0 0.0
    %5456 = vmatpush1.msra.mxu0 0.0
    %5457 = vmatprep.subr.mxu0 0.0
    %5458 = vmatpush1.msra.mxu0 0.0
    %5459 = vmatprep.subr.mxu0 0.0
    %5460 = vmatpush1.msra.mxu0 0.0
    %5461 = vmatprep.subr.mxu0 0.0
    %5462 = vmatpush1.msra.mxu0 0.0
    %5463 = vmatprep.subr.mxu0 0.0
    %5464 = vmatpush1.msra.mxu0 0.0
    %5465 = vmatprep.subr.mxu0 0.0
    %5466 = vmatpush1.msra.mxu0 0.0
    %5467 = vmatprep.subr.mxu0 0.0
    %5468 = vmatpush1.msra.mxu0 0.0
    %5469 = vmatprep.subr.mxu0 0.0
    %5470 = vmatpush1.msra.mxu0 0.0
    %5471 = vmatprep.subr.mxu0 0.0
    %5472 = vmatpush1.msra.mxu0 0.0
    %5473 = vmatprep.subr.mxu0 0.0
    %5474 = vmatpush1.msra.mxu0 0.0
    %5475 = vmatprep.subr.mxu0 0.0
    %5476 = vmatpush1.msra.mxu0 0.0
    %5477 = vmatprep.subr.mxu0 0.0
    %5478 = vmatpush1.msra.mxu0 0.0
    %5479 = vmatprep.subr.mxu0 0.0
    %5480 = vmatpush1.msra.mxu0 0.0
    %5481 = vmatprep.subr.mxu0 0.0
    %5482 = vmatpush1.msra.mxu0 0.0
    %5483 = vmatprep.mubr.f32.mxu0 0.0
    %v5484 = vand.u32 %v944, 4294901760
    %5485 = vmatmul.mubr.f32.gmra.mrb[0].mxu0 %v5484
    %v5486 = vpop.f32.mrb[0].mxu0
    %v5487 = vadd.f32 %v5372, %v5486
    %v5488 = vpop.f32.mrb[0].mxu0
    %v5489 = vadd.f32 %v5374, %v5488
    %5490 = vmatprep.mubr.f32.mxu0 0.0
    %v5491 = vand.u32 %v947, 4294901760
    %5492 = vmatmul.mubr.f32.gmra.mrb[0].mxu0 %v5491
    %v5493 = vpop.f32.mrb[0].mxu0
    %v5494 = vadd.f32 %v5383, %v5493
    %v5495 = vpop.f32.mrb[0].mxu0
    %v5496 = vadd.f32 %v5385, %v5495
    %5497 = vmatprep.mubr.f32.mxu0 0.0
    %v5498 = vand.u32 %v950, 4294901760
    %5499 = vmatmul.mubr.f32.gmra.mrb[0].mxu0 %v5498
    %v5500 = vpop.f32.mrb[0].mxu0
    %v5501 = vadd.f32 %v5394, %v5500
    %v5502 = vpop.f32.mrb[0].mxu0
    %v5503 = vadd.f32 %v5396, %v5502
    %5504 = vmatprep.mubr.f32.mxu0 0.0
    %v5505 = vand.u32 %v953, 4294901760
    %5506 = vmatmul.mubr.f32.gmra.mrb[0].mxu0 %v5505
    %v5507 = vpop.f32.mrb[0].mxu0
    %v5508 = vadd.f32 %v5405, %v5507
    %v5509 = vpop.f32.mrb[0].mxu0
    %v5510 = vadd.f32 %v5407, %v5509
    %5511 = vdwg.mxu0
    %v5512 = vand.u32 %v5296, 4294901760
    %v5513 = vsub.f32 %v5296, %v5512
    %5514 = vmatprep.subr.mxu0 %v5513
    %v5515 = vand.u32 %v5293, 4294901760
    %v5516 = vsub.f32 %v5293, %v5515
    %5517 = vmatpush1.msra.mxu0 %v5516
    %5518 = vmatprep.subr.mxu0 0.0
    %5519 = vmatpush1.msra.mxu0 0.0
    %5520 = vmatprep.subr.mxu0 0.0
    %5521 = vmatpush1.msra.mxu0 0.0
    %5522 = vmatprep.subr.mxu0 0.0
    %5523 = vmatpush1.msra.mxu0 0.0
    %5524 = vmatprep.subr.mxu0 0.0
    %5525 = vmatpush1.msra.mxu0 0.0
    %5526 = vmatprep.subr.mxu0 0.0
    %5527 = vmatpush1.msra.mxu0 0.0
    %5528 = vmatprep.subr.mxu0 0.0
    %5529 = vmatpush1.msra.mxu0 0.0
    %5530 = vmatprep.subr.mxu0 0.0
    %5531 = vmatpush1.msra.mxu0 0.0
    %5532 = vmatprep.subr.mxu0 0.0
    %5533 = vmatpush1.msra.mxu0 0.0
    %5534 = vmatprep.subr.mxu0 0.0
    %5535 = vmatpush1.msra.mxu0 0.0
    %5536 = vmatprep.subr.mxu0 0.0
    %5537 = vmatpush1.msra.mxu0 0.0
    %5538 = vmatprep.subr.mxu0 0.0
    %5539 = vmatpush1.msra.mxu0 0.0
    %5540 = vmatprep.subr.mxu0 0.0
    %5541 = vmatpush1.msra.mxu0 0.0
    %5542 = vmatprep.subr.mxu0 0.0
    %5543 = vmatpush1.msra.mxu0 0.0
    %5544 = vmatprep.subr.mxu0 0.0
    %5545 = vmatpush1.msra.mxu0 0.0
    %5546 = vmatprep.subr.mxu0 0.0
    %5547 = vmatpush1.msra.mxu0 0.0
    %5548 = vmatprep.subr.mxu0 0.0
    %5549 = vmatpush1.msra.mxu0 0.0
    %5550 = vmatprep.subr.mxu0 0.0
    %5551 = vmatpush1.msra.mxu0 0.0
    %5552 = vmatprep.subr.mxu0 0.0
    %5553 = vmatpush1.msra.mxu0 0.0
    %5554 = vmatprep.subr.mxu0 0.0
    %5555 = vmatpush1.msra.mxu0 0.0
    %5556 = vmatprep.subr.mxu0 0.0
    %5557 = vmatpush1.msra.mxu0 0.0
    %5558 = vmatprep.subr.mxu0 0.0
    %5559 = vmatpush1.msra.mxu0 0.0
    %5560 = vmatprep.subr.mxu0 0.0
    %5561 = vmatpush1.msra.mxu0 0.0
    %5562 = vmatprep.subr.mxu0 0.0
    %5563 = vmatpush1.msra.mxu0 0.0
    %5564 = vmatprep.subr.mxu0 0.0
    %5565 = vmatpush1.msra.mxu0 0.0
    %5566 = vmatprep.subr.mxu0 0.0
    %5567 = vmatpush1.msra.mxu0 0.0
    %5568 = vmatprep.subr.mxu0 0.0
    %5569 = vmatpush1.msra.mxu0 0.0
    %5570 = vmatprep.subr.mxu0 0.0
    %5571 = vmatpush1.msra.mxu0 0.0
    %5572 = vmatprep.subr.mxu0 0.0
    %5573 = vmatpush1.msra.mxu0 0.0
    %5574 = vmatprep.subr.mxu0 0.0
    %5575 = vmatpush1.msra.mxu0 0.0
    %5576 = vmatprep.subr.mxu0 0.0
    %5577 = vmatpush1.msra.mxu0 0.0
    %5578 = vmatprep.subr.mxu0 0.0
    %5579 = vmatpush1.msra.mxu0 0.0
    %5580 = vmatprep.mubr.f32.mxu0 0.0
    %v5581 = vand.u32 %v944, 4294901760
    %v5582 = vsub.f32 %v944, %v5581
    %5583 = vmatmul.mubr.f32.gmra.mrb[0].mxu0 %v5582
    %v5584 = vpop.f32.mrb[0].mxu0
    %v5585 = vadd.f32 %v5487, %v5584
    %v5586 = vpop.f32.mrb[0].mxu0
    %v5587 = vadd.f32 %v5489, %v5586
    %5588 = vmatprep.mubr.f32.mxu0 0.0
    %v5589 = vand.u32 %v947, 4294901760
    %v5590 = vsub.f32 %v947, %v5589
    %5591 = vmatmul.mubr.f32.gmra.mrb[0].mxu0 %v5590
    %v5592 = vpop.f32.mrb[0].mxu0
    %v5593 = vadd.f32 %v5494, %v5592
    %v5594 = vpop.f32.mrb[0].mxu0
    %v5595 = vadd.f32 %v5496, %v5594
    %5596 = vmatprep.mubr.f32.mxu0 0.0
    %v5597 = vand.u32 %v950, 4294901760
    %v5598 = vsub.f32 %v950, %v5597
    %5599 = vmatmul.mubr.f32.gmra.mrb[0].mxu0 %v5598
    %v5600 = vpop.f32.mrb[0].mxu0
    %v5601 = vadd.f32 %v5501, %v5600
    %v5602 = vpop.f32.mrb[0].mxu0
    %v5603 = vadd.f32 %v5503, %v5602
    %5604 = vmatprep.mubr.f32.mxu0 0.0
    %v5605 = vand.u32 %v953, 4294901760
    %v5606 = vsub.f32 %v953, %v5605
    %5607 = vmatmul.mubr.f32.gmra.mrb[0].mxu0 %v5606
    %v5608 = vpop.f32.mrb[0].mxu0
    %v5609 = vadd.f32 %v5508, %v5608
    %v5610 = vpop.f32.mrb[0].mxu0
    %v5611 = vadd.f32 %v5510, %v5610
    %5612 = vdwg.mxu0
    %v5613 = vand.u32 %v5296, 4294901760
    %5614 = vmatprep.subr.mxu0 %v5613
    %v5615 = vand.u32 %v5293, 4294901760
    %5616 = vmatpush1.msra.mxu0 %v5615
    %5617 = vmatprep.subr.mxu0 0.0
    %5618 = vmatpush1.msra.mxu0 0.0
    %5619 = vmatprep.subr.mxu0 0.0
    %5620 = vmatpush1.msra.mxu0 0.0
    %5621 = vmatprep.subr.mxu0 0.0
    %5622 = vmatpush1.msra.mxu0 0.0
    %5623 = vmatprep.subr.mxu0 0.0
    %5624 = vmatpush1.msra.mxu0 0.0
    %5625 = vmatprep.subr.mxu0 0.0
    %5626 = vmatpush1.msra.mxu0 0.0
    %5627 = vmatprep.subr.mxu0 0.0
    %5628 = vmatpush1.msra.mxu0 0.0
    %5629 = vmatprep.subr.mxu0 0.0
    %5630 = vmatpush1.msra.mxu0 0.0
    %5631 = vmatprep.subr.mxu0 0.0
    %5632 = vmatpush1.msra.mxu0 0.0
    %5633 = vmatprep.subr.mxu0 0.0
    %5634 = vmatpush1.msra.mxu0 0.0
    %5635 = vmatprep.subr.mxu0 0.0
    %5636 = vmatpush1.msra.mxu0 0.0
    %5637 = vmatprep.subr.mxu0 0.0
    %5638 = vmatpush1.msra.mxu0 0.0
    %5639 = vmatprep.subr.mxu0 0.0
    %5640 = vmatpush1.msra.mxu0 0.0
    %5641 = vmatprep.subr.mxu0 0.0
    %5642 = vmatpush1.msra.mxu0 0.0
    %5643 = vmatprep.subr.mxu0 0.0
    %5644 = vmatpush1.msra.mxu0 0.0
    %5645 = vmatprep.subr.mxu0 0.0
    %5646 = vmatpush1.msra.mxu0 0.0
    %5647 = vmatprep.subr.mxu0 0.0
    %5648 = vmatpush1.msra.mxu0 0.0
    %5649 = vmatprep.subr.mxu0 0.0
    %5650 = vmatpush1.msra.mxu0 0.0
    %5651 = vmatprep.subr.mxu0 0.0
    %5652 = vmatpush1.msra.mxu0 0.0
    %5653 = vmatprep.subr.mxu0 0.0
    %5654 = vmatpush1.msra.mxu0 0.0
    %5655 = vmatprep.subr.mxu0 0.0
    %5656 = vmatpush1.msra.mxu0 0.0
    %5657 = vmatprep.subr.mxu0 0.0
    %5658 = vmatpush1.msra.mxu0 0.0
    %5659 = vmatprep.subr.mxu0 0.0
    %5660 = vmatpush1.msra.mxu0 0.0
    %5661 = vmatprep.subr.mxu0 0.0
    %5662 = vmatpush1.msra.mxu0 0.0
    %5663 = vmatprep.subr.mxu0 0.0
    %5664 = vmatpush1.msra.mxu0 0.0
    %5665 = vmatprep.subr.mxu0 0.0
    %5666 = vmatpush1.msra.mxu0 0.0
    %5667 = vmatprep.subr.mxu0 0.0
    %5668 = vmatpush1.msra.mxu0 0.0
    %5669 = vmatprep.subr.mxu0 0.0
    %5670 = vmatpush1.msra.mxu0 0.0
    %5671 = vmatprep.subr.mxu0 0.0
    %5672 = vmatpush1.msra.mxu0 0.0
    %5673 = vmatprep.subr.mxu0 0.0
    %5674 = vmatpush1.msra.mxu0 0.0
    %5675 = vmatprep.subr.mxu0 0.0
    %5676 = vmatpush1.msra.mxu0 0.0
    %5677 = vmatprep.subr.mxu0 0.0
    %5678 = vmatpush1.msra.mxu0 0.0
    %5679 = vmatprep.mubr.f32.mxu0 0.0
    %v5680 = vand.u32 %v944, 4294901760
    %v5681 = vsub.f32 %v944, %v5680
    %v5682 = vand.u32 %v5681, 4294901760
    %5683 = vmatmul.mubr.f32.gmra.mrb[0].mxu0 %v5682
    %v5684 = vpop.f32.mrb[0].mxu0
    %v5685 = vadd.f32 %v5585, %v5684
    %v5686 = vpop.f32.mrb[0].mxu0
    %v5687 = vadd.f32 %v5587, %v5686
    %5688 = vmatprep.mubr.f32.mxu0 0.0
    %v5689 = vand.u32 %v947, 4294901760
    %v5690 = vsub.f32 %v947, %v5689
    %v5691 = vand.u32 %v5690, 4294901760
    %5692 = vmatmul.mubr.f32.gmra.mrb[0].mxu0 %v5691
    %v5693 = vpop.f32.mrb[0].mxu0
    %v5694 = vadd.f32 %v5593, %v5693
    %v5695 = vpop.f32.mrb[0].mxu0
    %v5696 = vadd.f32 %v5595, %v5695
    %5697 = vmatprep.mubr.f32.mxu0 0.0
    %v5698 = vand.u32 %v950, 4294901760
    %v5699 = vsub.f32 %v950, %v5698
    %v5700 = vand.u32 %v5699, 4294901760
    %5701 = vmatmul.mubr.f32.gmra.mrb[0].mxu0 %v5700
    %v5702 = vpop.f32.mrb[0].mxu0
    %v5703 = vadd.f32 %v5601, %v5702
    %v5704 = vpop.f32.mrb[0].mxu0
    %v5705 = vadd.f32 %v5603, %v5704
    %5706 = vmatprep.mubr.f32.mxu0 0.0
    %v5707 = vand.u32 %v953, 4294901760
    %v5708 = vsub.f32 %v953, %v5707
    %v5709 = vand.u32 %v5708, 4294901760
    %5710 = vmatmul.mubr.f32.gmra.mrb[0].mxu0 %v5709
    %v5711 = vpop.f32.mrb[0].mxu0
    %v5712 = vadd.f32 %v5609, %v5711
    %v5713 = vpop.f32.mrb[0].mxu0
    %v5714 = vadd.f32 %v5611, %v5713
    %5715 = vdwg.mxu0
    %v5716 = vand.u32 %v5296, 4294901760
    %v5717 = vsub.f32 %v5296, %v5716
    %v5718 = vand.u32 %v5717, 4294901760
    %5719 = vmatprep.subr.mxu0 %v5718
    %v5720 = vand.u32 %v5293, 4294901760
    %v5721 = vsub.f32 %v5293, %v5720
    %v5722 = vand.u32 %v5721, 4294901760
    %5723 = vmatpush1.msra.mxu0 %v5722
    %5724 = vmatprep.subr.mxu0 0.0
    %5725 = vmatpush1.msra.mxu0 0.0
    %5726 = vmatprep.subr.mxu0 0.0
    %5727 = vmatpush1.msra.mxu0 0.0
    %5728 = vmatprep.subr.mxu0 0.0
    %5729 = vmatpush1.msra.mxu0 0.0
    %5730 = vmatprep.subr.mxu0 0.0
    %5731 = vmatpush1.msra.mxu0 0.0
    %5732 = vmatprep.subr.mxu0 0.0
    %5733 = vmatpush1.msra.mxu0 0.0
    %5734 = vmatprep.subr.mxu0 0.0
    %5735 = vmatpush1.msra.mxu0 0.0
    %5736 = vmatprep.subr.mxu0 0.0
    %5737 = vmatpush1.msra.mxu0 0.0
    %5738 = vmatprep.subr.mxu0 0.0
    %5739 = vmatpush1.msra.mxu0 0.0
    %5740 = vmatprep.subr.mxu0 0.0
    %5741 = vmatpush1.msra.mxu0 0.0
    %5742 = vmatprep.subr.mxu0 0.0
    %5743 = vmatpush1.msra.mxu0 0.0
    %5744 = vmatprep.subr.mxu0 0.0
    %5745 = vmatpush1.msra.mxu0 0.0
    %5746 = vmatprep.subr.mxu0 0.0
    %5747 = vmatpush1.msra.mxu0 0.0
    %5748 = vmatprep.subr.mxu0 0.0
    %5749 = vmatpush1.msra.mxu0 0.0
    %5750 = vmatprep.subr.mxu0 0.0
    %5751 = vmatpush1.msra.mxu0 0.0
    %5752 = vmatprep.subr.mxu0 0.0
    %5753 = vmatpush1.msra.mxu0 0.0
    %5754 = vmatprep.subr.mxu0 0.0
    %5755 = vmatpush1.msra.mxu0 0.0
    %5756 = vmatprep.subr.mxu0 0.0
    %5757 = vmatpush1.msra.mxu0 0.0
    %5758 = vmatprep.subr.mxu0 0.0
    %5759 = vmatpush1.msra.mxu0 0.0
    %5760 = vmatprep.subr.mxu0 0.0
    %5761 = vmatpush1.msra.mxu0 0.0
    %5762 = vmatprep.subr.mxu0 0.0
    %5763 = vmatpush1.msra.mxu0 0.0
    %5764 = vmatprep.subr.mxu0 0.0
    %5765 = vmatpush1.msra.mxu0 0.0
    %5766 = vmatprep.subr.mxu0 0.0
    %5767 = vmatpush1.msra.mxu0 0.0
    %5768 = vmatprep.subr.mxu0 0.0
    %5769 = vmatpush1.msra.mxu0 0.0
    %5770 = vmatprep.subr.mxu0 0.0
    %5771 = vmatpush1.msra.mxu0 0.0
    %5772 = vmatprep.subr.mxu0 0.0
    %5773 = vmatpush1.msra.mxu0 0.0
    %5774 = vmatprep.subr.mxu0 0.0
    %5775 = vmatpush1.msra.mxu0 0.0
    %5776 = vmatprep.subr.mxu0 0.0
    %5777 = vmatpush1.msra.mxu0 0.0
    %5778 = vmatprep.subr.mxu0 0.0
    %5779 = vmatpush1.msra.mxu0 0.0
    %5780 = vmatprep.subr.mxu0 0.0
    %5781 = vmatpush1.msra.mxu0 0.0
    %5782 = vmatprep.subr.mxu0 0.0
    %5783 = vmatpush1.msra.mxu0 0.0
    %5784 = vmatprep.subr.mxu0 0.0
    %5785 = vmatpush1.msra.mxu0 0.0
    %5786 = vmatprep.mubr.f32.mxu0 0.0
    %v5787 = vand.u32 %v944, 4294901760
    %5788 = vmatmul.mubr.f32.gmra.mrb[0].mxu0 %v5787
    %v5789 = vpop.f32.mrb[0].mxu0
    %v5790 = vadd.f32 %v5685, %v5789
    %v5791 = vpop.f32.mrb[0].mxu0
    %v5792 = vadd.f32 %v5687, %v5791
    %5793 = vmatprep.mubr.f32.mxu0 0.0
    %v5794 = vand.u32 %v947, 4294901760
    %5795 = vmatmul.mubr.f32.gmra.mrb[0].mxu0 %v5794
    %v5796 = vpop.f32.mrb[0].mxu0
    %v5797 = vadd.f32 %v5694, %v5796
    %v5798 = vpop.f32.mrb[0].mxu0
    %v5799 = vadd.f32 %v5696, %v5798
    %5800 = vmatprep.mubr.f32.mxu0 0.0
    %v5801 = vand.u32 %v950, 4294901760
    %5802 = vmatmul.mubr.f32.gmra.mrb[0].mxu0 %v5801
    %v5803 = vpop.f32.mrb[0].mxu0
    %v5804 = vadd.f32 %v5703, %v5803
    %v5805 = vpop.f32.mrb[0].mxu0
    %v5806 = vadd.f32 %v5705, %v5805
    %5807 = vmatprep.mubr.f32.mxu0 0.0
    %v5808 = vand.u32 %v953, 4294901760
    %5809 = vmatmul.mubr.f32.gmra.mrb[0].mxu0 %v5808
    %v5810 = vpop.f32.mrb[0].mxu0
    %v5811 = vadd.f32 %v5712, %v5810
    %v5812 = vpop.f32.mrb[0].mxu0
    %v5813 = vadd.f32 %v5714, %v5812
    %5814 = vdwg.mxu0
    %v5815 = vand.u32 %v5296, 4294901760
    %5816 = vmatprep.subr.mxu0 %v5815
    %v5817 = vand.u32 %v5293, 4294901760
    %5818 = vmatpush1.msra.mxu0 %v5817
    %5819 = vmatprep.subr.mxu0 0.0
    %5820 = vmatpush1.msra.mxu0 0.0
    %5821 = vmatprep.subr.mxu0 0.0
    %5822 = vmatpush1.msra.mxu0 0.0
    %5823 = vmatprep.subr.mxu0 0.0
    %5824 = vmatpush1.msra.mxu0 0.0
    %5825 = vmatprep.subr.mxu0 0.0
    %5826 = vmatpush1.msra.mxu0 0.0
    %5827 = vmatprep.subr.mxu0 0.0
    %5828 = vmatpush1.msra.mxu0 0.0
    %5829 = vmatprep.subr.mxu0 0.0
    %5830 = vmatpush1.msra.mxu0 0.0
    %5831 = vmatprep.subr.mxu0 0.0
    %5832 = vmatpush1.msra.mxu0 0.0
    %5833 = vmatprep.subr.mxu0 0.0
    %5834 = vmatpush1.msra.mxu0 0.0
    %5835 = vmatprep.subr.mxu0 0.0
    %5836 = vmatpush1.msra.mxu0 0.0
    %5837 = vmatprep.subr.mxu0 0.0
    %5838 = vmatpush1.msra.mxu0 0.0
    %5839 = vmatprep.subr.mxu0 0.0
    %5840 = vmatpush1.msra.mxu0 0.0
    %5841 = vmatprep.subr.mxu0 0.0
    %5842 = vmatpush1.msra.mxu0 0.0
    %5843 = vmatprep.subr.mxu0 0.0
    %5844 = vmatpush1.msra.mxu0 0.0
    %5845 = vmatprep.subr.mxu0 0.0
    %5846 = vmatpush1.msra.mxu0 0.0
    %5847 = vmatprep.subr.mxu0 0.0
    %5848 = vmatpush1.msra.mxu0 0.0
    %5849 = vmatprep.subr.mxu0 0.0
    %5850 = vmatpush1.msra.mxu0 0.0
    %5851 = vmatprep.subr.mxu0 0.0
    %5852 = vmatpush1.msra.mxu0 0.0
    %5853 = vmatprep.subr.mxu0 0.0
    %5854 = vmatpush1.msra.mxu0 0.0
    %5855 = vmatprep.subr.mxu0 0.0
    %5856 = vmatpush1.msra.mxu0 0.0
    %5857 = vmatprep.subr.mxu0 0.0
    %5858 = vmatpush1.msra.mxu0 0.0
    %5859 = vmatprep.subr.mxu0 0.0
    %5860 = vmatpush1.msra.mxu0 0.0
    %5861 = vmatprep.subr.mxu0 0.0
    %5862 = vmatpush1.msra.mxu0 0.0
    %5863 = vmatprep.subr.mxu0 0.0
    %5864 = vmatpush1.msra.mxu0 0.0
    %5865 = vmatprep.subr.mxu0 0.0
    %5866 = vmatpush1.msra.mxu0 0.0
    %5867 = vmatprep.subr.mxu0 0.0
    %5868 = vmatpush1.msra.mxu0 0.0
    %5869 = vmatprep.subr.mxu0 0.0
    %5870 = vmatpush1.msra.mxu0 0.0
    %5871 = vmatprep.subr.mxu0 0.0
    %5872 = vmatpush1.msra.mxu0 0.0
    %5873 = vmatprep.subr.mxu0 0.0
    %5874 = vmatpush1.msra.mxu0 0.0
    %5875 = vmatprep.subr.mxu0 0.0
    %5876 = vmatpush1.msra.mxu0 0.0
    %5877 = vmatprep.subr.mxu0 0.0
    %5878 = vmatpush1.msra.mxu0 0.0
    %5879 = vmatprep.subr.mxu0 0.0
    %5880 = vmatpush1.msra.mxu0 0.0
    %5881 = vmatprep.mubr.f32.mxu0 0.0
    %v5882 = vand.u32 %v944, 4294901760
    %5883 = vmatmul.mubr.f32.gmra.mrb[0].mxu0 %v5882
    %v5884 = vpop.f32.mrb[0].mxu0
    %v5885 = vadd.f32 %v5790, %v5884
    %v5886 = vpop.f32.mrb[0].mxu0
    %v5887 = vadd.f32 %v5792, %v5886
    %5888 = vmatprep.mubr.f32.mxu0 0.0
    %v5889 = vand.u32 %v947, 4294901760
    %5890 = vmatmul.mubr.f32.gmra.mrb[0].mxu0 %v5889
    %v5891 = vpop.f32.mrb[0].mxu0
    %v5892 = vadd.f32 %v5797, %v5891
    %v5893 = vpop.f32.mrb[0].mxu0
    %v5894 = vadd.f32 %v5799, %v5893
    %5895 = vmatprep.mubr.f32.mxu0 0.0
    %v5896 = vand.u32 %v950, 4294901760
    %5897 = vmatmul.mubr.f32.gmra.mrb[0].mxu0 %v5896
    %v5898 = vpop.f32.mrb[0].mxu0
    %v5899 = vadd.f32 %v5804, %v5898
    %v5900 = vpop.f32.mrb[0].mxu0
    %v5901 = vadd.f32 %v5806, %v5900
    %5902 = vmatprep.mubr.f32.mxu0 0.0
    %v5903 = vand.u32 %v953, 4294901760
    %5904 = vmatmul.mubr.f32.gmra.mrb[0].mxu0 %v5903
    %v5905 = vpop.f32.mrb[0].mxu0
    %v5906 = vadd.f32 %v5811, %v5905
    %v5907 = vpop.f32.mrb[0].mxu0
    %v5908 = vadd.f32 %v5813, %v5907
    %5909 = vdwg.mxu0
    %vm5910 = vcmp.gt.f32.partialorder %v4625, 0.0
    %vm5911 = vcmp.gt.f32.partialorder %v4638, 0.0
    %v5912 = vsel %vm5910, 1, 0
    %v5913 = vsel %vm5911, 1, 0
    %vm5914 = vcmp.eq.s32.totalorder %v5912, 1
    %vm5915 = vcmp.eq.s32.totalorder %v5913, 1
    %v5916 = vsel %vm5914, %v5885, 0.0
    %v5917 = vsel %vm5915, %v5887, 0.0
    %v5918 = vsel %vm5914, %v5892, 0.0
    %v5919 = vsel %vm5915, %v5894, 0.0
    %v5920 = vsel %vm5914, %v5899, 0.0
    %v5921 = vsel %vm5915, %v5901, 0.0
    %v5922 = vsel %vm5914, %v5906, 0.0
    %v5923 = vsel %vm5915, %v5908, 0.0
    %s5924 = sadd.s32 2, 16
    %s5925 = smul.addr %s5924, 8
    %s5926 = scalar_lea.vmem [#allocation2], %s5925
    %5927 = vst [vmem:[%s5926] sm:$0xff] %v5916
    %5928 = vst [vmem:[%s5926 + $0x8] sm:$0xff] %v5917
    %5929 = vst [vmem:[%s5926 + $0x20] sm:$0xff] %v5918
    %5930 = vst [vmem:[%s5926 + $0x28] sm:$0xff] %v5919
    %5931 = vst [vmem:[%s5926 + $0x40] sm:$0xff] %v5920
    %5932 = vst [vmem:[%s5926 + $0x48] sm:$0xff] %v5921
    %5933 = vst [vmem:[%s5926 + $0x60] sm:$0xff] %v5922
    %5934 = vst [vmem:[%s5926 + $0x68] sm:$0xff] %v5923
    // Predicated region
    $region18: #{tpu_custom_call.1} parent=1 // pred_check
      _
    $region19: #{tpu_custom_call.1} parent=1 // pred_check_branch
      %5936 = sbr.rel (0) target = $region21
    $region20: #{tpu_custom_call.1} parent=1 // pred_region
      %s5938 = ssub.s32 4096, 4096
      %5939 = vsyncadd [#allocation3], %s5938
      %s5940 = sshll.u32 [#allocation2], 4
      %s5941 = int_to_ptr.vmem [resolvable:$true] %s5940
      %5946 = dma.vmem_to_hbm [thread:$0]  %s5941, 4096, %s4, [#allocation3], 512, 512, 32
    $region21: #{tpu_custom_call.1} parent=1 // pred_fallthru
      _
    // Predicated region
    $region22: #{tpu_custom_call.1} parent=1 // pred_check
      _
    $region23: #{tpu_custom_call.1} parent=1 // pred_check_branch
      %5948 = sbr.rel (0) target = $region25
    $region24: #{tpu_custom_call.1} parent=1 // pred_region
      %5949 = dma.done [#allocation3], 4096
    $region25: #{tpu_custom_call.1} parent=1 // pred_fallthru
      _
    %5950 = vsyncpa [#allocation3], 1

</llo_original>
